<compile_context>
chip_gen: v5e
topology: v5e:2x2
jax: 0.10.0
libtpu: 0.0.40
codegen_flags: <defaults>
</compile_context>

<pallas_src>
import functools

import jax
import jax.numpy as jnp
from jax import lax
from jax.experimental import pallas as pl
from jax.experimental.pallas import tpu as pltpu


# ----------------------------------------------------------------------------
# Pallas kernels
# ----------------------------------------------------------------------------
def _mm_bias_kernel(x_ref, w_ref, b_ref, o_ref, *, relu):
    """out = [relu](x @ w + b).  x/w bf16, f32 accumulate, f32 bias."""
    acc = jnp.dot(x_ref[...], w_ref[...], preferred_element_type=jnp.float32)
    y = acc + b_ref[...]
    if relu:
        y = jnp.maximum(y, 0.0)
    o_ref[...] = y.astype(o_ref.dtype)


def _conv3x3_bias_relu_kernel(x_ref, w_ref, b_ref, o_ref):
    """Fused-im2col 3x3 / stride-1 conv + folded-BN bias + ReLU for one image.

    x_ref: (1, Ho+2, Wo+2, Cin)   zero-padded activation (bf16)
    w_ref: (9, Cin, Cout)         per-tap weights, BN scale folded in (bf16)
    b_ref: (1, Cout)              BN bias (f32)
    o_ref: (1, Ho, Wo, Cout)
    """
    _, ho, wo, cout = o_ref.shape
    cin = x_ref.shape[-1]
    xw = x_ref[0]                                     # (Hp, Wp, Cin)
    acc = jnp.zeros((ho * wo, cout), jnp.float32)
    for i in range(3):                                # 9 taps, unrolled
        for j in range(3):
            win = xw[i:i + ho, j:j + wo, :].reshape(ho * wo, cin)
            acc = acc + jnp.dot(win, w_ref[i * 3 + j],
                                preferred_element_type=jnp.float32)
    y = jnp.maximum(acc + b_ref[...], 0.0)
    o_ref[...] = y.reshape(1, ho, wo, cout).astype(o_ref.dtype)


def _mm_identity_res_kernel(x_ref, w_ref, b_ref, id_ref, o_ref):
    """conv3 (1x1) + BN bias + residual identity + ReLU, fused."""
    acc = jnp.dot(x_ref[...], w_ref[...], preferred_element_type=jnp.float32)
    y = acc + b_ref[...] + id_ref[...].astype(jnp.float32)
    o_ref[...] = jnp.maximum(y, 0.0).astype(o_ref.dtype)


def _mm_down_res_kernel(x_ref, w_ref, xs_ref, wd_ref, b_ref, o_ref):
    """conv3 (1x1) + 1x1 downsample + summed BN biases + add + ReLU, fused."""
    acc = jnp.dot(x_ref[...], w_ref[...], preferred_element_type=jnp.float32)
    acc = acc + jnp.dot(xs_ref[...], wd_ref[...],
                        preferred_element_type=jnp.float32)
    o_ref[...] = jnp.maximum(acc + b_ref[...], 0.0).astype(o_ref.dtype)


# ----------------------------------------------------------------------------
# Pallas wrappers
# ----------------------------------------------------------------------------
def _pick_tm(m, cap=512):
    """Largest row tile that is a multiple of 8, divides m, <= cap, and (when
    possible) leaves >= 2 grid steps for a v7x megacore parallel split."""
    cands = [t for t in range(8, min(cap, m) + 1, 8) if m % t == 0]
    if not cands:
        return m                         # full dim is always a legal block
    multi = [t for t in cands if m // t >= 2 and t >= 64]
    return max(multi) if multi else max(cands)


_PARAMS_1D = pltpu.CompilerParams(dimension_semantics=("parallel",))
# NOTE: at real ResNet-50 sizes on v7x (64 MiB VMEM) add cout/K tiling and set
# vmem_limit_bytes; at this demo scale the defaults are ample.


def matmul_bias(x2d, w2d, bias, *, relu, out_dtype):
    m, k = x2d.shape
    cout = w2d.shape[1]
    tm = _pick_tm(m)
    return pl.pallas_call(
        functools.partial(_mm_bias_kernel, relu=relu),
        out_shape=jax.ShapeDtypeStruct((m, cout), out_dtype),
        grid=(m // tm,),
        in_specs=[
            pl.BlockSpec((tm, k), lambda i: (i, 0)),
            pl.BlockSpec((k, cout), lambda i: (0, 0)),
            pl.BlockSpec((1, cout), lambda i: (0, 0)),
        ],
        out_specs=pl.BlockSpec((tm, cout), lambda i: (i, 0)),
        compiler_params=_PARAMS_1D,
    )(x2d, w2d, bias.reshape(1, cout))


def conv3x3_bn_relu(x_nhwc, w9, bias):
    """x: (N, H, W, Cin) bf16;  w9: (9, Cin, Cout) bf16;  bias: (Cout,) f32."""
    n, h, w, cin = x_nhwc.shape
    cout = w9.shape[-1]
    xp = jnp.pad(x_nhwc, ((0, 0), (1, 1), (1, 1), (0, 0)))
    hp, wp = h + 2, w + 2
    # TODO(synk): for large images add an H-row grid axis (halo of 2 rows)
    # instead of keeping a whole padded image per grid step.
    return pl.pallas_call(
        _conv3x3_bias_relu_kernel,
        out_shape=jax.ShapeDtypeStruct((n, h, w, cout), jnp.bfloat16),
        grid=(n,),
        in_specs=[
            pl.BlockSpec((1, hp, wp, cin), lambda i: (i, 0, 0, 0)),
            pl.BlockSpec((9, cin, cout), lambda i: (0, 0, 0)),
            pl.BlockSpec((1, cout), lambda i: (0, 0)),
        ],
        out_specs=pl.BlockSpec((1, h, w, cout), lambda i: (i, 0, 0, 0)),
        compiler_params=_PARAMS_1D,
    )(xp, w9, bias.reshape(1, cout))


def conv1x1_identity_res(mid2d, w3, b3, identity2d):
    m, k = mid2d.shape
    cout = w3.shape[1]
    tm = _pick_tm(m)
    return pl.pallas_call(
        _mm_identity_res_kernel,
        out_shape=jax.ShapeDtypeStruct((m, cout), jnp.float32),
        grid=(m // tm,),
        in_specs=[
            pl.BlockSpec((tm, k), lambda i: (i, 0)),
            pl.BlockSpec((k, cout), lambda i: (0, 0)),
            pl.BlockSpec((1, cout), lambda i: (0, 0)),
            pl.BlockSpec((tm, cout), lambda i: (i, 0)),
        ],
        out_specs=pl.BlockSpec((tm, cout), lambda i: (i, 0)),
        compiler_params=_PARAMS_1D,
    )(mid2d, w3, b3.reshape(1, cout), identity2d)


def conv1x1_down_res(mid2d, w3, xs2d, wd, bias_sum):
    m, k = mid2d.shape
    kd = xs2d.shape[1]
    cout = w3.shape[1]
    tm = _pick_tm(m)
    return pl.pallas_call(
        _mm_down_res_kernel,
        out_shape=jax.ShapeDtypeStruct((m, cout), jnp.float32),
        grid=(m // tm,),
        in_specs=[
            pl.BlockSpec((tm, k), lambda i: (i, 0)),
            pl.BlockSpec((k, cout), lambda i: (0, 0)),
            pl.BlockSpec((tm, kd), lambda i: (i, 0)),
            pl.BlockSpec((kd, cout), lambda i: (0, 0)),
            pl.BlockSpec((1, cout), lambda i: (0, 0)),
        ],
        out_specs=pl.BlockSpec((tm, cout), lambda i: (i, 0)),
        compiler_params=_PARAMS_1D,
    )(mid2d, w3, xs2d, wd, bias_sum.reshape(1, cout))


# ----------------------------------------------------------------------------
# Parameter init (deterministic, synthetic) and prep (BN fold + bf16 cast)
# ----------------------------------------------------------------------------
def _kaiming_uniform(key, shape, fan_in, a=1.0):
    bound = (6.0 / ((1.0 + a * a) * fan_in)) ** 0.5
    return jax.random.uniform(key, shape, jnp.float32, -bound, bound)


def _init_frozen_bn(key, c):
    k1, k2, k3, k4 = jax.random.split(key, 4)
    gamma = jax.random.uniform(k1, (c,), jnp.float32, 0.5, 1.5)
    beta = jax.random.uniform(k2, (c,), jnp.float32, -0.5, 0.5)
    mean = jax.random.uniform(k3, (c,), jnp.float32, -0.5, 0.5)
    var = jax.random.uniform(k4, (c,), jnp.float32, 0.5, 1.5)
    scale = gamma / jnp.sqrt(var)               # FrozenBatchNorm2d
    bias = beta - mean * scale
    return {"scale": scale, "bias": bias}


def init_ra_bottleneck(key, in_c, bneck_c, out_c):
    ks = jax.random.split(key, 8)
    p = {
        "conv1_w": _kaiming_uniform(ks[0], (bneck_c, in_c, 1, 1), in_c),
        "bn1": _init_frozen_bn(ks[1], bneck_c),
        "conv2_w": _kaiming_uniform(ks[2], (bneck_c, bneck_c, 3, 3), bneck_c * 9),
        "bn2": _init_frozen_bn(ks[3], bneck_c),
        "conv3_w": _kaiming_uniform(ks[4], (out_c, bneck_c, 1, 1), bneck_c),
        "bn3": _init_frozen_bn(ks[5], out_c),
    }
    if in_c != out_c:
        p["down_w"] = _kaiming_uniform(ks[6], (out_c, in_c, 1, 1), in_c)
        p["down_bn"] = _init_frozen_bn(ks[7], out_c)
    return p


def prep_ra_bottleneck(raw):
    """Fold FrozenBN scales into conv weights, reshape for matmul, cast bf16."""
    def fold_1x1(w, bn):
        return (w[:, :, 0, 0].T * bn["scale"][None, :]).astype(jnp.bfloat16)

    w2 = jnp.transpose(raw["conv2_w"], (2, 3, 1, 0))        # (3,3,Cin,Cout)
    w2 = (w2 * raw["bn2"]["scale"][None, None, None, :]).astype(jnp.bfloat16)
    prep = {
        "w1": fold_1x1(raw["conv1_w"], raw["bn1"]),
        "b1": raw["bn1"]["bias"],
        "w2": w2.reshape(9, w2.shape[2], w2.shape[3]),
        "b2": raw["bn2"]["bias"],
        "w3": fold_1x1(raw["conv3_w"], raw["bn3"]),
        "b3": raw["bn3"]["bias"],
    }
    if "down_w" in raw:
        prep["wd"] = fold_1x1(raw["down_w"], raw["down_bn"])
        # both biases land on the same output -> pre-sum (one less operand)
        prep["bd_plus_b3"] = raw["bn3"]["bias"] + raw["down_bn"]["bias"]
    return prep


# ----------------------------------------------------------------------------
# RABottleneck forward (stride_in_1x1=True, dilation=1, groups=1, no DCN)
# ----------------------------------------------------------------------------
def ra_bottleneck_forward(prep, x_nhwc, stride):
    """x_nhwc: (N, H, W, Cin) f32 -> (N, H/stride, W/stride, Cout) f32."""
    # TODO(synk): DFConv2d (DCN), dilation > 1, num_groups > 1 and
    # stride_in_1x1=False are not exercised by this config and not implemented.
    n, h, w, cin = x_nhwc.shape
    x_s = x_nhwc[:, ::stride, ::stride, :] if stride > 1 else x_nhwc
    ho, wo = x_s.shape[1], x_s.shape[2]
    m = n * ho * wo
    x_s_bf = x_s.astype(jnp.bfloat16).reshape(m, cin)

    # conv1 (1x1, stride in 1x1) + bn1 + relu        -- fused matmul epilogue
    cb = prep["w1"].shape[1]
    mid = matmul_bias(x_s_bf, prep["w1"], prep["b1"], relu=True,
                      out_dtype=jnp.bfloat16)
    # conv2 (3x3, stride 1, pad 1) + bn2 + relu      -- im2col fused in-kernel
    mid = conv3x3_bn_relu(mid.reshape(n, ho, wo, cb), prep["w2"], prep["b2"])
    mid = mid.reshape(m, cb)

    cout = prep["w3"].shape[1]
    if "wd" in prep:
        # conv3 + downsample + add + relu, all in one kernel
        out = conv1x1_down_res(mid, prep["w3"], x_s_bf, prep["wd"],
                               prep["bd_plus_b3"])
    else:
        # conv3 + identity add + relu, in one kernel (requires stride == 1)
        out = conv1x1_identity_res(mid, prep["w3"], prep["b3"],
                                   x_nhwc.reshape(m, cout))
    return out.reshape(n, ho, wo, cout)


# ----------------------------------------------------------------------------
# Pure-JAX reference (XLA convs) for a correctness check
# ----------------------------------------------------------------------------
def _conv_ref(x, w, stride, padding):
    return lax.conv_general_dilated(
        x, jnp.transpose(w, (2, 3, 1, 0)),
        window_strides=(stride, stride),
        padding=[(padding, padding), (padding, padding)],
        dimension_numbers=("NHWC", "HWIO", "NHWC"))


def ra_bottleneck_ref(raw, x, stride):
    def bn(v, p):
        return v * p["scale"] + p["bias"]
    out = jax.nn.relu(bn(_conv_ref(x, raw["conv1_w"], stride, 0), raw["bn1"]))
    out = jax.nn.relu(bn(_conv_ref(out, raw["conv2_w"], 1, 1), raw["bn2"]))
    out = bn(_conv_ref(out, raw["conv3_w"], 1, 0), raw["bn3"])
    if "down_w" in raw:
        identity = bn(_conv_ref(x, raw["down_w"], stride, 0), raw["down_bn"])
    else:
        identity = x
    return jax.nn.relu(out + identity)


# ----------------------------------------------------------------------------
if __name__ == "__main__":
    key = jax.random.PRNGKey(0)
    ka, kb, kx = jax.random.split(key, 3)

    # Block A: in_c != out_c -> downsample branch, stride 2.
    rawA = init_ra_bottleneck(ka, 128, 128, 256)
    # Block B: in_c == out_c -> identity branch, stride 1.
    rawB = init_ra_bottleneck(kb, 256, 128, 256)
    prepA, prepB = prep_ra_bottleneck(rawA), prep_ra_bottleneck(rawB)

    x = jax.random.normal(kx, (2, 128, 16, 16), jnp.float32)    # NCHW input

    @jax.jit
    def fwd(pA, pB, x_nchw):
        xh = jnp.transpose(x_nchw, (0, 2, 3, 1))                # NCHW -> NHWC
        y = ra_bottleneck_forward(pA, xh, stride=2)
        y = ra_bottleneck_forward(pB, y, stride=1)
        return jnp.transpose(y, (0, 3, 1, 2))                   # back to NCHW

    out = jax.block_until_ready(fwd(prepA, prepB, x))
    assert out.shape == (2, 256, 8, 8), out.shape
    assert bool(jnp.all(jnp.isfinite(out)))

    @jax.jit
    def ref(x_nchw):
        xh = jnp.transpose(x_nchw, (0, 2, 3, 1))
        y = ra_bottleneck_ref(rawA, xh, 2)
        y = ra_bottleneck_ref(rawB, y, 1)
        return jnp.transpose(y, (0, 3, 1, 2))

    out_ref = jax.block_until_ready(ref(x))
    # bf16 matmul operands vs f32 reference -> generous tolerance
    err = float(jnp.max(jnp.abs(out - out_ref)) /
                (jnp.max(jnp.abs(out_ref)) + 1e-6))
    assert err < 0.1, f"mismatch vs reference: normalized max err {err}"
    print("KERNEL_OK")
</pallas_src>

<mosaic_0001>
module attributes {stable_mosaic.version = 11 : i64} {
  func.func @_mm_bias_kernel(%arg0: i32, %arg1: memref<64x128xbf16, #tpu.memory_space<vmem>>, %arg2: memref<128x128xbf16, #tpu.memory_space<vmem>>, %arg3: memref<1x128xf32, #tpu.memory_space<vmem>>, %arg4: memref<64x128xbf16, #tpu.memory_space<vmem>>) attributes {dimension_semantics = [#tpu.dimension_semantics<parallel>], iteration_bounds = array<i64: 2>, scalar_prefetch = 0 : i64, scratch_operands = 0 : i64, tpu.core_type = #tpu.core_type<tc>, window_params = [{transform_indices = @transform_0, window_bounds = array<i64: 64, 128>}, {pipeline_mode = #tpu.pipeline_mode<synchronous>, transform_indices = @transform_1, window_bounds = array<i64: 128, 128>}, {pipeline_mode = #tpu.pipeline_mode<synchronous>, transform_indices = @transform_2, window_bounds = array<i64: 1, 128>}, {transform_indices = @transform_3, window_bounds = array<i64: 64, 128>}]} {
    %c0 = arith.constant 0 : index
    %c0_0 = arith.constant 0 : index
    %0 = vector.load %arg1[%c0, %c0_0] : memref<64x128xbf16, #tpu.memory_space<vmem>>, vector<64x128xbf16>
    %c0_1 = arith.constant 0 : index
    %c0_2 = arith.constant 0 : index
    %1 = vector.load %arg2[%c0_1, %c0_2] : memref<128x128xbf16, #tpu.memory_space<vmem>>, vector<128x128xbf16>
    %cst = arith.constant dense<0.000000e+00> : vector<64x128xf32>
    %2 = tpu.matmul %0, %1, %cst {dimension_numbers = #tpu.dot_dimension_numbers<[1], [0], [0], [1], [0, 0, 1, 1], [], []>} : vector<64x128xbf16>, vector<128x128xbf16>, vector<64x128xf32> -> vector<64x128xf32>
    %c0_3 = arith.constant 0 : index
    %c0_4 = arith.constant 0 : index
    %3 = vector.load %arg3[%c0_3, %c0_4] : memref<1x128xf32, #tpu.memory_space<vmem>>, vector<1x128xf32>
    %4 = vector.broadcast %3 : vector<1x128xf32> to vector<64x128xf32>
    %5 = arith.addf %2, %4 : vector<64x128xf32>
    %cst_5 = arith.constant 0.000000e+00 : f32
    %6 = vector.broadcast %cst_5 : f32 to vector<64x128xf32>
    %7 = arith.maximumf %5, %6 : vector<64x128xf32>
    %8 = arith.truncf %7 : vector<64x128xf32> to vector<64x128xbf16>
    %c0_6 = arith.constant 0 : index
    %c0_7 = arith.constant 0 : index
    %9 = vector.load %arg4[%c0_6, %c0_7] : memref<64x128xbf16, #tpu.memory_space<vmem>>, vector<64x128xbf16>
    tpu.vector_store %arg4[%c0_6, %c0_7], %8 {strides = array<i32>} : memref<64x128xbf16, #tpu.memory_space<vmem>>, vector<64x128xbf16>,
    return
  }
  func.func @transform_0(%arg0: i32) -> (i32, i32) {
    %c0_i32 = arith.constant 0 : i32
    %c0_i32_0 = arith.constant 0 : i32
    return %arg0, %c0_i32 : i32, i32
  }
  func.func @transform_1(%arg0: i32) -> (i32, i32) {
    %c0_i32 = arith.constant 0 : i32
    %c0_i32_0 = arith.constant 0 : i32
    %c0_i32_1 = arith.constant 0 : i32
    return %c0_i32, %c0_i32_0 : i32, i32
  }
  func.func @transform_2(%arg0: i32) -> (i32, i32) {
    %c0_i32 = arith.constant 0 : i32
    %c0_i32_0 = arith.constant 0 : i32
    %c0_i32_1 = arith.constant 0 : i32
    return %c0_i32, %c0_i32_0 : i32, i32
  }
  func.func @transform_3(%arg0: i32) -> (i32, i32) {
    %c0_i32 = arith.constant 0 : i32
    %c0_i32_0 = arith.constant 0 : i32
    return %arg0, %c0_i32 : i32, i32
  }
}

module attributes {stable_mosaic.version = 11 : i64} {
  func.func @_conv3x3_bias_relu_kernel(%arg0: i32, %arg1: memref<1x10x10x128xbf16, #tpu.memory_space<vmem>>, %arg2: memref<9x128x128xbf16, #tpu.memory_space<vmem>>, %arg3: memref<1x128xf32, #tpu.memory_space<vmem>>, %arg4: memref<1x8x8x128xbf16, #tpu.memory_space<vmem>>) attributes {dimension_semantics = [#tpu.dimension_semantics<parallel>], iteration_bounds = array<i64: 2>, scalar_prefetch = 0 : i64, scratch_operands = 0 : i64, tpu.core_type = #tpu.core_type<tc>, window_params = [{transform_indices = @transform_0, window_bounds = array<i64: 1, 10, 10, 128>}, {pipeline_mode = #tpu.pipeline_mode<synchronous>, transform_indices = @transform_1, window_bounds = array<i64: 9, 128, 128>}, {pipeline_mode = #tpu.pipeline_mode<synchronous>, transform_indices = @transform_2, window_bounds = array<i64: 1, 128>}, {transform_indices = @transform_3, window_bounds = array<i64: 1, 8, 8, 128>}]} {
    %c0 = arith.constant 0 : index
    %c0_0 = arith.constant 0 : index
    %c0_1 = arith.constant 0 : index
    %c0_2 = arith.constant 0 : index
    %0 = vector.load %arg1[%c0, %c0_0, %c0_1, %c0_2] : memref<1x10x10x128xbf16, #tpu.memory_space<vmem>>, vector<1x10x10x128xbf16>
    %1 = vector.shape_cast %0 : vector<1x10x10x128xbf16> to vector<10x10x128xbf16>
    %cst = arith.constant 0.000000e+00 : f32
    %2 = vector.broadcast %cst : f32 to vector<64x128xf32>
    %3 = vector.extract_strided_slice %1 {offsets = [0, 0, 0], sizes = [8, 8, 128], strides = [1, 1, 1]} : vector<10x10x128xbf16> to vector<8x8x128xbf16>
    %4 = vector.shape_cast %3 : vector<8x8x128xbf16> to vector<64x128xbf16>
    %c0_3 = arith.constant 0 : index
    %c0_4 = arith.constant 0 : index
    %c0_5 = arith.constant 0 : index
    %5 = vector.load %arg2[%c0_3, %c0_4, %c0_5] : memref<9x128x128xbf16, #tpu.memory_space<vmem>>, vector<1x128x128xbf16>
    %6 = vector.shape_cast %5 : vector<1x128x128xbf16> to vector<128x128xbf16>
    %cst_6 = arith.constant dense<0.000000e+00> : vector<64x128xf32>
    %7 = tpu.matmul %4, %6, %cst_6 {dimension_numbers = #tpu.dot_dimension_numbers<[1], [0], [0], [1], [0, 0, 1, 1], [], []>} : vector<64x128xbf16>, vector<128x128xbf16>, vector<64x128xf32> -> vector<64x128xf32>
    %8 = arith.addf %2, %7 : vector<64x128xf32>
    %9 = vector.extract_strided_slice %1 {offsets = [0, 1, 0], sizes = [8, 8, 128], strides = [1, 1, 1]} : vector<10x10x128xbf16> to vector<8x8x128xbf16>
    %10 = vector.shape_cast %9 : vector<8x8x128xbf16> to vector<64x128xbf16>
    %c1 = arith.constant 1 : index
    %c0_7 = arith.constant 0 : index
    %c0_8 = arith.constant 0 : index
    %11 = vector.load %arg2[%c1, %c0_7, %c0_8] : memref<9x128x128xbf16, #tpu.memory_space<vmem>>, vector<1x128x128xbf16>
    %12 = vector.shape_cast %11 : vector<1x128x128xbf16> to vector<128x128xbf16>
    %cst_9 = arith.constant dense<0.000000e+00> : vector<64x128xf32>
    %13 = tpu.matmul %10, %12, %cst_9 {dimension_numbers = #tpu.dot_dimension_numbers<[1], [0], [0], [1], [0, 0, 1, 1], [], []>} : vector<64x128xbf16>, vector<128x128xbf16>, vector<64x128xf32> -> vector<64x128xf32>
    %14 = arith.addf %8, %13 : vector<64x128xf32>
    %15 = vector.extract_strided_slice %1 {offsets = [0, 2, 0], sizes = [8, 8, 128], strides = [1, 1, 1]} : vector<10x10x128xbf16> to vector<8x8x128xbf16>
    %16 = vector.shape_cast %15 : vector<8x8x128xbf16> to vector<64x128xbf16>
    %c2 = arith.constant 2 : index
    %c0_10 = arith.constant 0 : index
    %c0_11 = arith.constant 0 : index
    %17 = vector.load %arg2[%c2, %c0_10, %c0_11] : memref<9x128x128xbf16, #tpu.memory_space<vmem>>, vector<1x128x128xbf16>
    %18 = vector.shape_cast %17 : vector<1x128x128xbf16> to vector<128x128xbf16>
    %cst_12 = arith.constant dense<0.000000e+00> : vector<64x128xf32>
    %19 = tpu.matmul %16, %18, %cst_12 {dimension_numbers = #tpu.dot_dimension_numbers<[1], [0], [0], [1], [0, 0, 1, 1], [], []>} : vector<64x128xbf16>, vector<128x128xbf16>, vector<64x128xf32> -> vector<64x128xf32>
    %20 = arith.addf %14, %19 : vector<64x128xf32>
    %21 = vector.extract_strided_slice %1 {offsets = [1, 0, 0], sizes = [8, 8, 128], strides = [1, 1, 1]} : vector<10x10x128xbf16> to vector<8x8x128xbf16>
    %22 = vector.shape_cast %21 : vector<8x8x128xbf16> to vector<64x128xbf16>
    %c3 = arith.constant 3 : index
    %c0_13 = arith.constant 0 : index
    %c0_14 = arith.constant 0 : index
    %23 = vector.load %arg2[%c3, %c0_13, %c0_14] : memref<9x128x128xbf16, #tpu.memory_space<vmem>>, vector<1x128x128xbf16>
    %24 = vector.shape_cast %23 : vector<1x128x128xbf16> to vector<128x128xbf16>
    %cst_15 = arith.constant dense<0.000000e+00> : vector<64x128xf32>
    %25 = tpu.matmul %22, %24, %cst_15 {dimension_numbers = #tpu.dot_dimension_numbers<[1], [0], [0], [1], [0, 0, 1, 1], [], []>} : vector<64x128xbf16>, vector<128x128xbf16>, vector<64x128xf32> -> vector<64x128xf32>
    %26 = arith.addf %20, %25 : vector<64x128xf32>
    %27 = vector.extract_strided_slice %1 {offsets = [1, 1, 0], sizes = [8, 8, 128], strides = [1, 1, 1]} : vector<10x10x128xbf16> to vector<8x8x128xbf16>
    %28 = vector.shape_cast %27 : vector<8x8x128xbf16> to vector<64x128xbf16>
    %c4 = arith.constant 4 : index
    %c0_16 = arith.constant 0 : index
    %c0_17 = arith.constant 0 : index
    %29 = vector.load %arg2[%c4, %c0_16, %c0_17] : memref<9x128x128xbf16, #tpu.memory_space<vmem>>, vector<1x128x128xbf16>
    %30 = vector.shape_cast %29 : vector<1x128x128xbf16> to vector<128x128xbf16>
    %cst_18 = arith.constant dense<0.000000e+00> : vector<64x128xf32>
    %31 = tpu.matmul %28, %30, %cst_18 {dimension_numbers = #tpu.dot_dimension_numbers<[1], [0], [0], [1], [0, 0, 1, 1], [], []>} : vector<64x128xbf16>, vector<128x128xbf16>, vector<64x128xf32> -> vector<64x128xf32>
    %32 = arith.addf %26, %31 : vector<64x128xf32>
    %33 = vector.extract_strided_slice %1 {offsets = [1, 2, 0], sizes = [8, 8, 128], strides = [1, 1, 1]} : vector<10x10x128xbf16> to vector<8x8x128xbf16>
    %34 = vector.shape_cast %33 : vector<8x8x128xbf16> to vector<64x128xbf16>
    %c5 = arith.constant 5 : index
    %c0_19 = arith.constant 0 : index
    %c0_20 = arith.constant 0 : index
    %35 = vector.load %arg2[%c5, %c0_19, %c0_20] : memref<9x128x128xbf16, #tpu.memory_space<vmem>>, vector<1x128x128xbf16>
    %36 = vector.shape_cast %35 : vector<1x128x128xbf16> to vector<128x128xbf16>
    %cst_21 = arith.constant dense<0.000000e+00> : vector<64x128xf32>
    %37 = tpu.matmul %34, %36, %cst_21 {dimension_numbers = #tpu.dot_dimension_numbers<[1], [0], [0], [1], [0, 0, 1, 1], [], []>} : vector<64x128xbf16>, vector<128x128xbf16>, vector<64x128xf32> -> vector<64x128xf32>
    %38 = arith.addf %32, %37 : vector<64x128xf32>
    %39 = vector.extract_strided_slice %1 {offsets = [2, 0, 0], sizes = [8, 8, 128], strides = [1, 1, 1]} : vector<10x10x128xbf16> to vector<8x8x128xbf16>
    %40 = vector.shape_cast %39 : vector<8x8x128xbf16> to vector<64x128xbf16>
    %c6 = arith.constant 6 : index
    %c0_22 = arith.constant 0 : index
    %c0_23 = arith.constant 0 : index
    %41 = vector.load %arg2[%c6, %c0_22, %c0_23] : memref<9x128x128xbf16, #tpu.memory_space<vmem>>, vector<1x128x128xbf16>
    %42 = vector.shape_cast %41 : vector<1x128x128xbf16> to vector<128x128xbf16>
    %cst_24 = arith.constant dense<0.000000e+00> : vector<64x128xf32>
    %43 = tpu.matmul %40, %42, %cst_24 {dimension_numbers = #tpu.dot_dimension_numbers<[1], [0], [0], [1], [0, 0, 1, 1], [], []>} : vector<64x128xbf16>, vector<128x128xbf16>, vector<64x128xf32> -> vector<64x128xf32>
    %44 = arith.addf %38, %43 : vector<64x128xf32>
    %45 = vector.extract_strided_slice %1 {offsets = [2, 1, 0], sizes = [8, 8, 128], strides = [1, 1, 1]} : vector<10x10x128xbf16> to vector<8x8x128xbf16>
    %46 = vector.shape_cast %45 : vector<8x8x128xbf16> to vector<64x128xbf16>
    %c7 = arith.constant 7 : index
    %c0_25 = arith.constant 0 : index
    %c0_26 = arith.constant 0 : index
    %47 = vector.load %arg2[%c7, %c0_25, %c0_26] : memref<9x128x128xbf16, #tpu.memory_space<vmem>>, vector<1x128x128xbf16>
    %48 = vector.shape_cast %47 : vector<1x128x128xbf16> to vector<128x128xbf16>
    %cst_27 = arith.constant dense<0.000000e+00> : vector<64x128xf32>
    %49 = tpu.matmul %46, %48, %cst_27 {dimension_numbers = #tpu.dot_dimension_numbers<[1], [0], [0], [1], [0, 0, 1, 1], [], []>} : vector<64x128xbf16>, vector<128x128xbf16>, vector<64x128xf32> -> vector<64x128xf32>
    %50 = arith.addf %44, %49 : vector<64x128xf32>
    %51 = vector.extract_strided_slice %1 {offsets = [2, 2, 0], sizes = [8, 8, 128], strides = [1, 1, 1]} : vector<10x10x128xbf16> to vector<8x8x128xbf16>
    %52 = vector.shape_cast %51 : vector<8x8x128xbf16> to vector<64x128xbf16>
    %c8 = arith.constant 8 : index
    %c0_28 = arith.constant 0 : index
    %c0_29 = arith.constant 0 : index
    %53 = vector.load %arg2[%c8, %c0_28, %c0_29] : memref<9x128x128xbf16, #tpu.memory_space<vmem>>, vector<1x128x128xbf16>
    %54 = vector.shape_cast %53 : vector<1x128x128xbf16> to vector<128x128xbf16>
    %cst_30 = arith.constant dense<0.000000e+00> : vector<64x128xf32>
    %55 = tpu.matmul %52, %54, %cst_30 {dimension_numbers = #tpu.dot_dimension_numbers<[1], [0], [0], [1], [0, 0, 1, 1], [], []>} : vector<64x128xbf16>, vector<128x128xbf16>, vector<64x128xf32> -> vector<64x128xf32>
    %56 = arith.addf %50, %55 : vector<64x128xf32>
    %c0_31 = arith.constant 0 : index
    %c0_32 = arith.constant 0 : index
    %57 = vector.load %arg3[%c0_31, %c0_32] : memref<1x128xf32, #tpu.memory_space<vmem>>, vector<1x128xf32>
    %58 = vector.broadcast %57 : vector<1x128xf32> to vector<64x128xf32>
    %59 = arith.addf %56, %58 : vector<64x128xf32>
    %cst_33 = arith.constant 0.000000e+00 : f32
    %60 = vector.broadcast %cst_33 : f32 to vector<64x128xf32>
    %61 = arith.maximumf %59, %60 : vector<64x128xf32>
    %62 = vector.shape_cast %61 : vector<64x128xf32> to vector<1x8x8x128xf32>
    %63 = arith.truncf %62 : vector<1x8x8x128xf32> to vector<1x8x8x128xbf16>
    %c0_34 = arith.constant 0 : index
    %c0_35 = arith.constant 0 : index
    %c0_36 = arith.constant 0 : index
    %c0_37 = arith.constant 0 : index
    %64 = vector.load %arg4[%c0_34, %c0_35, %c0_36, %c0_37] : memref<1x8x8x128xbf16, #tpu.memory_space<vmem>>, vector<1x8x8x128xbf16>
    tpu.vector_store %arg4[%c0_34, %c0_35, %c0_36, %c0_37], %63 {strides = array<i32>} : memref<1x8x8x128xbf16, #tpu.memory_space<vmem>>, vector<1x8x8x128xbf16>,
    return
  }
  func.func @transform_0(%arg0: i32) -> (i32, i32, i32, i32) {
    %c0_i32 = arith.constant 0 : i32
    %c0_i32_0 = arith.constant 0 : i32
    %c0_i32_1 = arith.constant 0 : i32
    %c0_i32_2 = arith.constant 0 : i32
    return %arg0, %c0_i32, %c0_i32_0, %c0_i32_1 : i32, i32, i32, i32
  }
  func.func @transform_1(%arg0: i32) -> (i32, i32, i32) {
    %c0_i32 = arith.constant 0 : i32
    %c0_i32_0 = arith.constant 0 : i32
    %c0_i32_1 = arith.constant 0 : i32
    %c0_i32_2 = arith.constant 0 : i32
    return %c0_i32, %c0_i32_0, %c0_i32_1 : i32, i32, i32
  }
  func.func @transform_2(%arg0: i32) -> (i32, i32) {
    %c0_i32 = arith.constant 0 : i32
    %c0_i32_0 = arith.constant 0 : i32
    %c0_i32_1 = arith.constant 0 : i32
    return %c0_i32, %c0_i32_0 : i32, i32
  }
  func.func @transform_3(%arg0: i32) -> (i32, i32, i32, i32) {
    %c0_i32 = arith.constant 0 : i32
    %c0_i32_0 = arith.constant 0 : i32
    %c0_i32_1 = arith.constant 0 : i32
    %c0_i32_2 = arith.constant 0 : i32
    return %arg0, %c0_i32, %c0_i32_0, %c0_i32_1 : i32, i32, i32, i32
  }
}

module attributes {stable_mosaic.version = 11 : i64} {
  func.func @_mm_down_res_kernel(%arg0: i32, %arg1: memref<64x128xbf16, #tpu.memory_space<vmem>>, %arg2: memref<128x256xbf16, #tpu.memory_space<vmem>>, %arg3: memref<64x128xbf16, #tpu.memory_space<vmem>>, %arg4: memref<128x256xbf16, #tpu.memory_space<vmem>>, %arg5: memref<1x256xf32, #tpu.memory_space<vmem>>, %arg6: memref<64x256xf32, #tpu.memory_space<vmem>>) attributes {dimension_semantics = [#tpu.dimension_semantics<parallel>], iteration_bounds = array<i64: 2>, scalar_prefetch = 0 : i64, scratch_operands = 0 : i64, tpu.core_type = #tpu.core_type<tc>, window_params = [{transform_indices = @transform_0, window_bounds = array<i64: 64, 128>}, {pipeline_mode = #tpu.pipeline_mode<synchronous>, transform_indices = @transform_1, window_bounds = array<i64: 128, 256>}, {transform_indices = @transform_2, window_bounds = array<i64: 64, 128>}, {pipeline_mode = #tpu.pipeline_mode<synchronous>, transform_indices = @transform_3, window_bounds = array<i64: 128, 256>}, {pipeline_mode = #tpu.pipeline_mode<synchronous>, transform_indices = @transform_4, window_bounds = array<i64: 1, 256>}, {transform_indices = @transform_5, window_bounds = array<i64: 64, 256>}]} {
    %c0 = arith.constant 0 : index
    %c0_0 = arith.constant 0 : index
    %0 = vector.load %arg1[%c0, %c0_0] : memref<64x128xbf16, #tpu.memory_space<vmem>>, vector<64x128xbf16>
    %c0_1 = arith.constant 0 : index
    %c0_2 = arith.constant 0 : index
    %1 = vector.load %arg2[%c0_1, %c0_2] : memref<128x256xbf16, #tpu.memory_space<vmem>>, vector<128x256xbf16>
    %cst = arith.constant dense<0.000000e+00> : vector<64x256xf32>
    %2 = tpu.matmul %0, %1, %cst {dimension_numbers = #tpu.dot_dimension_numbers<[1], [0], [0], [1], [0, 0, 1, 1], [], []>} : vector<64x128xbf16>, vector<128x256xbf16>, vector<64x256xf32> -> vector<64x256xf32>
    %c0_3 = arith.constant 0 : index
    %c0_4 = arith.constant 0 : index
    %3 = vector.load %arg3[%c0_3, %c0_4] : memref<64x128xbf16, #tpu.memory_space<vmem>>, vector<64x128xbf16>
    %c0_5 = arith.constant 0 : index
    %c0_6 = arith.constant 0 : index
    %4 = vector.load %arg4[%c0_5, %c0_6] : memref<128x256xbf16, #tpu.memory_space<vmem>>, vector<128x256xbf16>
    %cst_7 = arith.constant dense<0.000000e+00> : vector<64x256xf32>
    %5 = tpu.matmul %3, %4, %cst_7 {dimension_numbers = #tpu.dot_dimension_numbers<[1], [0], [0], [1], [0, 0, 1, 1], [], []>} : vector<64x128xbf16>, vector<128x256xbf16>, vector<64x256xf32> -> vector<64x256xf32>
    %6 = arith.addf %2, %5 : vector<64x256xf32>
    %c0_8 = arith.constant 0 : index
    %c0_9 = arith.constant 0 : index
    %7 = vector.load %arg5[%c0_8, %c0_9] : memref<1x256xf32, #tpu.memory_space<vmem>>, vector<1x256xf32>
    %8 = vector.broadcast %7 : vector<1x256xf32> to vector<64x256xf32>
    %9 = arith.addf %6, %8 : vector<64x256xf32>
    %cst_10 = arith.constant 0.000000e+00 : f32
    %10 = vector.broadcast %cst_10 : f32 to vector<64x256xf32>
    %11 = arith.maximumf %9, %10 : vector<64x256xf32>
    %c0_11 = arith.constant 0 : index
    %c0_12 = arith.constant 0 : index
    %12 = vector.load %arg6[%c0_11, %c0_12] : memref<64x256xf32, #tpu.memory_space<vmem>>, vector<64x256xf32>
    tpu.vector_store %arg6[%c0_11, %c0_12], %11 {strides = array<i32>} : memref<64x256xf32, #tpu.memory_space<vmem>>, vector<64x256xf32>,
    return
  }
  func.func @transform_0(%arg0: i32) -> (i32, i32) {
    %c0_i32 = arith.constant 0 : i32
    %c0_i32_0 = arith.constant 0 : i32
    return %arg0, %c0_i32 : i32, i32
  }
  func.func @transform_1(%arg0: i32) -> (i32, i32) {
    %c0_i32 = arith.constant 0 : i32
    %c0_i32_0 = arith.constant 0 : i32
    %c0_i32_1 = arith.constant 0 : i32
    return %c0_i32, %c0_i32_0 : i32, i32
  }
  func.func @transform_2(%arg0: i32) -> (i32, i32) {
    %c0_i32 = arith.constant 0 : i32
    %c0_i32_0 = arith.constant 0 : i32
    return %arg0, %c0_i32 : i32, i32
  }
  func.func @transform_3(%arg0: i32) -> (i32, i32) {
    %c0_i32 = arith.constant 0 : i32
    %c0_i32_0 = arith.constant 0 : i32
    %c0_i32_1 = arith.constant 0 : i32
    return %c0_i32, %c0_i32_0 : i32, i32
  }
  func.func @transform_4(%arg0: i32) -> (i32, i32) {
    %c0_i32 = arith.constant 0 : i32
    %c0_i32_0 = arith.constant 0 : i32
    %c0_i32_1 = arith.constant 0 : i32
    return %c0_i32, %c0_i32_0 : i32, i32
  }
  func.func @transform_5(%arg0: i32) -> (i32, i32) {
    %c0_i32 = arith.constant 0 : i32
    %c0_i32_0 = arith.constant 0 : i32
    return %arg0, %c0_i32 : i32, i32
  }
}

module attributes {stable_mosaic.version = 11 : i64} {
  func.func @_mm_bias_kernel(%arg0: i32, %arg1: memref<64x256xbf16, #tpu.memory_space<vmem>>, %arg2: memref<256x128xbf16, #tpu.memory_space<vmem>>, %arg3: memref<1x128xf32, #tpu.memory_space<vmem>>, %arg4: memref<64x128xbf16, #tpu.memory_space<vmem>>) attributes {dimension_semantics = [#tpu.dimension_semantics<parallel>], iteration_bounds = array<i64: 2>, scalar_prefetch = 0 : i64, scratch_operands = 0 : i64, tpu.core_type = #tpu.core_type<tc>, window_params = [{transform_indices = @transform_0, window_bounds = array<i64: 64, 256>}, {pipeline_mode = #tpu.pipeline_mode<synchronous>, transform_indices = @transform_1, window_bounds = array<i64: 256, 128>}, {pipeline_mode = #tpu.pipeline_mode<synchronous>, transform_indices = @transform_2, window_bounds = array<i64: 1, 128>}, {transform_indices = @transform_3, window_bounds = array<i64: 64, 128>}]} {
    %c0 = arith.constant 0 : index
    %c0_0 = arith.constant 0 : index
    %0 = vector.load %arg1[%c0, %c0_0] : memref<64x256xbf16, #tpu.memory_space<vmem>>, vector<64x256xbf16>
    %c0_1 = arith.constant 0 : index
    %c0_2 = arith.constant 0 : index
    %1 = vector.load %arg2[%c0_1, %c0_2] : memref<256x128xbf16, #tpu.memory_space<vmem>>, vector<256x128xbf16>
    %cst = arith.constant dense<0.000000e+00> : vector<64x128xf32>
    %2 = tpu.matmul %0, %1, %cst {dimension_numbers = #tpu.dot_dimension_numbers<[1], [0], [0], [1], [0, 0, 1, 1], [], []>} : vector<64x256xbf16>, vector<256x128xbf16>, vector<64x128xf32> -> vector<64x128xf32>
    %c0_3 = arith.constant 0 : index
    %c0_4 = arith.constant 0 : index
    %3 = vector.load %arg3[%c0_3, %c0_4] : memref<1x128xf32, #tpu.memory_space<vmem>>, vector<1x128xf32>
    %4 = vector.broadcast %3 : vector<1x128xf32> to vector<64x128xf32>
    %5 = arith.addf %2, %4 : vector<64x128xf32>
    %cst_5 = arith.constant 0.000000e+00 : f32
    %6 = vector.broadcast %cst_5 : f32 to vector<64x128xf32>
    %7 = arith.maximumf %5, %6 : vector<64x128xf32>
    %8 = arith.truncf %7 : vector<64x128xf32> to vector<64x128xbf16>
    %c0_6 = arith.constant 0 : index
    %c0_7 = arith.constant 0 : index
    %9 = vector.load %arg4[%c0_6, %c0_7] : memref<64x128xbf16, #tpu.memory_space<vmem>>, vector<64x128xbf16>
    tpu.vector_store %arg4[%c0_6, %c0_7], %8 {strides = array<i32>} : memref<64x128xbf16, #tpu.memory_space<vmem>>, vector<64x128xbf16>,
    return
  }
  func.func @transform_0(%arg0: i32) -> (i32, i32) {
    %c0_i32 = arith.constant 0 : i32
    %c0_i32_0 = arith.constant 0 : i32
    return %arg0, %c0_i32 : i32, i32
  }
  func.func @transform_1(%arg0: i32) -> (i32, i32) {
    %c0_i32 = arith.constant 0 : i32
    %c0_i32_0 = arith.constant 0 : i32
    %c0_i32_1 = arith.constant 0 : i32
    return %c0_i32, %c0_i32_0 : i32, i32
  }
  func.func @transform_2(%arg0: i32) -> (i32, i32) {
    %c0_i32 = arith.constant 0 : i32
    %c0_i32_0 = arith.constant 0 : i32
    %c0_i32_1 = arith.constant 0 : i32
    return %c0_i32, %c0_i32_0 : i32, i32
  }
  func.func @transform_3(%arg0: i32) -> (i32, i32) {
    %c0_i32 = arith.constant 0 : i32
    %c0_i32_0 = arith.constant 0 : i32
    return %arg0, %c0_i32 : i32, i32
  }
}

module attributes {stable_mosaic.version = 11 : i64} {
  func.func @_mm_identity_res_kernel(%arg0: i32, %arg1: memref<64x128xbf16, #tpu.memory_space<vmem>>, %arg2: memref<128x256xbf16, #tpu.memory_space<vmem>>, %arg3: memref<1x256xf32, #tpu.memory_space<vmem>>, %arg4: memref<64x256xf32, #tpu.memory_space<vmem>>, %arg5: memref<64x256xf32, #tpu.memory_space<vmem>>) attributes {dimension_semantics = [#tpu.dimension_semantics<parallel>], iteration_bounds = array<i64: 2>, scalar_prefetch = 0 : i64, scratch_operands = 0 : i64, tpu.core_type = #tpu.core_type<tc>, window_params = [{transform_indices = @transform_0, window_bounds = array<i64: 64, 128>}, {pipeline_mode = #tpu.pipeline_mode<synchronous>, transform_indices = @transform_1, window_bounds = array<i64: 128, 256>}, {pipeline_mode = #tpu.pipeline_mode<synchronous>, transform_indices = @transform_2, window_bounds = array<i64: 1, 256>}, {transform_indices = @transform_3, window_bounds = array<i64: 64, 256>}, {transform_indices = @transform_4, window_bounds = array<i64: 64, 256>}]} {
    %c0 = arith.constant 0 : index
    %c0_0 = arith.constant 0 : index
    %0 = vector.load %arg1[%c0, %c0_0] : memref<64x128xbf16, #tpu.memory_space<vmem>>, vector<64x128xbf16>
    %c0_1 = arith.constant 0 : index
    %c0_2 = arith.constant 0 : index
    %1 = vector.load %arg2[%c0_1, %c0_2] : memref<128x256xbf16, #tpu.memory_space<vmem>>, vector<128x256xbf16>
    %cst = arith.constant dense<0.000000e+00> : vector<64x256xf32>
    %2 = tpu.matmul %0, %1, %cst {dimension_numbers = #tpu.dot_dimension_numbers<[1], [0], [0], [1], [0, 0, 1, 1], [], []>} : vector<64x128xbf16>, vector<128x256xbf16>, vector<64x256xf32> -> vector<64x256xf32>
    %c0_3 = arith.constant 0 : index
    %c0_4 = arith.constant 0 : index
    %3 = vector.load %arg3[%c0_3, %c0_4] : memref<1x256xf32, #tpu.memory_space<vmem>>, vector<1x256xf32>
    %4 = vector.broadcast %3 : vector<1x256xf32> to vector<64x256xf32>
    %5 = arith.addf %2, %4 : vector<64x256xf32>
    %c0_5 = arith.constant 0 : index
    %c0_6 = arith.constant 0 : index
    %6 = vector.load %arg4[%c0_5, %c0_6] : memref<64x256xf32, #tpu.memory_space<vmem>>, vector<64x256xf32>
    %7 = arith.addf %5, %6 : vector<64x256xf32>
    %cst_7 = arith.constant 0.000000e+00 : f32
    %8 = vector.broadcast %cst_7 : f32 to vector<64x256xf32>
    %9 = arith.maximumf %7, %8 : vector<64x256xf32>
    %c0_8 = arith.constant 0 : index
    %c0_9 = arith.constant 0 : index
    %10 = vector.load %arg5[%c0_8, %c0_9] : memref<64x256xf32, #tpu.memory_space<vmem>>, vector<64x256xf32>
    tpu.vector_store %arg5[%c0_8, %c0_9], %9 {strides = array<i32>} : memref<64x256xf32, #tpu.memory_space<vmem>>, vector<64x256xf32>,
    return
  }
  func.func @transform_0(%arg0: i32) -> (i32, i32) {
    %c0_i32 = arith.constant 0 : i32
    %c0_i32_0 = arith.constant 0 : i32
    return %arg0, %c0_i32 : i32, i32
  }
  func.func @transform_1(%arg0: i32) -> (i32, i32) {
    %c0_i32 = arith.constant 0 : i32
    %c0_i32_0 = arith.constant 0 : i32
    %c0_i32_1 = arith.constant 0 : i32
    return %c0_i32, %c0_i32_0 : i32, i32
  }
  func.func @transform_2(%arg0: i32) -> (i32, i32) {
    %c0_i32 = arith.constant 0 : i32
    %c0_i32_0 = arith.constant 0 : i32
    %c0_i32_1 = arith.constant 0 : i32
    return %c0_i32, %c0_i32_0 : i32, i32
  }
  func.func @transform_3(%arg0: i32) -> (i32, i32) {
    %c0_i32 = arith.constant 0 : i32
    %c0_i32_0 = arith.constant 0 : i32
    return %arg0, %c0_i32 : i32, i32
  }
  func.func @transform_4(%arg0: i32) -> (i32, i32) {
    %c0_i32 = arith.constant 0 : i32
    %c0_i32_0 = arith.constant 0 : i32
    return %arg0, %c0_i32 : i32, i32
  }
}

</mosaic_0001>

<llo_original>
// kernel: fwd.6
$region0: #{fwd.6}
  #allocation0 [shape = 'u32[]', space=smem, size = 0x4, offset = 0x4, fixed_abs, tag = 'smem constant byte address 0x4 - core index']
  #allocation1 [shape = 'u32[72,128]{1,0:T(1,128)}', space=vmem, size = 0x9000, scoped, tag = 'internal scratch']
  %s0 = inlined_call_operand.vmem [shape: bf16[128,128], index: 0, kind: input, shape index: {}]
  %s1 = inlined_call_operand.hbm [shape: bf16[128,128], index: 1, kind: input, shape index: {}]
  %s2 = inlined_call_operand.hbm [shape: f32[1,128], index: 2, kind: input, shape index: {}]
  %s3 = inlined_call_operand.vmem [shape: bf16[128,128], index: 3, kind: output, shape index: {}]
  %s4 = sld [smem:[#allocation0]]
  $region53: #{fwd.6} parent=0
    _
  %s6 = ssub.s32 1, %s4
  %s7 = scalar_select 0, %s6, %s4
  $region1: #{fwd.6} parent=0
    #allocation2 [shape = 'u8[32768]{0}', space=vmem, size = 0x8000, scoped, tag = 'input window, operand 1, single buffered']
    #allocation3 [shape = 's32[2]{0}', space=sflag, size = 0x8, scoped, tag = 'scoped memory for fwd.6']
    #allocation4 [shape = 'u8[512]{0}', space=vmem, size = 0x400, scoped, tag = 'input window, operand 2, single buffered']
    #allocation5 [shape = 's32[1]{0}', space=sflag, size = 0x4, scoped, tag = 'scoped memory for fwd.6']
    %8 = vsyncpa [#allocation3], 0
    %9 = vsyncpa [#allocation5], 0
    loop: start=0, step=1, limit=4
    $region2: #{fwd.6} parent=1 // loop_pre_header
      _
    $region3: #{fwd.6} parent=1 // loop_header
      %s11 = sphi 0, %s15
      %p12 = scmp.ge.s32.totalorder %s11, 4
      %s21 = sphi 0, %s23
      %s24 = sphi 0, %s21
      %s25 = sphi 0, %s24
      %s41 = sphi 0, %s25
      %s45 = sphi 0, %s45
      %s47 = sphi 0, %s45
      %s48 = sphi 0, %s47
      %s62 = sphi 0, %s48
      %s66 = sphi 0, %s66
      %s68 = sphi 0, %s66
      %s69 = sphi 0, %s68
      %s83 = sphi 0, %s69
      %s89 = sphi 0, %s91
      %s92 = sphi 0, %s89
      %s93 = sphi 0, %s92
      %s109 = sphi 0, %s93
    $region4: #{fwd.6} parent=1 // loop_header_branch
      %14 = sbr.rel (%p12) target = $region8
    $region5: #{fwd.6} parent=1 // loop_body
      %s16 = ssub.s32 %s11, 1
      %s17 = ssub.s32 %s11, 2
      %s18 = sadd.s32 %s11, 1
      %s19 = ssub.s32 %s11, %s18
      %p20 = scmp.eq.s32.totalorder %s19, 0
      %s22 = sadd.s32 %s21, 1
      %s23 = scalar_select %p20, %s21, %s22
      %p26 = pneg %p20
      %p27 = scmp.eq.s32.totalorder %s11, 1
      %p28 = por %p26, %p27
      %p29 = scmp.ne.s32.totalorder %s21, %s24
      %p30 = scmp.eq.s32.totalorder %s11, 0
      %p31 = por %p29, %p30
      %p32 = scmp.ne.s32.totalorder %s21, %s24
      %p33 = scmp.eq.s32.totalorder %s16, 1
      %p34 = por %p32, %p33
      %p35 = scmp.ne.s32.totalorder %s24, %s25
      %p36 = scmp.eq.s32.totalorder %s16, 0
      %p37 = por %p35, %p36
      %p38 = scmp.ne.s32.totalorder %s24, %s25
      %p39 = scmp.eq.s32.totalorder %s17, 1
      %p40 = por %p38, %p39
      %p42 = scmp.ne.s32.totalorder %s25, %s41
      %p43 = scmp.eq.s32.totalorder %s17, 0
      %p44 = por %p42, %p43
      %s46 = sadd.s32 %s45, 1
      %p49 = scmp.eq.s32.totalorder %s11, 1
      %p50 = scmp.ne.s32.totalorder %s45, %s47
      %p51 = scmp.eq.s32.totalorder %s11, 0
      %p52 = por %p50, %p51
      %p53 = scmp.ne.s32.totalorder %s45, %s47
      %p54 = scmp.eq.s32.totalorder %s16, 1
      %p55 = por %p53, %p54
      %p56 = scmp.ne.s32.totalorder %s47, %s48
      %p57 = scmp.eq.s32.totalorder %s16, 0
      %p58 = por %p56, %p57
      %p59 = scmp.ne.s32.totalorder %s47, %s48
      %p60 = scmp.eq.s32.totalorder %s17, 1
      %p61 = por %p59, %p60
      %p63 = scmp.ne.s32.totalorder %s48, %s62
      %p64 = scmp.eq.s32.totalorder %s17, 0
      %p65 = por %p63, %p64
      %s67 = sadd.s32 %s66, 1
      %p70 = scmp.eq.s32.totalorder %s11, 1
      %p71 = scmp.ne.s32.totalorder %s66, %s68
      %p72 = scmp.eq.s32.totalorder %s11, 0
      %p73 = por %p71, %p72
      %p74 = scmp.ne.s32.totalorder %s66, %s68
      %p75 = scmp.eq.s32.totalorder %s16, 1
      %p76 = por %p74, %p75
      %p77 = scmp.ne.s32.totalorder %s68, %s69
      %p78 = scmp.eq.s32.totalorder %s16, 0
      %p79 = por %p77, %p78
      %p80 = scmp.ne.s32.totalorder %s68, %s69
      %p81 = scmp.eq.s32.totalorder %s17, 1
      %p82 = por %p80, %p81
      %p84 = scmp.ne.s32.totalorder %s69, %s83
      %p85 = scmp.eq.s32.totalorder %s17, 0
      %p86 = por %p84, %p85
      %s87 = ssub.s32 %s11, %s18
      %p88 = scmp.eq.s32.totalorder %s87, 0
      %s90 = sadd.s32 %s89, 1
      %s91 = scalar_select %p88, %s89, %s90
      %p94 = pneg %p88
      %p95 = scmp.eq.s32.totalorder %s11, 1
      %p96 = por %p94, %p95
      %p97 = scmp.ne.s32.totalorder %s89, %s92
      %p98 = scmp.eq.s32.totalorder %s11, 0
      %p99 = por %p97, %p98
      %p100 = scmp.ne.s32.totalorder %s89, %s92
      %p101 = scmp.eq.s32.totalorder %s16, 1
      %p102 = por %p100, %p101
      %p103 = scmp.ne.s32.totalorder %s92, %s93
      %p104 = scmp.eq.s32.totalorder %s16, 0
      %p105 = por %p103, %p104
      %p106 = scmp.ne.s32.totalorder %s92, %s93
      %p107 = scmp.eq.s32.totalorder %s17, 1
      %p108 = por %p106, %p107
      %p110 = scmp.ne.s32.totalorder %s93, %s109
      %p111 = scmp.eq.s32.totalorder %s17, 0
      %p112 = por %p110, %p111
      %p113 = scmp.le.s32.totalorder 1, %s11
      %p114 = scmp.lt.s32.totalorder %s11, 3
      %p115 = pnand %p113, %p114
      %p116 = pneg %p115
      // Predicated region
      $region9: #{fwd.6} parent=5 // pred_check
        _
      $region10: #{fwd.6} parent=5 // pred_check_branch
        %118 = sbr.rel (%p115) target = $region12
      $region11: #{fwd.6} parent=5 // pred_region
        %s119 = ssub.s32 %s11, 1
        // Predicated region
        $region13: #{fwd.6} parent=11 // pred_check
          %p120 = pneg %p58
        $region14: #{fwd.6} parent=11 // pred_check_branch
          %122 = sbr.rel (%p120) target = $region16
        $region15: #{fwd.6} parent=11 // pred_region
          %124 = vsyncadd [#allocation3], 0
          %s125 = sshll.u32 %s1, 4
          %s126 = int_to_ptr.hbm [resolvable:$true] %s125
          %s127 = sshll.u32 [#allocation2], 4
          %s128 = int_to_ptr.vmem [resolvable:$true] %s127
          %133 = dma.hbm_to_vmem [thread:$0]  %s126, 1024, %s128, [#allocation3], 64, 64, 4
        $region16: #{fwd.6} parent=11 // pred_fallthru
          _
        // Predicated region
        $region17: #{fwd.6} parent=11 // pred_check
          %p134 = pneg %p79
        $region18: #{fwd.6} parent=11 // pred_check_branch
          %136 = sbr.rel (%p134) target = $region20
        $region19: #{fwd.6} parent=11 // pred_region
          %138 = vsyncadd [#allocation5], 0
          %s140 = sshll.u32 %s2, 4
          %s141 = int_to_ptr.hbm [resolvable:$true] %s140
          %s142 = sshll.u32 [#allocation4], 4
          %s143 = int_to_ptr.vmem [resolvable:$true] %s142
          %145 = dma.hbm_to_vmem [thread:$0]  %s141, 16, %s143, [#allocation5]
        $region20: #{fwd.6} parent=11 // pred_fallthru
          _
      $region12: #{fwd.6} parent=5 // pred_fallthru
        _
      %p146 = scmp.lt.s32.totalorder %s11, 2
      // Predicated region
      $region21: #{fwd.6} parent=5 // pred_check
        %p147 = pneg %p146
      $region22: #{fwd.6} parent=5 // pred_check_branch
        %149 = sbr.rel (%p147) target = $region24
      $region23: #{fwd.6} parent=5 // pred_region
        // Predicated region
        $region25: #{fwd.6} parent=23 // pred_check
          %p150 = pneg %p31
        $region26: #{fwd.6} parent=23 // pred_check_branch
          %152 = sbr.rel (%p150) target = $region28
        $region27: #{fwd.6} parent=23 // pred_region
          %s153 = smul.u32 8, %s11
          %p154 = scmp.lt.s32.totalorder %s153, 15
          %s155 = scalar_select %p154, %s153, 15
          %s156 = smul.addr %s155, 4
          %s157 = scalar_lea.vmem %s0, %s156
          %s158 = smul.u32 8, %s11
        $region28: #{fwd.6} parent=23 // pred_fallthru
          _
      $region24: #{fwd.6} parent=5 // pred_fallthru
        _
      %p159 = scmp.le.s32.totalorder 1, %s11
      %p160 = scmp.lt.s32.totalorder %s11, 3
      %p161 = pnand %p159, %p160
      %p162 = pneg %p161
      // Predicated region
      $region29: #{fwd.6} parent=5 // pred_check
        _
      $region30: #{fwd.6} parent=5 // pred_check_branch
        %164 = sbr.rel (%p161) target = $region32
      $region31: #{fwd.6} parent=5 // pred_region
        %s165 = ssub.s32 %s11, 1
        // Predicated region
        $region33: #{fwd.6} parent=31 // pred_check
          %p166 = pneg %p58
        $region34: #{fwd.6} parent=31 // pred_check_branch
          %168 = sbr.rel (%p166) target = $region36
        $region35: #{fwd.6} parent=31 // pred_region
          %170 = dma.done [#allocation3], 1024
        $region36: #{fwd.6} parent=31 // pred_fallthru
          _
        // Predicated region
        $region37: #{fwd.6} parent=31 // pred_check
          %p171 = pneg %p79
        $region38: #{fwd.6} parent=31 // pred_check_branch
          %173 = sbr.rel (%p171) target = $region40
        $region39: #{fwd.6} parent=31 // pred_region
          %175 = dma.done [#allocation5], 16
        $region40: #{fwd.6} parent=31 // pred_fallthru
          _
        %s176 = smul.u32 8, %s16
        %p177 = scmp.lt.s32.totalorder %s176, 15
        %s178 = scalar_select %p177, %s176, 15
        %s179 = smul.addr %s178, 4
        %s180 = scalar_lea.vmem %s0, %s179
        %p181 = pneg %p37
        %p182 = pneg %p34
        %p183 = pneg %p58
        %p184 = pneg %p55
        %p185 = pneg %p79
        %p186 = pneg %p76
        %p187 = pneg %p105
        %p188 = pneg %p102
        %s189 = smul.u32 8, %s16
        %p190 = scmp.lt.s32.totalorder %s189, 15
        %s191 = scalar_select %p190, %s189, 15
        %s192 = smul.addr %s191, 4
        %s193 = scalar_lea.vmem %s3, %s192
        %s194 = smul.u32 8, %s16
        %p195 = scmp.lt.s32.totalorder %s194, 15
        %s196 = scalar_select %p195, %s194, 15
        %s197 = smul.addr %s196, 4
        %s198 = scalar_lea.vmem %s0, %s197
        %s199 = smul.u32 8, %s16
        %s200 = smul.u32 8, %s16
        %p201 = scmp.lt.s32.totalorder %s200, 15
        %s202 = scalar_select %p201, %s200, 15
        %s203 = smul.addr %s202, 4
        %s204 = scalar_lea.vmem %s3, %s203
        %s205 = smul.u32 8, %s16
        %v206 = vld [vmem:[%s198] sm:$0xf]
        %v207 = vld [vmem:[%s198 + $0x4] sm:$0xf]
        %v208 = vld [vmem:[%s198 + $0x8] sm:$0xf]
        %v209 = vld [vmem:[%s198 + $0xc] sm:$0xf]
        %v210 = vld [vmem:[%s198 + $0x10] sm:$0xf]
        %v211 = vld [vmem:[%s198 + $0x14] sm:$0xf]
        %v212 = vld [vmem:[%s198 + $0x18] sm:$0xf]
        %v213 = vld [vmem:[%s198 + $0x1c] sm:$0xf]
        %v214 = vld [vmem:[#allocation2] sm:$0xf]
        %v215 = vld [vmem:[#allocation2 + $0x4] sm:$0xf]
        %v216 = vld [vmem:[#allocation2 + $0x8] sm:$0xf]
        %v217 = vld [vmem:[#allocation2 + $0xc] sm:$0xf]
        %v218 = vld [vmem:[#allocation2 + $0x10] sm:$0xf]
        %v219 = vld [vmem:[#allocation2 + $0x14] sm:$0xf]
        %v220 = vld [vmem:[#allocation2 + $0x18] sm:$0xf]
        %v221 = vld [vmem:[#allocation2 + $0x1c] sm:$0xf]
        %v222 = vld [vmem:[#allocation2 + $0x20] sm:$0xf]
        %v223 = vld [vmem:[#allocation2 + $0x24] sm:$0xf]
        %v224 = vld [vmem:[#allocation2 + $0x28] sm:$0xf]
        %v225 = vld [vmem:[#allocation2 + $0x2c] sm:$0xf]
        %v226 = vld [vmem:[#allocation2 + $0x30] sm:$0xf]
        %v227 = vld [vmem:[#allocation2 + $0x34] sm:$0xf]
        %v228 = vld [vmem:[#allocation2 + $0x38] sm:$0xf]
        %v229 = vld [vmem:[#allocation2 + $0x3c] sm:$0xf]
        %v230 = vld [vmem:[#allocation4] sm:$0x1]
        %v232 = vperm.slane %v230, 0
        %v242 = vunpack.c.l.b16 %v206
        %v243 = vunpack.c.l.b16 %v207
        %v244 = vunpack.c.l.b16 %v208
        %v245 = vunpack.c.l.b16 %v209
        %v246 = vunpack.c.l.b16 %v210
        %v247 = vunpack.c.l.b16 %v211
        %v248 = vunpack.c.l.b16 %v212
        %v249 = vunpack.c.l.b16 %v213
        %v250 = vpack.c.b16 %v243, %v242
        %v251 = vpack.c.b16 %v245, %v244
        %v252 = vpack.c.b16 %v247, %v246
        %v253 = vpack.c.b16 %v249, %v248
        %v274 = vunpack.c.l.b16 %v214
        %v275 = vunpack.c.l.b16 %v215
        %v276 = vunpack.c.l.b16 %v216
        %v277 = vunpack.c.l.b16 %v217
        %v278 = vunpack.c.l.b16 %v218
        %v279 = vunpack.c.l.b16 %v219
        %v280 = vunpack.c.l.b16 %v220
        %v281 = vunpack.c.l.b16 %v221
        %v282 = vunpack.c.l.b16 %v222
        %v283 = vunpack.c.l.b16 %v223
        %v284 = vunpack.c.l.b16 %v224
        %v285 = vunpack.c.l.b16 %v225
        %v286 = vunpack.c.l.b16 %v226
        %v287 = vunpack.c.l.b16 %v227
        %v288 = vunpack.c.l.b16 %v228
        %v289 = vunpack.c.l.b16 %v229
        %v290 = vpack.c.b16 %v275, %v274
        %v291 = vpack.c.b16 %v277, %v276
        %v292 = vpack.c.b16 %v279, %v278
        %v293 = vpack.c.b16 %v281, %v280
        %v294 = vpack.c.b16 %v283, %v282
        %v295 = vpack.c.b16 %v285, %v284
        %v296 = vpack.c.b16 %v287, %v286
        %v297 = vpack.c.b16 %v289, %v288
        %306 = vmatpush.bf16.msra.mxu0 %v297
        %307 = vmatpush.bf16.msra.mxu0 %v296
        %308 = vmatpush.bf16.msra.mxu0 %v295
        %309 = vmatpush.bf16.msra.mxu0 %v294
        %310 = vmatpush.bf16.msra.mxu0 %v293
        %311 = vmatpush.bf16.msra.mxu0 %v292
        %312 = vmatpush.bf16.msra.mxu0 %v291
        %313 = vmatpush.bf16.msra.mxu0 %v290
        %314 = vmatmul.bf16.gmra.mxu0 %v250
        %v315 = vpop.f32.mrf.mxu0
        %v316 = vadd.f32 %v232, %v315
        %v317 = vpop.f32.mrf.mxu0
        %v318 = vadd.f32 %v232, %v317
        %319 = vmatmul.bf16.gmra.mxu0 %v251
        %v320 = vpop.f32.mrf.mxu0
        %v321 = vadd.f32 %v232, %v320
        %v322 = vpop.f32.mrf.mxu0
        %v323 = vadd.f32 %v232, %v322
        %324 = vmatmul.bf16.gmra.mxu0 %v252
        %v325 = vpop.f32.mrf.mxu0
        %v326 = vadd.f32 %v232, %v325
        %v327 = vpop.f32.mrf.mxu0
        %v328 = vadd.f32 %v232, %v327
        %329 = vmatmul.bf16.gmra.mxu0 %v253
        %v330 = vpop.f32.mrf.mxu0
        %v331 = vadd.f32 %v232, %v330
        %v332 = vpop.f32.mrf.mxu0
        %v333 = vadd.f32 %v232, %v332
        %334 = vdwg.mxu0
        %v335 = vmax.f32 %v316, 0.0
        %v336 = vmax.f32 %v318, 0.0
        %v337 = vmax.f32 %v321, 0.0
        %v338 = vmax.f32 %v323, 0.0
        %v339 = vmax.f32 %v326, 0.0
        %v340 = vmax.f32 %v328, 0.0
        %v341 = vmax.f32 %v331, 0.0
        %v342 = vmax.f32 %v333, 0.0
        %v343 = vpack.c.bf16 %v335, %v335
        %v344 = vpack.c.bf16 %v336, %v336
        %v345 = vpack.c.bf16 %v337, %v337
        %v346 = vpack.c.bf16 %v338, %v338
        %v347 = vpack.c.bf16 %v339, %v339
        %v348 = vpack.c.bf16 %v340, %v340
        %v349 = vpack.c.bf16 %v341, %v341
        %v350 = vpack.c.bf16 %v342, %v342
        %351 = vst [vmem:[%s204] sm:$0xf] %v343
        %352 = vst [vmem:[%s204 + $0x4] sm:$0xf] %v344
        %353 = vst [vmem:[%s204 + $0x8] sm:$0xf] %v345
        %354 = vst [vmem:[%s204 + $0xc] sm:$0xf] %v346
        %355 = vst [vmem:[%s204 + $0x10] sm:$0xf] %v347
        %356 = vst [vmem:[%s204 + $0x14] sm:$0xf] %v348
        %357 = vst [vmem:[%s204 + $0x18] sm:$0xf] %v349
        %358 = vst [vmem:[%s204 + $0x1c] sm:$0xf] %v350
        %s359 = smul.u32 8, %s16
        %p360 = scmp.lt.s32.totalorder %s359, 15
        %s361 = scalar_select %p360, %s359, 15
        %s362 = smul.addr %s361, 4
        %s363 = scalar_lea.vmem %s3, %s362
        // Predicated region
        $region41: #{fwd.6} parent=31 // pred_check
          %p364 = pneg %p102
        $region42: #{fwd.6} parent=31 // pred_check_branch
          %366 = sbr.rel (%p364) target = $region44
        $region43: #{fwd.6} parent=31 // pred_region
          %s367 = smul.u32 8, %s16
        $region44: #{fwd.6} parent=31 // pred_fallthru
          _
      $region32: #{fwd.6} parent=5 // pred_fallthru
        _
      %p368 = scmp.le.s32.totalorder 2, %s11
      // Predicated region
      $region45: #{fwd.6} parent=5 // pred_check
        %p369 = pneg %p368
      $region46: #{fwd.6} parent=5 // pred_check_branch
        %371 = sbr.rel (%p369) target = $region48
      $region47: #{fwd.6} parent=5 // pred_region
        %s372 = ssub.s32 %s11, 2
        // Predicated region
        $region49: #{fwd.6} parent=47 // pred_check
          %p373 = pneg %p108
        $region50: #{fwd.6} parent=47 // pred_check_branch
          %375 = sbr.rel (%p373) target = $region52
        $region51: #{fwd.6} parent=47 // pred_region
          %s376 = smul.u32 8, %s17
          %p377 = scmp.lt.s32.totalorder %s376, 15
          %s378 = scalar_select %p377, %s376, 15
          %s379 = smul.addr %s378, 4
          %s380 = scalar_lea.vmem %s3, %s379
        $region52: #{fwd.6} parent=47 // pred_fallthru
          _
      $region48: #{fwd.6} parent=5 // pred_fallthru
        _
    $region6: #{fwd.6} parent=1 // loop_footer
      %s15 = sadd.s32 1, %s11
    $region7: #{fwd.6} parent=1 // loop_footer_branch
      %10 = sbr.rel target = $region3
    $region8: #{fwd.6} parent=1 // loop_exit
      _
    %381 = vsyncpa [#allocation3], 1
    %s382 = scalar_lea.sflag [#allocation3], 1
    %383 = vsyncpa %s382, 1
    %384 = vsyncpa [#allocation5], 1

// kernel: fwd.8
$region0: #{fwd.8}
  #allocation0 [shape = 'u32[]', space=smem, size = 0x4, offset = 0x4, fixed_abs, tag = 'smem constant byte address 0x4 - core index']
  #allocation1 [shape = 'u32[72,128]{1,0:T(1,128)}', space=vmem, size = 0x9000, scoped, tag = 'internal scratch']
  %s0 = inlined_call_operand.vmem [shape: bf16[128,128], index: 0, kind: input, shape index: {}]
  %s1 = inlined_call_operand.vmem [shape: bf16[128,256], index: 1, kind: input, shape index: {}]
  %s2 = inlined_call_operand.vmem [shape: bf16[128,128], index: 2, kind: input, shape index: {}]
  %s3 = inlined_call_operand.vmem [shape: bf16[128,256], index: 3, kind: input, shape index: {}]
  %s4 = inlined_call_operand.vmem [shape: f32[1,256], index: 4, kind: input, shape index: {}]
  %s5 = inlined_call_operand.vmem [shape: f32[128,256], index: 5, kind: output, shape index: {}]
  %s6 = sld [smem:[#allocation0]]
  $region53: #{fwd.8} parent=0
    _
  %s8 = ssub.s32 1, %s6
  %s9 = scalar_select 0, %s8, %s6
  loop: start=0, step=1, limit=4
  $region2: #{fwd.8} parent=0 // loop_pre_header
    _
  $region3: #{fwd.8} parent=0 // loop_header
    %s11 = sphi 0, %s15
    %p12 = scmp.ge.s32.totalorder %s11, 4
    %s21 = sphi 0, %s23
    %s24 = sphi 0, %s21
    %s25 = sphi 0, %s24
    %s41 = sphi 0, %s25
    %s45 = sphi 0, %s45
    %s47 = sphi 0, %s45
    %s48 = sphi 0, %s47
    %s62 = sphi 0, %s48
    %s68 = sphi 0, %s70
    %s71 = sphi 0, %s68
    %s72 = sphi 0, %s71
    %s88 = sphi 0, %s72
    %s92 = sphi 0, %s92
    %s94 = sphi 0, %s92
    %s95 = sphi 0, %s94
    %s109 = sphi 0, %s95
    %s113 = sphi 0, %s113
    %s115 = sphi 0, %s113
    %s116 = sphi 0, %s115
    %s130 = sphi 0, %s116
    %s136 = sphi 0, %s138
    %s139 = sphi 0, %s136
    %s140 = sphi 0, %s139
    %s156 = sphi 0, %s140
  $region4: #{fwd.8} parent=0 // loop_header_branch
    %14 = sbr.rel (%p12) target = $region8
  $region5: #{fwd.8} parent=0 // loop_body
    %s16 = ssub.s32 %s11, 1
    %s17 = ssub.s32 %s11, 2
    %s18 = sadd.s32 %s11, 1
    %s19 = ssub.s32 %s11, %s18
    %p20 = scmp.eq.s32.totalorder %s19, 0
    %s22 = sadd.s32 %s21, 1
    %s23 = scalar_select %p20, %s21, %s22
    %p26 = pneg %p20
    %p27 = scmp.eq.s32.totalorder %s11, 1
    %p28 = por %p26, %p27
    %p29 = scmp.ne.s32.totalorder %s21, %s24
    %p30 = scmp.eq.s32.totalorder %s11, 0
    %p31 = por %p29, %p30
    %p32 = scmp.ne.s32.totalorder %s21, %s24
    %p33 = scmp.eq.s32.totalorder %s16, 1
    %p34 = por %p32, %p33
    %p35 = scmp.ne.s32.totalorder %s24, %s25
    %p36 = scmp.eq.s32.totalorder %s16, 0
    %p37 = por %p35, %p36
    %p38 = scmp.ne.s32.totalorder %s24, %s25
    %p39 = scmp.eq.s32.totalorder %s17, 1
    %p40 = por %p38, %p39
    %p42 = scmp.ne.s32.totalorder %s25, %s41
    %p43 = scmp.eq.s32.totalorder %s17, 0
    %p44 = por %p42, %p43
    %s46 = sadd.s32 %s45, 1
    %p49 = scmp.eq.s32.totalorder %s11, 1
    %p50 = scmp.ne.s32.totalorder %s45, %s47
    %p51 = scmp.eq.s32.totalorder %s11, 0
    %p52 = por %p50, %p51
    %p53 = scmp.ne.s32.totalorder %s45, %s47
    %p54 = scmp.eq.s32.totalorder %s16, 1
    %p55 = por %p53, %p54
    %p56 = scmp.ne.s32.totalorder %s47, %s48
    %p57 = scmp.eq.s32.totalorder %s16, 0
    %p58 = por %p56, %p57
    %p59 = scmp.ne.s32.totalorder %s47, %s48
    %p60 = scmp.eq.s32.totalorder %s17, 1
    %p61 = por %p59, %p60
    %p63 = scmp.ne.s32.totalorder %s48, %s62
    %p64 = scmp.eq.s32.totalorder %s17, 0
    %p65 = por %p63, %p64
    %s66 = ssub.s32 %s11, %s18
    %p67 = scmp.eq.s32.totalorder %s66, 0
    %s69 = sadd.s32 %s68, 1
    %s70 = scalar_select %p67, %s68, %s69
    %p73 = pneg %p67
    %p74 = scmp.eq.s32.totalorder %s11, 1
    %p75 = por %p73, %p74
    %p76 = scmp.ne.s32.totalorder %s68, %s71
    %p77 = scmp.eq.s32.totalorder %s11, 0
    %p78 = por %p76, %p77
    %p79 = scmp.ne.s32.totalorder %s68, %s71
    %p80 = scmp.eq.s32.totalorder %s16, 1
    %p81 = por %p79, %p80
    %p82 = scmp.ne.s32.totalorder %s71, %s72
    %p83 = scmp.eq.s32.totalorder %s16, 0
    %p84 = por %p82, %p83
    %p85 = scmp.ne.s32.totalorder %s71, %s72
    %p86 = scmp.eq.s32.totalorder %s17, 1
    %p87 = por %p85, %p86
    %p89 = scmp.ne.s32.totalorder %s72, %s88
    %p90 = scmp.eq.s32.totalorder %s17, 0
    %p91 = por %p89, %p90
    %s93 = sadd.s32 %s92, 1
    %p96 = scmp.eq.s32.totalorder %s11, 1
    %p97 = scmp.ne.s32.totalorder %s92, %s94
    %p98 = scmp.eq.s32.totalorder %s11, 0
    %p99 = por %p97, %p98
    %p100 = scmp.ne.s32.totalorder %s92, %s94
    %p101 = scmp.eq.s32.totalorder %s16, 1
    %p102 = por %p100, %p101
    %p103 = scmp.ne.s32.totalorder %s94, %s95
    %p104 = scmp.eq.s32.totalorder %s16, 0
    %p105 = por %p103, %p104
    %p106 = scmp.ne.s32.totalorder %s94, %s95
    %p107 = scmp.eq.s32.totalorder %s17, 1
    %p108 = por %p106, %p107
    %p110 = scmp.ne.s32.totalorder %s95, %s109
    %p111 = scmp.eq.s32.totalorder %s17, 0
    %p112 = por %p110, %p111
    %s114 = sadd.s32 %s113, 1
    %p117 = scmp.eq.s32.totalorder %s11, 1
    %p118 = scmp.ne.s32.totalorder %s113, %s115
    %p119 = scmp.eq.s32.totalorder %s11, 0
    %p120 = por %p118, %p119
    %p121 = scmp.ne.s32.totalorder %s113, %s115
    %p122 = scmp.eq.s32.totalorder %s16, 1
    %p123 = por %p121, %p122
    %p124 = scmp.ne.s32.totalorder %s115, %s116
    %p125 = scmp.eq.s32.totalorder %s16, 0
    %p126 = por %p124, %p125
    %p127 = scmp.ne.s32.totalorder %s115, %s116
    %p128 = scmp.eq.s32.totalorder %s17, 1
    %p129 = por %p127, %p128
    %p131 = scmp.ne.s32.totalorder %s116, %s130
    %p132 = scmp.eq.s32.totalorder %s17, 0
    %p133 = por %p131, %p132
    %s134 = ssub.s32 %s11, %s18
    %p135 = scmp.eq.s32.totalorder %s134, 0
    %s137 = sadd.s32 %s136, 1
    %s138 = scalar_select %p135, %s136, %s137
    %p141 = pneg %p135
    %p142 = scmp.eq.s32.totalorder %s11, 1
    %p143 = por %p141, %p142
    %p144 = scmp.ne.s32.totalorder %s136, %s139
    %p145 = scmp.eq.s32.totalorder %s11, 0
    %p146 = por %p144, %p145
    %p147 = scmp.ne.s32.totalorder %s136, %s139
    %p148 = scmp.eq.s32.totalorder %s16, 1
    %p149 = por %p147, %p148
    %p150 = scmp.ne.s32.totalorder %s139, %s140
    %p151 = scmp.eq.s32.totalorder %s16, 0
    %p152 = por %p150, %p151
    %p153 = scmp.ne.s32.totalorder %s139, %s140
    %p154 = scmp.eq.s32.totalorder %s17, 1
    %p155 = por %p153, %p154
    %p157 = scmp.ne.s32.totalorder %s140, %s156
    %p158 = scmp.eq.s32.totalorder %s17, 0
    %p159 = por %p157, %p158
    %p160 = scmp.le.s32.totalorder 1, %s11
    %p161 = scmp.lt.s32.totalorder %s11, 3
    %p162 = pnand %p160, %p161
    %p163 = pneg %p162
    // Predicated region
    $region9: #{fwd.8} parent=5 // pred_check
      _
    $region10: #{fwd.8} parent=5 // pred_check_branch
      %165 = sbr.rel (%p162) target = $region12
    $region11: #{fwd.8} parent=5 // pred_region
      %s166 = ssub.s32 %s11, 1
      // Predicated region
      $region13: #{fwd.8} parent=11 // pred_check
        %p167 = pneg %p58
      $region14: #{fwd.8} parent=11 // pred_check_branch
        %169 = sbr.rel (%p167) target = $region16
      $region15: #{fwd.8} parent=11 // pred_region
        _
      $region16: #{fwd.8} parent=11 // pred_fallthru
        _
      // Predicated region
      $region17: #{fwd.8} parent=11 // pred_check
        %p170 = pneg %p105
      $region18: #{fwd.8} parent=11 // pred_check_branch
        %172 = sbr.rel (%p170) target = $region20
      $region19: #{fwd.8} parent=11 // pred_region
        _
      $region20: #{fwd.8} parent=11 // pred_fallthru
        _
      // Predicated region
      $region21: #{fwd.8} parent=11 // pred_check
        %p173 = pneg %p126
      $region22: #{fwd.8} parent=11 // pred_check_branch
        %175 = sbr.rel (%p173) target = $region24
      $region23: #{fwd.8} parent=11 // pred_region
        _
      $region24: #{fwd.8} parent=11 // pred_fallthru
        _
    $region12: #{fwd.8} parent=5 // pred_fallthru
      _
    %p176 = scmp.lt.s32.totalorder %s11, 2
    // Predicated region
    $region25: #{fwd.8} parent=5 // pred_check
      %p177 = pneg %p176
    $region26: #{fwd.8} parent=5 // pred_check_branch
      %179 = sbr.rel (%p177) target = $region28
    $region27: #{fwd.8} parent=5 // pred_region
      // Predicated region
      $region29: #{fwd.8} parent=27 // pred_check
        %p180 = pneg %p31
      $region30: #{fwd.8} parent=27 // pred_check_branch
        %182 = sbr.rel (%p180) target = $region32
      $region31: #{fwd.8} parent=27 // pred_region
        %s183 = smul.u32 8, %s11
        %p184 = scmp.lt.s32.totalorder %s183, 15
        %s185 = scalar_select %p184, %s183, 15
        %s186 = smul.addr %s185, 4
        %s187 = scalar_lea.vmem %s0, %s186
        %s188 = smul.u32 8, %s11
      $region32: #{fwd.8} parent=27 // pred_fallthru
        _
      // Predicated region
      $region33: #{fwd.8} parent=27 // pred_check
        %p189 = pneg %p78
      $region34: #{fwd.8} parent=27 // pred_check_branch
        %191 = sbr.rel (%p189) target = $region36
      $region35: #{fwd.8} parent=27 // pred_region
        %s192 = smul.u32 8, %s11
        %p193 = scmp.lt.s32.totalorder %s192, 15
        %s194 = scalar_select %p193, %s192, 15
        %s195 = smul.addr %s194, 4
        %s196 = scalar_lea.vmem %s2, %s195
        %s197 = smul.u32 8, %s11
      $region36: #{fwd.8} parent=27 // pred_fallthru
        _
    $region28: #{fwd.8} parent=5 // pred_fallthru
      _
    %p198 = scmp.le.s32.totalorder 1, %s11
    %p199 = scmp.lt.s32.totalorder %s11, 3
    %p200 = pnand %p198, %p199
    %p201 = pneg %p200
    // Predicated region
    $region37: #{fwd.8} parent=5 // pred_check
      _
    $region38: #{fwd.8} parent=5 // pred_check_branch
      %203 = sbr.rel (%p200) target = $region40
    $region39: #{fwd.8} parent=5 // pred_region
      %s204 = ssub.s32 %s11, 1
      %s205 = smul.u32 8, %s16
      %p206 = scmp.lt.s32.totalorder %s205, 15
      %s207 = scalar_select %p206, %s205, 15
      %s208 = smul.addr %s207, 4
      %s209 = scalar_lea.vmem %s0, %s208
      %p210 = pneg %p37
      %p211 = pneg %p34
      %p212 = pneg %p58
      %p213 = pneg %p55
      %s214 = smul.u32 8, %s16
      %p215 = scmp.lt.s32.totalorder %s214, 15
      %s216 = scalar_select %p215, %s214, 15
      %s217 = smul.addr %s216, 4
      %s218 = scalar_lea.vmem %s2, %s217
      %p219 = pneg %p84
      %p220 = pneg %p81
      %p221 = pneg %p105
      %p222 = pneg %p102
      %p223 = pneg %p126
      %p224 = pneg %p123
      %p225 = pneg %p152
      %p226 = pneg %p149
      %s227 = smul.u32 8, %s16
      %p228 = scmp.lt.s32.totalorder %s227, 15
      %s229 = scalar_select %p228, %s227, 15
      %s230 = smul.addr %s229, 2
      %s231 = smul.addr %s230, 8
      %s232 = scalar_lea.vmem %s5, %s231
      %s233 = smul.u32 8, %s16
      %p234 = scmp.lt.s32.totalorder %s233, 15
      %s235 = scalar_select %p234, %s233, 15
      %s236 = smul.addr %s235, 4
      %s237 = scalar_lea.vmem %s0, %s236
      %s238 = smul.u32 8, %s16
      %s239 = smul.u32 8, %s16
      %p240 = scmp.lt.s32.totalorder %s239, 15
      %s241 = scalar_select %p240, %s239, 15
      %s242 = smul.addr %s241, 4
      %s243 = scalar_lea.vmem %s2, %s242
      %s244 = smul.u32 8, %s16
      %s245 = smul.u32 8, %s16
      %p246 = scmp.lt.s32.totalorder %s245, 15
      %s247 = scalar_select %p246, %s245, 15
      %s248 = smul.addr %s247, 2
      %s249 = smul.addr %s248, 8
      %s250 = scalar_lea.vmem %s5, %s249
      %s251 = smul.u32 8, %s16
      %v252 = vld [vmem:[%s237] sm:$0xf]
      %v253 = vld [vmem:[%s237 + $0x4] sm:$0xf]
      %v254 = vld [vmem:[%s237 + $0x8] sm:$0xf]
      %v255 = vld [vmem:[%s237 + $0xc] sm:$0xf]
      %v256 = vld [vmem:[%s237 + $0x10] sm:$0xf]
      %v257 = vld [vmem:[%s237 + $0x14] sm:$0xf]
      %v258 = vld [vmem:[%s237 + $0x18] sm:$0xf]
      %v259 = vld [vmem:[%s237 + $0x1c] sm:$0xf]
      %v260 = vld [vmem:[%s1] sm:$0xff]
      %v261 = vld [vmem:[%s1 + $0x8] sm:$0xff]
      %v262 = vld [vmem:[%s1 + $0x10] sm:$0xff]
      %v263 = vld [vmem:[%s1 + $0x18] sm:$0xff]
      %v264 = vld [vmem:[%s1 + $0x20] sm:$0xff]
      %v265 = vld [vmem:[%s1 + $0x28] sm:$0xff]
      %v266 = vld [vmem:[%s1 + $0x30] sm:$0xff]
      %v267 = vld [vmem:[%s1 + $0x38] sm:$0xff]
      %v268 = vld [vmem:[%s1 + $0x40] sm:$0xff]
      %v269 = vld [vmem:[%s1 + $0x48] sm:$0xff]
      %v270 = vld [vmem:[%s1 + $0x50] sm:$0xff]
      %v271 = vld [vmem:[%s1 + $0x58] sm:$0xff]
      %v272 = vld [vmem:[%s1 + $0x60] sm:$0xff]
      %v273 = vld [vmem:[%s1 + $0x68] sm:$0xff]
      %v274 = vld [vmem:[%s1 + $0x70] sm:$0xff]
      %v275 = vld [vmem:[%s1 + $0x78] sm:$0xff]
      %v276 = vld [vmem:[%s243] sm:$0xf]
      %v277 = vld [vmem:[%s243 + $0x4] sm:$0xf]
      %v278 = vld [vmem:[%s243 + $0x8] sm:$0xf]
      %v279 = vld [vmem:[%s243 + $0xc] sm:$0xf]
      %v280 = vld [vmem:[%s243 + $0x10] sm:$0xf]
      %v281 = vld [vmem:[%s243 + $0x14] sm:$0xf]
      %v282 = vld [vmem:[%s243 + $0x18] sm:$0xf]
      %v283 = vld [vmem:[%s243 + $0x1c] sm:$0xf]
      %v284 = vld [vmem:[%s3] sm:$0xff]
      %v285 = vld [vmem:[%s3 + $0x8] sm:$0xff]
      %v286 = vld [vmem:[%s3 + $0x10] sm:$0xff]
      %v287 = vld [vmem:[%s3 + $0x18] sm:$0xff]
      %v288 = vld [vmem:[%s3 + $0x20] sm:$0xff]
      %v289 = vld [vmem:[%s3 + $0x28] sm:$0xff]
      %v290 = vld [vmem:[%s3 + $0x30] sm:$0xff]
      %v291 = vld [vmem:[%s3 + $0x38] sm:$0xff]
      %v292 = vld [vmem:[%s3 + $0x40] sm:$0xff]
      %v293 = vld [vmem:[%s3 + $0x48] sm:$0xff]
      %v294 = vld [vmem:[%s3 + $0x50] sm:$0xff]
      %v295 = vld [vmem:[%s3 + $0x58] sm:$0xff]
      %v296 = vld [vmem:[%s3 + $0x60] sm:$0xff]
      %v297 = vld [vmem:[%s3 + $0x68] sm:$0xff]
      %v298 = vld [vmem:[%s3 + $0x70] sm:$0xff]
      %v299 = vld [vmem:[%s3 + $0x78] sm:$0xff]
      %v308 = vunpack.c.l.b16 %v276
      %v309 = vunpack.c.l.b16 %v277
      %v310 = vunpack.c.l.b16 %v278
      %v311 = vunpack.c.l.b16 %v279
      %v312 = vunpack.c.l.b16 %v280
      %v313 = vunpack.c.l.b16 %v281
      %v314 = vunpack.c.l.b16 %v282
      %v315 = vunpack.c.l.b16 %v283
      %v316 = vpack.c.b16 %v309, %v308
      %v317 = vpack.c.b16 %v311, %v310
      %v318 = vpack.c.b16 %v313, %v312
      %v319 = vpack.c.b16 %v315, %v314
      %v340 = vunpack.c.l.b16 %v284
      %v341 = vunpack.c.h.b16 %v284
      %v342 = vunpack.c.l.b16 %v285
      %v343 = vunpack.c.h.b16 %v285
      %v344 = vunpack.c.l.b16 %v286
      %v345 = vunpack.c.h.b16 %v286
      %v346 = vunpack.c.l.b16 %v287
      %v347 = vunpack.c.h.b16 %v287
      %v348 = vunpack.c.l.b16 %v288
      %v349 = vunpack.c.h.b16 %v288
      %v350 = vunpack.c.l.b16 %v289
      %v351 = vunpack.c.h.b16 %v289
      %v352 = vunpack.c.l.b16 %v290
      %v353 = vunpack.c.h.b16 %v290
      %v354 = vunpack.c.l.b16 %v291
      %v355 = vunpack.c.h.b16 %v291
      %v356 = vunpack.c.l.b16 %v292
      %v357 = vunpack.c.h.b16 %v292
      %v358 = vunpack.c.l.b16 %v293
      %v359 = vunpack.c.h.b16 %v293
      %v360 = vunpack.c.l.b16 %v294
      %v361 = vunpack.c.h.b16 %v294
      %v362 = vunpack.c.l.b16 %v295
      %v363 = vunpack.c.h.b16 %v295
      %v364 = vunpack.c.l.b16 %v296
      %v365 = vunpack.c.h.b16 %v296
      %v366 = vunpack.c.l.b16 %v297
      %v367 = vunpack.c.h.b16 %v297
      %v368 = vunpack.c.l.b16 %v298
      %v369 = vunpack.c.h.b16 %v298
      %v370 = vunpack.c.l.b16 %v299
      %v371 = vunpack.c.h.b16 %v299
      %v372 = vpack.c.b16 %v342, %v340
      %v373 = vpack.c.b16 %v343, %v341
      %v374 = vpack.c.b16 %v346, %v344
      %v375 = vpack.c.b16 %v347, %v345
      %v376 = vpack.c.b16 %v350, %v348
      %v377 = vpack.c.b16 %v351, %v349
      %v378 = vpack.c.b16 %v354, %v352
      %v379 = vpack.c.b16 %v355, %v353
      %v380 = vpack.c.b16 %v358, %v356
      %v381 = vpack.c.b16 %v359, %v357
      %v382 = vpack.c.b16 %v362, %v360
      %v383 = vpack.c.b16 %v363, %v361
      %v384 = vpack.c.b16 %v366, %v364
      %v385 = vpack.c.b16 %v367, %v365
      %v386 = vpack.c.b16 %v370, %v368
      %v387 = vpack.c.b16 %v371, %v369
      %404 = vmatpush.bf16.msra.mxu0 %v386
      %405 = vmatpush.bf16.msra.mxu0 %v384
      %406 = vmatpush.bf16.msra.mxu0 %v382
      %407 = vmatpush.bf16.msra.mxu0 %v380
      %408 = vmatpush.bf16.msra.mxu0 %v378
      %409 = vmatpush.bf16.msra.mxu0 %v376
      %410 = vmatpush.bf16.msra.mxu0 %v374
      %411 = vmatpush.bf16.msra.mxu0 %v372
      %412 = vmatmul.bf16.gmra.mxu0 %v316
      %v413 = vpop.f32.mrf.mxu0
      %v414 = vadd.f32 0.0, %v413
      %v415 = vpop.f32.mrf.mxu0
      %v416 = vadd.f32 0.0, %v415
      %417 = vmatmul.bf16.gmra.mxu0 %v317
      %v418 = vpop.f32.mrf.mxu0
      %v419 = vadd.f32 0.0, %v418
      %v420 = vpop.f32.mrf.mxu0
      %v421 = vadd.f32 0.0, %v420
      %422 = vmatmul.bf16.gmra.mxu0 %v318
      %v423 = vpop.f32.mrf.mxu0
      %v424 = vadd.f32 0.0, %v423
      %v425 = vpop.f32.mrf.mxu0
      %v426 = vadd.f32 0.0, %v425
      %427 = vmatmul.bf16.gmra.mxu0 %v319
      %v428 = vpop.f32.mrf.mxu0
      %v429 = vadd.f32 0.0, %v428
      %v430 = vpop.f32.mrf.mxu0
      %v431 = vadd.f32 0.0, %v430
      %432 = vdwg.mxu0
      %433 = vmatpush.bf16.msra.mxu0 %v387
      %434 = vmatpush.bf16.msra.mxu0 %v385
      %435 = vmatpush.bf16.msra.mxu0 %v383
      %436 = vmatpush.bf16.msra.mxu0 %v381
      %437 = vmatpush.bf16.msra.mxu0 %v379
      %438 = vmatpush.bf16.msra.mxu0 %v377
      %439 = vmatpush.bf16.msra.mxu0 %v375
      %440 = vmatpush.bf16.msra.mxu0 %v373
      %441 = vmatmul.bf16.gmra.mxu0 %v316
      %v442 = vpop.f32.mrf.mxu0
      %v443 = vadd.f32 0.0, %v442
      %v444 = vpop.f32.mrf.mxu0
      %v445 = vadd.f32 0.0, %v444
      %446 = vmatmul.bf16.gmra.mxu0 %v317
      %v447 = vpop.f32.mrf.mxu0
      %v448 = vadd.f32 0.0, %v447
      %v449 = vpop.f32.mrf.mxu0
      %v450 = vadd.f32 0.0, %v449
      %451 = vmatmul.bf16.gmra.mxu0 %v318
      %v452 = vpop.f32.mrf.mxu0
      %v453 = vadd.f32 0.0, %v452
      %v454 = vpop.f32.mrf.mxu0
      %v455 = vadd.f32 0.0, %v454
      %456 = vmatmul.bf16.gmra.mxu0 %v319
      %v457 = vpop.f32.mrf.mxu0
      %v458 = vadd.f32 0.0, %v457
      %v459 = vpop.f32.mrf.mxu0
      %v460 = vadd.f32 0.0, %v459
      %461 = vdwg.mxu0
      %v470 = vunpack.c.l.b16 %v252
      %v471 = vunpack.c.l.b16 %v253
      %v472 = vunpack.c.l.b16 %v254
      %v473 = vunpack.c.l.b16 %v255
      %v474 = vunpack.c.l.b16 %v256
      %v475 = vunpack.c.l.b16 %v257
      %v476 = vunpack.c.l.b16 %v258
      %v477 = vunpack.c.l.b16 %v259
      %v478 = vpack.c.b16 %v471, %v470
      %v479 = vpack.c.b16 %v473, %v472
      %v480 = vpack.c.b16 %v475, %v474
      %v481 = vpack.c.b16 %v477, %v476
      %v502 = vunpack.c.l.b16 %v260
      %v503 = vunpack.c.h.b16 %v260
      %v504 = vunpack.c.l.b16 %v261
      %v505 = vunpack.c.h.b16 %v261
      %v506 = vunpack.c.l.b16 %v262
      %v507 = vunpack.c.h.b16 %v262
      %v508 = vunpack.c.l.b16 %v263
      %v509 = vunpack.c.h.b16 %v263
      %v510 = vunpack.c.l.b16 %v264
      %v511 = vunpack.c.h.b16 %v264
      %v512 = vunpack.c.l.b16 %v265
      %v513 = vunpack.c.h.b16 %v265
      %v514 = vunpack.c.l.b16 %v266
      %v515 = vunpack.c.h.b16 %v266
      %v516 = vunpack.c.l.b16 %v267
      %v517 = vunpack.c.h.b16 %v267
      %v518 = vunpack.c.l.b16 %v268
      %v519 = vunpack.c.h.b16 %v268
      %v520 = vunpack.c.l.b16 %v269
      %v521 = vunpack.c.h.b16 %v269
      %v522 = vunpack.c.l.b16 %v270
      %v523 = vunpack.c.h.b16 %v270
      %v524 = vunpack.c.l.b16 %v271
      %v525 = vunpack.c.h.b16 %v271
      %v526 = vunpack.c.l.b16 %v272
      %v527 = vunpack.c.h.b16 %v272
      %v528 = vunpack.c.l.b16 %v273
      %v529 = vunpack.c.h.b16 %v273
      %v530 = vunpack.c.l.b16 %v274
      %v531 = vunpack.c.h.b16 %v274
      %v532 = vunpack.c.l.b16 %v275
      %v533 = vunpack.c.h.b16 %v275
      %v534 = vpack.c.b16 %v504, %v502
      %v535 = vpack.c.b16 %v505, %v503
      %v536 = vpack.c.b16 %v508, %v506
      %v537 = vpack.c.b16 %v509, %v507
      %v538 = vpack.c.b16 %v512, %v510
      %v539 = vpack.c.b16 %v513, %v511
      %v540 = vpack.c.b16 %v516, %v514
      %v541 = vpack.c.b16 %v517, %v515
      %v542 = vpack.c.b16 %v520, %v518
      %v543 = vpack.c.b16 %v521, %v519
      %v544 = vpack.c.b16 %v524, %v522
      %v545 = vpack.c.b16 %v525, %v523
      %v546 = vpack.c.b16 %v528, %v526
      %v547 = vpack.c.b16 %v529, %v527
      %v548 = vpack.c.b16 %v532, %v530
      %v549 = vpack.c.b16 %v533, %v531
      %566 = vmatpush.bf16.msra.mxu0 %v548
      %567 = vmatpush.bf16.msra.mxu0 %v546
      %568 = vmatpush.bf16.msra.mxu0 %v544
      %569 = vmatpush.bf16.msra.mxu0 %v542
      %570 = vmatpush.bf16.msra.mxu0 %v540
      %571 = vmatpush.bf16.msra.mxu0 %v538
      %572 = vmatpush.bf16.msra.mxu0 %v536
      %573 = vmatpush.bf16.msra.mxu0 %v534
      %574 = vmatmul.bf16.gmra.mxu0 %v478
      %v575 = vpop.f32.mrf.mxu0
      %v576 = vadd.f32 %v414, %v575
      %v577 = vpop.f32.mrf.mxu0
      %v578 = vadd.f32 %v416, %v577
      %579 = vmatmul.bf16.gmra.mxu0 %v479
      %v580 = vpop.f32.mrf.mxu0
      %v581 = vadd.f32 %v419, %v580
      %v582 = vpop.f32.mrf.mxu0
      %v583 = vadd.f32 %v421, %v582
      %584 = vmatmul.bf16.gmra.mxu0 %v480
      %v585 = vpop.f32.mrf.mxu0
      %v586 = vadd.f32 %v424, %v585
      %v587 = vpop.f32.mrf.mxu0
      %v588 = vadd.f32 %v426, %v587
      %589 = vmatmul.bf16.gmra.mxu0 %v481
      %v590 = vpop.f32.mrf.mxu0
      %v591 = vadd.f32 %v429, %v590
      %v592 = vpop.f32.mrf.mxu0
      %v593 = vadd.f32 %v431, %v592
      %594 = vdwg.mxu0
      %595 = vmatpush.bf16.msra.mxu0 %v549
      %596 = vmatpush.bf16.msra.mxu0 %v547
      %597 = vmatpush.bf16.msra.mxu0 %v545
      %598 = vmatpush.bf16.msra.mxu0 %v543
      %599 = vmatpush.bf16.msra.mxu0 %v541
      %600 = vmatpush.bf16.msra.mxu0 %v539
      %601 = vmatpush.bf16.msra.mxu0 %v537
      %602 = vmatpush.bf16.msra.mxu0 %v535
      %603 = vmatmul.bf16.gmra.mxu0 %v478
      %v604 = vpop.f32.mrf.mxu0
      %v605 = vadd.f32 %v443, %v604
      %v606 = vpop.f32.mrf.mxu0
      %v607 = vadd.f32 %v445, %v606
      %608 = vmatmul.bf16.gmra.mxu0 %v479
      %v609 = vpop.f32.mrf.mxu0
      %v610 = vadd.f32 %v448, %v609
      %v611 = vpop.f32.mrf.mxu0
      %v612 = vadd.f32 %v450, %v611
      %613 = vmatmul.bf16.gmra.mxu0 %v480
      %v614 = vpop.f32.mrf.mxu0
      %v615 = vadd.f32 %v453, %v614
      %v616 = vpop.f32.mrf.mxu0
      %v617 = vadd.f32 %v455, %v616
      %618 = vmatmul.bf16.gmra.mxu0 %v481
      %v619 = vpop.f32.mrf.mxu0
      %v620 = vadd.f32 %v458, %v619
      %v621 = vpop.f32.mrf.mxu0
      %v622 = vadd.f32 %v460, %v621
      %623 = vdwg.mxu0
      %v624 = vld [vmem:[%s4] sm:$0x3]
      %v626 = vperm.slane %v624, 0
      %v627 = vperm.slane %v624, 1
      %v630 = vadd.f32 %v576, %v626
      %v631 = vadd.f32 %v605, %v627
      %v632 = vadd.f32 %v578, %v626
      %v633 = vadd.f32 %v607, %v627
      %v634 = vadd.f32 %v581, %v626
      %v635 = vadd.f32 %v610, %v627
      %v636 = vadd.f32 %v583, %v626
      %v637 = vadd.f32 %v612, %v627
      %v638 = vadd.f32 %v586, %v626
      %v639 = vadd.f32 %v615, %v627
      %v640 = vadd.f32 %v588, %v626
      %v641 = vadd.f32 %v617, %v627
      %v642 = vadd.f32 %v591, %v626
      %v643 = vadd.f32 %v620, %v627
      %v644 = vadd.f32 %v593, %v626
      %v645 = vadd.f32 %v622, %v627
      %v646 = vmax.f32 %v630, 0.0
      %v647 = vmax.f32 %v631, 0.0
      %v648 = vmax.f32 %v632, 0.0
      %v649 = vmax.f32 %v633, 0.0
      %v650 = vmax.f32 %v634, 0.0
      %v651 = vmax.f32 %v635, 0.0
      %v652 = vmax.f32 %v636, 0.0
      %v653 = vmax.f32 %v637, 0.0
      %v654 = vmax.f32 %v638, 0.0
      %v655 = vmax.f32 %v639, 0.0
      %v656 = vmax.f32 %v640, 0.0
      %v657 = vmax.f32 %v641, 0.0
      %v658 = vmax.f32 %v642, 0.0
      %v659 = vmax.f32 %v643, 0.0
      %v660 = vmax.f32 %v644, 0.0
      %v661 = vmax.f32 %v645, 0.0
      %662 = vst [vmem:[%s250] sm:$0xff] %v646
      %663 = vst [vmem:[%s250 + $0x8] sm:$0xff] %v647
      %664 = vst [vmem:[%s250 + $0x10] sm:$0xff] %v648
      %665 = vst [vmem:[%s250 + $0x18] sm:$0xff] %v649
      %666 = vst [vmem:[%s250 + $0x20] sm:$0xff] %v650
      %667 = vst [vmem:[%s250 + $0x28] sm:$0xff] %v651
      %668 = vst [vmem:[%s250 + $0x30] sm:$0xff] %v652
      %669 = vst [vmem:[%s250 + $0x38] sm:$0xff] %v653
      %670 = vst [vmem:[%s250 + $0x40] sm:$0xff] %v654
      %671 = vst [vmem:[%s250 + $0x48] sm:$0xff] %v655
      %672 = vst [vmem:[%s250 + $0x50] sm:$0xff] %v656
      %673 = vst [vmem:[%s250 + $0x58] sm:$0xff] %v657
      %674 = vst [vmem:[%s250 + $0x60] sm:$0xff] %v658
      %675 = vst [vmem:[%s250 + $0x68] sm:$0xff] %v659
      %676 = vst [vmem:[%s250 + $0x70] sm:$0xff] %v660
      %677 = vst [vmem:[%s250 + $0x78] sm:$0xff] %v661
      %s678 = smul.u32 8, %s16
      %p679 = scmp.lt.s32.totalorder %s678, 15
      %s680 = scalar_select %p679, %s678, 15
      %s681 = smul.addr %s680, 2
      %s682 = smul.addr %s681, 8
      %s683 = scalar_lea.vmem %s5, %s682
      // Predicated region
      $region41: #{fwd.8} parent=39 // pred_check
        %p684 = pneg %p149
      $region42: #{fwd.8} parent=39 // pred_check_branch
        %686 = sbr.rel (%p684) target = $region44
      $region43: #{fwd.8} parent=39 // pred_region
        %s687 = smul.u32 8, %s16
      $region44: #{fwd.8} parent=39 // pred_fallthru
        _
    $region40: #{fwd.8} parent=5 // pred_fallthru
      _
    %p688 = scmp.le.s32.totalorder 2, %s11
    // Predicated region
    $region45: #{fwd.8} parent=5 // pred_check
      %p689 = pneg %p688
    $region46: #{fwd.8} parent=5 // pred_check_branch
      %691 = sbr.rel (%p689) target = $region48
    $region47: #{fwd.8} parent=5 // pred_region
      %s692 = ssub.s32 %s11, 2
      // Predicated region
      $region49: #{fwd.8} parent=47 // pred_check
        %p693 = pneg %p155
      $region50: #{fwd.8} parent=47 // pred_check_branch
        %695 = sbr.rel (%p693) target = $region52
      $region51: #{fwd.8} parent=47 // pred_region
        %s696 = smul.u32 8, %s17
        %p697 = scmp.lt.s32.totalorder %s696, 15
        %s698 = scalar_select %p697, %s696, 15
        %s699 = smul.addr %s698, 2
        %s700 = smul.addr %s699, 8
        %s701 = scalar_lea.vmem %s5, %s700
      $region52: #{fwd.8} parent=47 // pred_fallthru
        _
    $region48: #{fwd.8} parent=5 // pred_fallthru
      _
  $region6: #{fwd.8} parent=0 // loop_footer
    %s15 = sadd.s32 1, %s11
  $region7: #{fwd.8} parent=0 // loop_footer_branch
    %10 = sbr.rel target = $region3
  $region8: #{fwd.8} parent=0 // loop_exit
    _

// kernel: fwd.9
$region0: #{fwd.9}
  #allocation0 [shape = 'u32[]', space=smem, size = 0x4, offset = 0x4, fixed_abs, tag = 'smem constant byte address 0x4 - core index']
  #allocation1 [shape = 'u32[72,128]{1,0:T(1,128)}', space=vmem, size = 0x9000, scoped, tag = 'internal scratch']
  %s0 = inlined_call_operand.vmem [shape: bf16[128,256], index: 0, kind: input, shape index: {}]
  %s1 = inlined_call_operand.vmem [shape: bf16[256,128], index: 1, kind: input, shape index: {}]
  %s2 = inlined_call_operand.vmem [shape: f32[1,128], index: 2, kind: input, shape index: {}]
  %s3 = inlined_call_operand.vmem [shape: bf16[128,128], index: 3, kind: output, shape index: {}]
  %s4 = sld [smem:[#allocation0]]
  $region45: #{fwd.9} parent=0
    _
  %s6 = ssub.s32 1, %s4
  %s7 = scalar_select 0, %s6, %s4
  loop: start=0, step=1, limit=4
  $region2: #{fwd.9} parent=0 // loop_pre_header
    _
  $region3: #{fwd.9} parent=0 // loop_header
    %s9 = sphi 0, %s13
    %p10 = scmp.ge.s32.totalorder %s9, 4
    %s19 = sphi 0, %s21
    %s22 = sphi 0, %s19
    %s23 = sphi 0, %s22
    %s39 = sphi 0, %s23
    %s43 = sphi 0, %s43
    %s45 = sphi 0, %s43
    %s46 = sphi 0, %s45
    %s60 = sphi 0, %s46
    %s64 = sphi 0, %s64
    %s66 = sphi 0, %s64
    %s67 = sphi 0, %s66
    %s81 = sphi 0, %s67
    %s87 = sphi 0, %s89
    %s90 = sphi 0, %s87
    %s91 = sphi 0, %s90
    %s107 = sphi 0, %s91
  $region4: #{fwd.9} parent=0 // loop_header_branch
    %12 = sbr.rel (%p10) target = $region8
  $region5: #{fwd.9} parent=0 // loop_body
    %s14 = ssub.s32 %s9, 1
    %s15 = ssub.s32 %s9, 2
    %s16 = sadd.s32 %s9, 1
    %s17 = ssub.s32 %s9, %s16
    %p18 = scmp.eq.s32.totalorder %s17, 0
    %s20 = sadd.s32 %s19, 1
    %s21 = scalar_select %p18, %s19, %s20
    %p24 = pneg %p18
    %p25 = scmp.eq.s32.totalorder %s9, 1
    %p26 = por %p24, %p25
    %p27 = scmp.ne.s32.totalorder %s19, %s22
    %p28 = scmp.eq.s32.totalorder %s9, 0
    %p29 = por %p27, %p28
    %p30 = scmp.ne.s32.totalorder %s19, %s22
    %p31 = scmp.eq.s32.totalorder %s14, 1
    %p32 = por %p30, %p31
    %p33 = scmp.ne.s32.totalorder %s22, %s23
    %p34 = scmp.eq.s32.totalorder %s14, 0
    %p35 = por %p33, %p34
    %p36 = scmp.ne.s32.totalorder %s22, %s23
    %p37 = scmp.eq.s32.totalorder %s15, 1
    %p38 = por %p36, %p37
    %p40 = scmp.ne.s32.totalorder %s23, %s39
    %p41 = scmp.eq.s32.totalorder %s15, 0
    %p42 = por %p40, %p41
    %s44 = sadd.s32 %s43, 1
    %p47 = scmp.eq.s32.totalorder %s9, 1
    %p48 = scmp.ne.s32.totalorder %s43, %s45
    %p49 = scmp.eq.s32.totalorder %s9, 0
    %p50 = por %p48, %p49
    %p51 = scmp.ne.s32.totalorder %s43, %s45
    %p52 = scmp.eq.s32.totalorder %s14, 1
    %p53 = por %p51, %p52
    %p54 = scmp.ne.s32.totalorder %s45, %s46
    %p55 = scmp.eq.s32.totalorder %s14, 0
    %p56 = por %p54, %p55
    %p57 = scmp.ne.s32.totalorder %s45, %s46
    %p58 = scmp.eq.s32.totalorder %s15, 1
    %p59 = por %p57, %p58
    %p61 = scmp.ne.s32.totalorder %s46, %s60
    %p62 = scmp.eq.s32.totalorder %s15, 0
    %p63 = por %p61, %p62
    %s65 = sadd.s32 %s64, 1
    %p68 = scmp.eq.s32.totalorder %s9, 1
    %p69 = scmp.ne.s32.totalorder %s64, %s66
    %p70 = scmp.eq.s32.totalorder %s9, 0
    %p71 = por %p69, %p70
    %p72 = scmp.ne.s32.totalorder %s64, %s66
    %p73 = scmp.eq.s32.totalorder %s14, 1
    %p74 = por %p72, %p73
    %p75 = scmp.ne.s32.totalorder %s66, %s67
    %p76 = scmp.eq.s32.totalorder %s14, 0
    %p77 = por %p75, %p76
    %p78 = scmp.ne.s32.totalorder %s66, %s67
    %p79 = scmp.eq.s32.totalorder %s15, 1
    %p80 = por %p78, %p79
    %p82 = scmp.ne.s32.totalorder %s67, %s81
    %p83 = scmp.eq.s32.totalorder %s15, 0
    %p84 = por %p82, %p83
    %s85 = ssub.s32 %s9, %s16
    %p86 = scmp.eq.s32.totalorder %s85, 0
    %s88 = sadd.s32 %s87, 1
    %s89 = scalar_select %p86, %s87, %s88
    %p92 = pneg %p86
    %p93 = scmp.eq.s32.totalorder %s9, 1
    %p94 = por %p92, %p93
    %p95 = scmp.ne.s32.totalorder %s87, %s90
    %p96 = scmp.eq.s32.totalorder %s9, 0
    %p97 = por %p95, %p96
    %p98 = scmp.ne.s32.totalorder %s87, %s90
    %p99 = scmp.eq.s32.totalorder %s14, 1
    %p100 = por %p98, %p99
    %p101 = scmp.ne.s32.totalorder %s90, %s91
    %p102 = scmp.eq.s32.totalorder %s14, 0
    %p103 = por %p101, %p102
    %p104 = scmp.ne.s32.totalorder %s90, %s91
    %p105 = scmp.eq.s32.totalorder %s15, 1
    %p106 = por %p104, %p105
    %p108 = scmp.ne.s32.totalorder %s91, %s107
    %p109 = scmp.eq.s32.totalorder %s15, 0
    %p110 = por %p108, %p109
    %p111 = scmp.le.s32.totalorder 1, %s9
    %p112 = scmp.lt.s32.totalorder %s9, 3
    %p113 = pnand %p111, %p112
    %p114 = pneg %p113
    // Predicated region
    $region9: #{fwd.9} parent=5 // pred_check
      _
    $region10: #{fwd.9} parent=5 // pred_check_branch
      %116 = sbr.rel (%p113) target = $region12
    $region11: #{fwd.9} parent=5 // pred_region
      %s117 = ssub.s32 %s9, 1
      // Predicated region
      $region13: #{fwd.9} parent=11 // pred_check
        %p118 = pneg %p56
      $region14: #{fwd.9} parent=11 // pred_check_branch
        %120 = sbr.rel (%p118) target = $region16
      $region15: #{fwd.9} parent=11 // pred_region
        _
      $region16: #{fwd.9} parent=11 // pred_fallthru
        _
      // Predicated region
      $region17: #{fwd.9} parent=11 // pred_check
        %p121 = pneg %p77
      $region18: #{fwd.9} parent=11 // pred_check_branch
        %123 = sbr.rel (%p121) target = $region20
      $region19: #{fwd.9} parent=11 // pred_region
        _
      $region20: #{fwd.9} parent=11 // pred_fallthru
        _
    $region12: #{fwd.9} parent=5 // pred_fallthru
      _
    %p124 = scmp.lt.s32.totalorder %s9, 2
    // Predicated region
    $region21: #{fwd.9} parent=5 // pred_check
      %p125 = pneg %p124
    $region22: #{fwd.9} parent=5 // pred_check_branch
      %127 = sbr.rel (%p125) target = $region24
    $region23: #{fwd.9} parent=5 // pred_region
      // Predicated region
      $region25: #{fwd.9} parent=23 // pred_check
        %p128 = pneg %p29
      $region26: #{fwd.9} parent=23 // pred_check_branch
        %130 = sbr.rel (%p128) target = $region28
      $region27: #{fwd.9} parent=23 // pred_region
        %s131 = smul.u32 8, %s9
        %p132 = scmp.lt.s32.totalorder %s131, 15
        %s133 = scalar_select %p132, %s131, 15
        %s134 = smul.addr %s133, 2
        %s135 = smul.addr %s134, 4
        %s136 = scalar_lea.vmem %s0, %s135
        %s137 = smul.u32 8, %s9
      $region28: #{fwd.9} parent=23 // pred_fallthru
        _
    $region24: #{fwd.9} parent=5 // pred_fallthru
      _
    %p138 = scmp.le.s32.totalorder 1, %s9
    %p139 = scmp.lt.s32.totalorder %s9, 3
    %p140 = pnand %p138, %p139
    %p141 = pneg %p140
    // Predicated region
    $region29: #{fwd.9} parent=5 // pred_check
      _
    $region30: #{fwd.9} parent=5 // pred_check_branch
      %143 = sbr.rel (%p140) target = $region32
    $region31: #{fwd.9} parent=5 // pred_region
      %s144 = ssub.s32 %s9, 1
      %s145 = smul.u32 8, %s14
      %p146 = scmp.lt.s32.totalorder %s145, 15
      %s147 = scalar_select %p146, %s145, 15
      %s148 = smul.addr %s147, 2
      %s149 = smul.addr %s148, 4
      %s150 = scalar_lea.vmem %s0, %s149
      %p151 = pneg %p35
      %p152 = pneg %p32
      %p153 = pneg %p56
      %p154 = pneg %p53
      %p155 = pneg %p77
      %p156 = pneg %p74
      %p157 = pneg %p103
      %p158 = pneg %p100
      %s159 = smul.u32 8, %s14
      %p160 = scmp.lt.s32.totalorder %s159, 15
      %s161 = scalar_select %p160, %s159, 15
      %s162 = smul.addr %s161, 4
      %s163 = scalar_lea.vmem %s3, %s162
      %s164 = smul.u32 8, %s14
      %p165 = scmp.lt.s32.totalorder %s164, 15
      %s166 = scalar_select %p165, %s164, 15
      %s167 = smul.addr %s166, 2
      %s168 = smul.addr %s167, 4
      %s169 = scalar_lea.vmem %s0, %s168
      %s170 = smul.u32 8, %s14
      %s171 = smul.u32 8, %s14
      %p172 = scmp.lt.s32.totalorder %s171, 15
      %s173 = scalar_select %p172, %s171, 15
      %s174 = smul.addr %s173, 4
      %s175 = scalar_lea.vmem %s3, %s174
      %s176 = smul.u32 8, %s14
      %v177 = vld [vmem:[%s169] sm:$0xff]
      %v178 = vld [vmem:[%s169 + $0x8] sm:$0xff]
      %v179 = vld [vmem:[%s169 + $0x10] sm:$0xff]
      %v180 = vld [vmem:[%s169 + $0x18] sm:$0xff]
      %v181 = vld [vmem:[%s169 + $0x20] sm:$0xff]
      %v182 = vld [vmem:[%s169 + $0x28] sm:$0xff]
      %v183 = vld [vmem:[%s169 + $0x30] sm:$0xff]
      %v184 = vld [vmem:[%s169 + $0x38] sm:$0xff]
      %v185 = vld [vmem:[%s1] sm:$0xf]
      %v186 = vld [vmem:[%s1 + $0x4] sm:$0xf]
      %v187 = vld [vmem:[%s1 + $0x8] sm:$0xf]
      %v188 = vld [vmem:[%s1 + $0xc] sm:$0xf]
      %v189 = vld [vmem:[%s1 + $0x10] sm:$0xf]
      %v190 = vld [vmem:[%s1 + $0x14] sm:$0xf]
      %v191 = vld [vmem:[%s1 + $0x18] sm:$0xf]
      %v192 = vld [vmem:[%s1 + $0x1c] sm:$0xf]
      %v193 = vld [vmem:[%s1 + $0x20] sm:$0xf]
      %v194 = vld [vmem:[%s1 + $0x24] sm:$0xf]
      %v195 = vld [vmem:[%s1 + $0x28] sm:$0xf]
      %v196 = vld [vmem:[%s1 + $0x2c] sm:$0xf]
      %v197 = vld [vmem:[%s1 + $0x30] sm:$0xf]
      %v198 = vld [vmem:[%s1 + $0x34] sm:$0xf]
      %v199 = vld [vmem:[%s1 + $0x38] sm:$0xf]
      %v200 = vld [vmem:[%s1 + $0x3c] sm:$0xf]
      %v201 = vld [vmem:[%s1 + $0x40] sm:$0xf]
      %v202 = vld [vmem:[%s1 + $0x44] sm:$0xf]
      %v203 = vld [vmem:[%s1 + $0x48] sm:$0xf]
      %v204 = vld [vmem:[%s1 + $0x4c] sm:$0xf]
      %v205 = vld [vmem:[%s1 + $0x50] sm:$0xf]
      %v206 = vld [vmem:[%s1 + $0x54] sm:$0xf]
      %v207 = vld [vmem:[%s1 + $0x58] sm:$0xf]
      %v208 = vld [vmem:[%s1 + $0x5c] sm:$0xf]
      %v209 = vld [vmem:[%s1 + $0x60] sm:$0xf]
      %v210 = vld [vmem:[%s1 + $0x64] sm:$0xf]
      %v211 = vld [vmem:[%s1 + $0x68] sm:$0xf]
      %v212 = vld [vmem:[%s1 + $0x6c] sm:$0xf]
      %v213 = vld [vmem:[%s1 + $0x70] sm:$0xf]
      %v214 = vld [vmem:[%s1 + $0x74] sm:$0xf]
      %v215 = vld [vmem:[%s1 + $0x78] sm:$0xf]
      %v216 = vld [vmem:[%s1 + $0x7c] sm:$0xf]
      %v217 = vld [vmem:[%s2] sm:$0x1]
      %v219 = vperm.slane %v217, 0
      %v229 = vunpack.c.l.b16 %v177
      %v230 = vunpack.c.h.b16 %v177
      %v231 = vunpack.c.l.b16 %v178
      %v232 = vunpack.c.h.b16 %v178
      %v233 = vunpack.c.l.b16 %v179
      %v234 = vunpack.c.h.b16 %v179
      %v235 = vunpack.c.l.b16 %v180
      %v236 = vunpack.c.h.b16 %v180
      %v237 = vunpack.c.l.b16 %v181
      %v238 = vunpack.c.h.b16 %v181
      %v239 = vunpack.c.l.b16 %v182
      %v240 = vunpack.c.h.b16 %v182
      %v241 = vunpack.c.l.b16 %v183
      %v242 = vunpack.c.h.b16 %v183
      %v243 = vunpack.c.l.b16 %v184
      %v244 = vunpack.c.h.b16 %v184
      %v245 = vpack.c.b16 %v231, %v229
      %v246 = vpack.c.b16 %v232, %v230
      %v247 = vpack.c.b16 %v235, %v233
      %v248 = vpack.c.b16 %v236, %v234
      %v249 = vpack.c.b16 %v239, %v237
      %v250 = vpack.c.b16 %v240, %v238
      %v251 = vpack.c.b16 %v243, %v241
      %v252 = vpack.c.b16 %v244, %v242
      %v293 = vunpack.c.l.b16 %v185
      %v294 = vunpack.c.l.b16 %v186
      %v295 = vunpack.c.l.b16 %v187
      %v296 = vunpack.c.l.b16 %v188
      %v297 = vunpack.c.l.b16 %v189
      %v298 = vunpack.c.l.b16 %v190
      %v299 = vunpack.c.l.b16 %v191
      %v300 = vunpack.c.l.b16 %v192
      %v301 = vunpack.c.l.b16 %v193
      %v302 = vunpack.c.l.b16 %v194
      %v303 = vunpack.c.l.b16 %v195
      %v304 = vunpack.c.l.b16 %v196
      %v305 = vunpack.c.l.b16 %v197
      %v306 = vunpack.c.l.b16 %v198
      %v307 = vunpack.c.l.b16 %v199
      %v308 = vunpack.c.l.b16 %v200
      %v309 = vunpack.c.l.b16 %v201
      %v310 = vunpack.c.l.b16 %v202
      %v311 = vunpack.c.l.b16 %v203
      %v312 = vunpack.c.l.b16 %v204
      %v313 = vunpack.c.l.b16 %v205
      %v314 = vunpack.c.l.b16 %v206
      %v315 = vunpack.c.l.b16 %v207
      %v316 = vunpack.c.l.b16 %v208
      %v317 = vunpack.c.l.b16 %v209
      %v318 = vunpack.c.l.b16 %v210
      %v319 = vunpack.c.l.b16 %v211
      %v320 = vunpack.c.l.b16 %v212
      %v321 = vunpack.c.l.b16 %v213
      %v322 = vunpack.c.l.b16 %v214
      %v323 = vunpack.c.l.b16 %v215
      %v324 = vunpack.c.l.b16 %v216
      %v325 = vpack.c.b16 %v294, %v293
      %v326 = vpack.c.b16 %v296, %v295
      %v327 = vpack.c.b16 %v298, %v297
      %v328 = vpack.c.b16 %v300, %v299
      %v329 = vpack.c.b16 %v302, %v301
      %v330 = vpack.c.b16 %v304, %v303
      %v331 = vpack.c.b16 %v306, %v305
      %v332 = vpack.c.b16 %v308, %v307
      %v333 = vpack.c.b16 %v310, %v309
      %v334 = vpack.c.b16 %v312, %v311
      %v335 = vpack.c.b16 %v314, %v313
      %v336 = vpack.c.b16 %v316, %v315
      %v337 = vpack.c.b16 %v318, %v317
      %v338 = vpack.c.b16 %v320, %v319
      %v339 = vpack.c.b16 %v322, %v321
      %v340 = vpack.c.b16 %v324, %v323
      %357 = vmatpush.bf16.msra.mxu0 %v332
      %358 = vmatpush.bf16.msra.mxu0 %v331
      %359 = vmatpush.bf16.msra.mxu0 %v330
      %360 = vmatpush.bf16.msra.mxu0 %v329
      %361 = vmatpush.bf16.msra.mxu0 %v328
      %362 = vmatpush.bf16.msra.mxu0 %v327
      %363 = vmatpush.bf16.msra.mxu0 %v326
      %364 = vmatpush.bf16.msra.mxu0 %v325
      %365 = vmatmul.bf16.gmra.mxu0 %v245
      %v366 = vpop.f32.mrf.mxu0
      %v367 = vadd.f32 %v219, %v366
      %v368 = vpop.f32.mrf.mxu0
      %v369 = vadd.f32 %v219, %v368
      %370 = vmatmul.bf16.gmra.mxu0 %v247
      %v371 = vpop.f32.mrf.mxu0
      %v372 = vadd.f32 %v219, %v371
      %v373 = vpop.f32.mrf.mxu0
      %v374 = vadd.f32 %v219, %v373
      %375 = vmatmul.bf16.gmra.mxu0 %v249
      %v376 = vpop.f32.mrf.mxu0
      %v377 = vadd.f32 %v219, %v376
      %v378 = vpop.f32.mrf.mxu0
      %v379 = vadd.f32 %v219, %v378
      %380 = vmatmul.bf16.gmra.mxu0 %v251
      %v381 = vpop.f32.mrf.mxu0
      %v382 = vadd.f32 %v219, %v381
      %v383 = vpop.f32.mrf.mxu0
      %v384 = vadd.f32 %v219, %v383
      %385 = vdwg.mxu0
      %386 = vmatpush.bf16.msra.mxu0 %v340
      %387 = vmatpush.bf16.msra.mxu0 %v339
      %388 = vmatpush.bf16.msra.mxu0 %v338
      %389 = vmatpush.bf16.msra.mxu0 %v337
      %390 = vmatpush.bf16.msra.mxu0 %v336
      %391 = vmatpush.bf16.msra.mxu0 %v335
      %392 = vmatpush.bf16.msra.mxu0 %v334
      %393 = vmatpush.bf16.msra.mxu0 %v333
      %394 = vmatmul.bf16.gmra.mxu0 %v246
      %v395 = vpop.f32.mrf.mxu0
      %v396 = vadd.f32 %v367, %v395
      %v397 = vpop.f32.mrf.mxu0
      %v398 = vadd.f32 %v369, %v397
      %399 = vmatmul.bf16.gmra.mxu0 %v248
      %v400 = vpop.f32.mrf.mxu0
      %v401 = vadd.f32 %v372, %v400
      %v402 = vpop.f32.mrf.mxu0
      %v403 = vadd.f32 %v374, %v402
      %404 = vmatmul.bf16.gmra.mxu0 %v250
      %v405 = vpop.f32.mrf.mxu0
      %v406 = vadd.f32 %v377, %v405
      %v407 = vpop.f32.mrf.mxu0
      %v408 = vadd.f32 %v379, %v407
      %409 = vmatmul.bf16.gmra.mxu0 %v252
      %v410 = vpop.f32.mrf.mxu0
      %v411 = vadd.f32 %v382, %v410
      %v412 = vpop.f32.mrf.mxu0
      %v413 = vadd.f32 %v384, %v412
      %414 = vdwg.mxu0
      %v415 = vmax.f32 %v396, 0.0
      %v416 = vmax.f32 %v398, 0.0
      %v417 = vmax.f32 %v401, 0.0
      %v418 = vmax.f32 %v403, 0.0
      %v419 = vmax.f32 %v406, 0.0
      %v420 = vmax.f32 %v408, 0.0
      %v421 = vmax.f32 %v411, 0.0
      %v422 = vmax.f32 %v413, 0.0
      %v423 = vpack.c.bf16 %v415, %v415
      %v424 = vpack.c.bf16 %v416, %v416
      %v425 = vpack.c.bf16 %v417, %v417
      %v426 = vpack.c.bf16 %v418, %v418
      %v427 = vpack.c.bf16 %v419, %v419
      %v428 = vpack.c.bf16 %v420, %v420
      %v429 = vpack.c.bf16 %v421, %v421
      %v430 = vpack.c.bf16 %v422, %v422
      %431 = vst [vmem:[%s175] sm:$0xf] %v423
      %432 = vst [vmem:[%s175 + $0x4] sm:$0xf] %v424
      %433 = vst [vmem:[%s175 + $0x8] sm:$0xf] %v425
      %434 = vst [vmem:[%s175 + $0xc] sm:$0xf] %v426
      %435 = vst [vmem:[%s175 + $0x10] sm:$0xf] %v427
      %436 = vst [vmem:[%s175 + $0x14] sm:$0xf] %v428
      %437 = vst [vmem:[%s175 + $0x18] sm:$0xf] %v429
      %438 = vst [vmem:[%s175 + $0x1c] sm:$0xf] %v430
      %s439 = smul.u32 8, %s14
      %p440 = scmp.lt.s32.totalorder %s439, 15
      %s441 = scalar_select %p440, %s439, 15
      %s442 = smul.addr %s441, 4
      %s443 = scalar_lea.vmem %s3, %s442
      // Predicated region
      $region33: #{fwd.9} parent=31 // pred_check
        %p444 = pneg %p100
      $region34: #{fwd.9} parent=31 // pred_check_branch
        %446 = sbr.rel (%p444) target = $region36
      $region35: #{fwd.9} parent=31 // pred_region
        %s447 = smul.u32 8, %s14
      $region36: #{fwd.9} parent=31 // pred_fallthru
        _
    $region32: #{fwd.9} parent=5 // pred_fallthru
      _
    %p448 = scmp.le.s32.totalorder 2, %s9
    // Predicated region
    $region37: #{fwd.9} parent=5 // pred_check
      %p449 = pneg %p448
    $region38: #{fwd.9} parent=5 // pred_check_branch
      %451 = sbr.rel (%p449) target = $region40
    $region39: #{fwd.9} parent=5 // pred_region
      %s452 = ssub.s32 %s9, 2
      // Predicated region
      $region41: #{fwd.9} parent=39 // pred_check
        %p453 = pneg %p106
      $region42: #{fwd.9} parent=39 // pred_check_branch
        %455 = sbr.rel (%p453) target = $region44
      $region43: #{fwd.9} parent=39 // pred_region
        %s456 = smul.u32 8, %s15
        %p457 = scmp.lt.s32.totalorder %s456, 15
        %s458 = scalar_select %p457, %s456, 15
        %s459 = smul.addr %s458, 4
        %s460 = scalar_lea.vmem %s3, %s459
      $region44: #{fwd.9} parent=39 // pred_fallthru
        _
    $region40: #{fwd.9} parent=5 // pred_fallthru
      _
  $region6: #{fwd.9} parent=0 // loop_footer
    %s13 = sadd.s32 1, %s9
  $region7: #{fwd.9} parent=0 // loop_footer_branch
    %8 = sbr.rel target = $region3
  $region8: #{fwd.9} parent=0 // loop_exit
    _

// kernel: fwd.7
$region0: #{fwd.7}
  #allocation0 [shape = 'u32[]', space=smem, size = 0x4, offset = 0x4, fixed_abs, tag = 'smem constant byte address 0x4 - core index']
  #allocation1 [shape = 'u32[72,128]{1,0:T(1,128)}', space=vmem, size = 0x9000, scoped, tag = 'internal scratch']
  %s0 = inlined_call_operand.vmem [shape: bf16[2,10,10,128], index: 0, kind: input, shape index: {}]
  %s1 = inlined_call_operand.vmem [shape: bf16[9,128,128], index: 1, kind: input, shape index: {}]
  %s2 = inlined_call_operand.vmem [shape: f32[1,128], index: 2, kind: input, shape index: {}]
  %s3 = inlined_call_operand.vmem [shape: bf16[2,8,8,128], index: 3, kind: output, shape index: {}]
  %s4 = sld [smem:[#allocation0]]
  $region45: #{fwd.7} parent=0
    _
  %s6 = ssub.s32 1, %s4
  %s7 = scalar_select 0, %s6, %s4
  loop: start=0, step=1, limit=4
  $region2: #{fwd.7} parent=0 // loop_pre_header
    _
  $region3: #{fwd.7} parent=0 // loop_header
    %s9 = sphi 0, %s13
    %p10 = scmp.ge.s32.totalorder %s9, 4
    %s19 = sphi 0, %s21
    %s22 = sphi 0, %s19
    %s23 = sphi 0, %s22
    %s39 = sphi 0, %s23
    %s43 = sphi 0, %s43
    %s45 = sphi 0, %s43
    %s46 = sphi 0, %s45
    %s60 = sphi 0, %s46
    %s64 = sphi 0, %s64
    %s66 = sphi 0, %s64
    %s67 = sphi 0, %s66
    %s81 = sphi 0, %s67
    %s87 = sphi 0, %s89
    %s90 = sphi 0, %s87
    %s91 = sphi 0, %s90
    %s107 = sphi 0, %s91
  $region4: #{fwd.7} parent=0 // loop_header_branch
    %12 = sbr.rel (%p10) target = $region8
  $region5: #{fwd.7} parent=0 // loop_body
    %s14 = ssub.s32 %s9, 1
    %s15 = ssub.s32 %s9, 2
    %s16 = sadd.s32 %s9, 1
    %s17 = ssub.s32 %s9, %s16
    %p18 = scmp.eq.s32.totalorder %s17, 0
    %s20 = sadd.s32 %s19, 1
    %s21 = scalar_select %p18, %s19, %s20
    %p24 = pneg %p18
    %p25 = scmp.eq.s32.totalorder %s9, 1
    %p26 = por %p24, %p25
    %p27 = scmp.ne.s32.totalorder %s19, %s22
    %p28 = scmp.eq.s32.totalorder %s9, 0
    %p29 = por %p27, %p28
    %p30 = scmp.ne.s32.totalorder %s19, %s22
    %p31 = scmp.eq.s32.totalorder %s14, 1
    %p32 = por %p30, %p31
    %p33 = scmp.ne.s32.totalorder %s22, %s23
    %p34 = scmp.eq.s32.totalorder %s14, 0
    %p35 = por %p33, %p34
    %p36 = scmp.ne.s32.totalorder %s22, %s23
    %p37 = scmp.eq.s32.totalorder %s15, 1
    %p38 = por %p36, %p37
    %p40 = scmp.ne.s32.totalorder %s23, %s39
    %p41 = scmp.eq.s32.totalorder %s15, 0
    %p42 = por %p40, %p41
    %s44 = sadd.s32 %s43, 1
    %p47 = scmp.eq.s32.totalorder %s9, 1
    %p48 = scmp.ne.s32.totalorder %s43, %s45
    %p49 = scmp.eq.s32.totalorder %s9, 0
    %p50 = por %p48, %p49
    %p51 = scmp.ne.s32.totalorder %s43, %s45
    %p52 = scmp.eq.s32.totalorder %s14, 1
    %p53 = por %p51, %p52
    %p54 = scmp.ne.s32.totalorder %s45, %s46
    %p55 = scmp.eq.s32.totalorder %s14, 0
    %p56 = por %p54, %p55
    %p57 = scmp.ne.s32.totalorder %s45, %s46
    %p58 = scmp.eq.s32.totalorder %s15, 1
    %p59 = por %p57, %p58
    %p61 = scmp.ne.s32.totalorder %s46, %s60
    %p62 = scmp.eq.s32.totalorder %s15, 0
    %p63 = por %p61, %p62
    %s65 = sadd.s32 %s64, 1
    %p68 = scmp.eq.s32.totalorder %s9, 1
    %p69 = scmp.ne.s32.totalorder %s64, %s66
    %p70 = scmp.eq.s32.totalorder %s9, 0
    %p71 = por %p69, %p70
    %p72 = scmp.ne.s32.totalorder %s64, %s66
    %p73 = scmp.eq.s32.totalorder %s14, 1
    %p74 = por %p72, %p73
    %p75 = scmp.ne.s32.totalorder %s66, %s67
    %p76 = scmp.eq.s32.totalorder %s14, 0
    %p77 = por %p75, %p76
    %p78 = scmp.ne.s32.totalorder %s66, %s67
    %p79 = scmp.eq.s32.totalorder %s15, 1
    %p80 = por %p78, %p79
    %p82 = scmp.ne.s32.totalorder %s67, %s81
    %p83 = scmp.eq.s32.totalorder %s15, 0
    %p84 = por %p82, %p83
    %s85 = ssub.s32 %s9, %s16
    %p86 = scmp.eq.s32.totalorder %s85, 0
    %s88 = sadd.s32 %s87, 1
    %s89 = scalar_select %p86, %s87, %s88
    %p92 = pneg %p86
    %p93 = scmp.eq.s32.totalorder %s9, 1
    %p94 = por %p92, %p93
    %p95 = scmp.ne.s32.totalorder %s87, %s90
    %p96 = scmp.eq.s32.totalorder %s9, 0
    %p97 = por %p95, %p96
    %p98 = scmp.ne.s32.totalorder %s87, %s90
    %p99 = scmp.eq.s32.totalorder %s14, 1
    %p100 = por %p98, %p99
    %p101 = scmp.ne.s32.totalorder %s90, %s91
    %p102 = scmp.eq.s32.totalorder %s14, 0
    %p103 = por %p101, %p102
    %p104 = scmp.ne.s32.totalorder %s90, %s91
    %p105 = scmp.eq.s32.totalorder %s15, 1
    %p106 = por %p104, %p105
    %p108 = scmp.ne.s32.totalorder %s91, %s107
    %p109 = scmp.eq.s32.totalorder %s15, 0
    %p110 = por %p108, %p109
    %p111 = scmp.le.s32.totalorder 1, %s9
    %p112 = scmp.lt.s32.totalorder %s9, 3
    %p113 = pnand %p111, %p112
    %p114 = pneg %p113
    // Predicated region
    $region9: #{fwd.7} parent=5 // pred_check
      _
    $region10: #{fwd.7} parent=5 // pred_check_branch
      %116 = sbr.rel (%p113) target = $region12
    $region11: #{fwd.7} parent=5 // pred_region
      %s117 = ssub.s32 %s9, 1
      // Predicated region
      $region13: #{fwd.7} parent=11 // pred_check
        %p118 = pneg %p56
      $region14: #{fwd.7} parent=11 // pred_check_branch
        %120 = sbr.rel (%p118) target = $region16
      $region15: #{fwd.7} parent=11 // pred_region
        _
      $region16: #{fwd.7} parent=11 // pred_fallthru
        _
      // Predicated region
      $region17: #{fwd.7} parent=11 // pred_check
        %p121 = pneg %p77
      $region18: #{fwd.7} parent=11 // pred_check_branch
        %123 = sbr.rel (%p121) target = $region20
      $region19: #{fwd.7} parent=11 // pred_region
        _
      $region20: #{fwd.7} parent=11 // pred_fallthru
        _
    $region12: #{fwd.7} parent=5 // pred_fallthru
      _
    %p124 = scmp.lt.s32.totalorder %s9, 2
    // Predicated region
    $region21: #{fwd.7} parent=5 // pred_check
      %p125 = pneg %p124
    $region22: #{fwd.7} parent=5 // pred_check_branch
      %127 = sbr.rel (%p125) target = $region24
    $region23: #{fwd.7} parent=5 // pred_region
      // Predicated region
      $region25: #{fwd.7} parent=23 // pred_check
        %p128 = pneg %p29
      $region26: #{fwd.7} parent=23 // pred_check_branch
        %130 = sbr.rel (%p128) target = $region28
      $region27: #{fwd.7} parent=23 // pred_region
        %p131 = scmp.lt.s32.totalorder %s9, 1
        %s132 = scalar_select %p131, %s9, 1
        %s133 = smul.addr %s132, 20
        %s134 = smul.addr %s133, 4
        %s135 = scalar_lea.vmem %s0, %s134
      $region28: #{fwd.7} parent=23 // pred_fallthru
        _
    $region24: #{fwd.7} parent=5 // pred_fallthru
      _
    %p136 = scmp.le.s32.totalorder 1, %s9
    %p137 = scmp.lt.s32.totalorder %s9, 3
    %p138 = pnand %p136, %p137
    %p139 = pneg %p138
    // Predicated region
    $region29: #{fwd.7} parent=5 // pred_check
      _
    $region30: #{fwd.7} parent=5 // pred_check_branch
      %141 = sbr.rel (%p138) target = $region32
    $region31: #{fwd.7} parent=5 // pred_region
      %s142 = ssub.s32 %s9, 1
      %p143 = scmp.lt.s32.totalorder %s14, 1
      %s144 = scalar_select %p143, %s14, 1
      %s145 = smul.addr %s144, 20
      %s146 = smul.addr %s145, 4
      %s147 = scalar_lea.vmem %s0, %s146
      %p148 = pneg %p35
      %p149 = pneg %p32
      %p150 = pneg %p56
      %p151 = pneg %p53
      %p152 = pneg %p77
      %p153 = pneg %p74
      %p154 = pneg %p103
      %p155 = pneg %p100
      %p156 = scmp.lt.s32.totalorder %s14, 1
      %s157 = scalar_select %p156, %s14, 1
      %s158 = smul.addr %s157, 8
      %s159 = smul.addr %s158, 4
      %s160 = scalar_lea.vmem %s3, %s159
      %p161 = scmp.lt.s32.totalorder %s14, 1
      %s162 = scalar_select %p161, %s14, 1
      %s163 = smul.addr %s162, 20
      %s164 = smul.addr %s163, 4
      %s165 = scalar_lea.vmem %s0, %s164
      %p166 = scmp.lt.s32.totalorder %s14, 1
      %s167 = scalar_select %p166, %s14, 1
      %s168 = smul.addr %s167, 8
      %s169 = smul.addr %s168, 4
      %s170 = scalar_lea.vmem %s3, %s169
      %v171 = vld [vmem:[%s165] sm:$0xf]
      %v172 = vld [vmem:[%s165 + $0x4] sm:$0x1]
      %v173 = vld [vmem:[%s165 + $0x8] sm:$0xf]
      %v174 = vld [vmem:[%s165 + $0xc] sm:$0x1]
      %v175 = vld [vmem:[%s165 + $0x10] sm:$0xf]
      %v176 = vld [vmem:[%s165 + $0x14] sm:$0x1]
      %v177 = vld [vmem:[%s165 + $0x18] sm:$0xf]
      %v178 = vld [vmem:[%s165 + $0x1c] sm:$0x1]
      %v179 = vld [vmem:[%s165 + $0x20] sm:$0xf]
      %v180 = vld [vmem:[%s165 + $0x24] sm:$0x1]
      %v181 = vld [vmem:[%s165 + $0x28] sm:$0xf]
      %v182 = vld [vmem:[%s165 + $0x2c] sm:$0x1]
      %v183 = vld [vmem:[%s165 + $0x30] sm:$0xf]
      %v184 = vld [vmem:[%s165 + $0x34] sm:$0x1]
      %v185 = vld [vmem:[%s165 + $0x38] sm:$0xf]
      %v186 = vld [vmem:[%s165 + $0x3c] sm:$0x1]
      %v187 = vld [vmem:[%s165 + $0x40] sm:$0xf]
      %v188 = vld [vmem:[%s165 + $0x44] sm:$0x1]
      %v189 = vld [vmem:[%s165 + $0x48] sm:$0xf]
      %v190 = vld [vmem:[%s165 + $0x4c] sm:$0x1]
      %v191 = vld [vmem:[%s1] sm:$0xf]
      %v192 = vld [vmem:[%s1 + $0x4] sm:$0xf]
      %v193 = vld [vmem:[%s1 + $0x8] sm:$0xf]
      %v194 = vld [vmem:[%s1 + $0xc] sm:$0xf]
      %v195 = vld [vmem:[%s1 + $0x10] sm:$0xf]
      %v196 = vld [vmem:[%s1 + $0x14] sm:$0xf]
      %v197 = vld [vmem:[%s1 + $0x18] sm:$0xf]
      %v198 = vld [vmem:[%s1 + $0x1c] sm:$0xf]
      %v199 = vld [vmem:[%s1 + $0x20] sm:$0xf]
      %v200 = vld [vmem:[%s1 + $0x24] sm:$0xf]
      %v201 = vld [vmem:[%s1 + $0x28] sm:$0xf]
      %v202 = vld [vmem:[%s1 + $0x2c] sm:$0xf]
      %v203 = vld [vmem:[%s1 + $0x30] sm:$0xf]
      %v204 = vld [vmem:[%s1 + $0x34] sm:$0xf]
      %v205 = vld [vmem:[%s1 + $0x38] sm:$0xf]
      %v206 = vld [vmem:[%s1 + $0x3c] sm:$0xf]
      %vm207 = vsmask.f32 3328
      %vm208 = vsmask.f32 7440
      %vm209 = vmor %vm207, %vm208
      %v211 = vshrl.u32 %v171, 16
      %v213 = vrot.slane %v211, 4
      %v214 = vshll.u32 %v171, 16
      %v216 = vrot.slane %v214, 5
      %v217 = vor.u32 %v213, %v216
      %v218 = vrot.slane %v217, 4
      %v220 = vshll.u32 %v172, 16
      %v222 = vrot.slane %v220, 5
      %v223 = vsel %vm209, %v218, %v222
      %v225 = vshrl.u32 %v173, 16
      %v227 = vrot.slane %v225, 4
      %v228 = vshll.u32 %v173, 16
      %v230 = vrot.slane %v228, 5
      %v231 = vor.u32 %v227, %v230
      %v232 = vrot.slane %v231, 4
      %v234 = vshll.u32 %v174, 16
      %v236 = vrot.slane %v234, 5
      %v237 = vsel %vm209, %v232, %v236
      %v239 = vshrl.u32 %v175, 16
      %v241 = vrot.slane %v239, 4
      %v242 = vshll.u32 %v175, 16
      %v244 = vrot.slane %v242, 5
      %v245 = vor.u32 %v241, %v244
      %v246 = vrot.slane %v245, 4
      %v248 = vshll.u32 %v176, 16
      %v250 = vrot.slane %v248, 5
      %v251 = vsel %vm209, %v246, %v250
      %v253 = vshrl.u32 %v177, 16
      %v255 = vrot.slane %v253, 4
      %v256 = vshll.u32 %v177, 16
      %v258 = vrot.slane %v256, 5
      %v259 = vor.u32 %v255, %v258
      %v260 = vrot.slane %v259, 4
      %v262 = vshll.u32 %v178, 16
      %v264 = vrot.slane %v262, 5
      %v265 = vsel %vm209, %v260, %v264
      %v267 = vshrl.u32 %v179, 16
      %v269 = vrot.slane %v267, 4
      %v270 = vshll.u32 %v179, 16
      %v272 = vrot.slane %v270, 5
      %v273 = vor.u32 %v269, %v272
      %v274 = vrot.slane %v273, 4
      %v276 = vshll.u32 %v180, 16
      %v278 = vrot.slane %v276, 5
      %v279 = vsel %vm209, %v274, %v278
      %v281 = vshrl.u32 %v181, 16
      %v283 = vrot.slane %v281, 4
      %v284 = vshll.u32 %v181, 16
      %v286 = vrot.slane %v284, 5
      %v287 = vor.u32 %v283, %v286
      %v288 = vrot.slane %v287, 4
      %v290 = vshll.u32 %v182, 16
      %v292 = vrot.slane %v290, 5
      %v293 = vsel %vm209, %v288, %v292
      %v295 = vshrl.u32 %v183, 16
      %v297 = vrot.slane %v295, 4
      %v298 = vshll.u32 %v183, 16
      %v300 = vrot.slane %v298, 5
      %v301 = vor.u32 %v297, %v300
      %v302 = vrot.slane %v301, 4
      %v304 = vshll.u32 %v184, 16
      %v306 = vrot.slane %v304, 5
      %v307 = vsel %vm209, %v302, %v306
      %v309 = vshrl.u32 %v185, 16
      %v311 = vrot.slane %v309, 4
      %v312 = vshll.u32 %v185, 16
      %v314 = vrot.slane %v312, 5
      %v315 = vor.u32 %v311, %v314
      %v316 = vrot.slane %v315, 4
      %v318 = vshll.u32 %v186, 16
      %v320 = vrot.slane %v318, 5
      %v321 = vsel %vm209, %v316, %v320
      %s322 = scalar_lea.vmem %s1, 64
      %v323 = vld [vmem:[%s322] sm:$0xf]
      %v324 = vld [vmem:[%s322 + $0x4] sm:$0xf]
      %v325 = vld [vmem:[%s322 + $0x8] sm:$0xf]
      %v326 = vld [vmem:[%s322 + $0xc] sm:$0xf]
      %v327 = vld [vmem:[%s322 + $0x10] sm:$0xf]
      %v328 = vld [vmem:[%s322 + $0x14] sm:$0xf]
      %v329 = vld [vmem:[%s322 + $0x18] sm:$0xf]
      %v330 = vld [vmem:[%s322 + $0x1c] sm:$0xf]
      %v331 = vld [vmem:[%s322 + $0x20] sm:$0xf]
      %v332 = vld [vmem:[%s322 + $0x24] sm:$0xf]
      %v333 = vld [vmem:[%s322 + $0x28] sm:$0xf]
      %v334 = vld [vmem:[%s322 + $0x2c] sm:$0xf]
      %v335 = vld [vmem:[%s322 + $0x30] sm:$0xf]
      %v336 = vld [vmem:[%s322 + $0x34] sm:$0xf]
      %v337 = vld [vmem:[%s322 + $0x38] sm:$0xf]
      %v338 = vld [vmem:[%s322 + $0x3c] sm:$0xf]
      %v339 = vunpack.c.l.b16 %v223
      %v340 = vunpack.c.l.b16 %v237
      %v341 = vunpack.c.l.b16 %v251
      %v342 = vunpack.c.l.b16 %v265
      %v343 = vunpack.c.l.b16 %v279
      %v344 = vunpack.c.l.b16 %v293
      %v345 = vunpack.c.l.b16 %v307
      %v346 = vunpack.c.l.b16 %v321
      %v347 = vpack.c.b16 %v340, %v339
      %v348 = vpack.c.b16 %v342, %v341
      %v349 = vpack.c.b16 %v344, %v343
      %v350 = vpack.c.b16 %v346, %v345
      %v371 = vunpack.c.l.b16 %v323
      %v372 = vunpack.c.l.b16 %v324
      %v373 = vunpack.c.l.b16 %v325
      %v374 = vunpack.c.l.b16 %v326
      %v375 = vunpack.c.l.b16 %v327
      %v376 = vunpack.c.l.b16 %v328
      %v377 = vunpack.c.l.b16 %v329
      %v378 = vunpack.c.l.b16 %v330
      %v379 = vunpack.c.l.b16 %v331
      %v380 = vunpack.c.l.b16 %v332
      %v381 = vunpack.c.l.b16 %v333
      %v382 = vunpack.c.l.b16 %v334
      %v383 = vunpack.c.l.b16 %v335
      %v384 = vunpack.c.l.b16 %v336
      %v385 = vunpack.c.l.b16 %v337
      %v386 = vunpack.c.l.b16 %v338
      %v387 = vpack.c.b16 %v372, %v371
      %v388 = vpack.c.b16 %v374, %v373
      %v389 = vpack.c.b16 %v376, %v375
      %v390 = vpack.c.b16 %v378, %v377
      %v391 = vpack.c.b16 %v380, %v379
      %v392 = vpack.c.b16 %v382, %v381
      %v393 = vpack.c.b16 %v384, %v383
      %v394 = vpack.c.b16 %v386, %v385
      %403 = vmatpush.bf16.msra.mxu0 %v394
      %404 = vmatpush.bf16.msra.mxu0 %v393
      %405 = vmatpush.bf16.msra.mxu0 %v392
      %406 = vmatpush.bf16.msra.mxu0 %v391
      %407 = vmatpush.bf16.msra.mxu0 %v390
      %408 = vmatpush.bf16.msra.mxu0 %v389
      %409 = vmatpush.bf16.msra.mxu0 %v388
      %410 = vmatpush.bf16.msra.mxu0 %v387
      %411 = vmatmul.bf16.gmra.mxu0 %v347
      %v412 = vpop.f32.mrf.mxu0
      %v413 = vadd.f32 0.0, %v412
      %v414 = vpop.f32.mrf.mxu0
      %v415 = vadd.f32 0.0, %v414
      %416 = vmatmul.bf16.gmra.mxu0 %v348
      %v417 = vpop.f32.mrf.mxu0
      %v418 = vadd.f32 0.0, %v417
      %v419 = vpop.f32.mrf.mxu0
      %v420 = vadd.f32 0.0, %v419
      %421 = vmatmul.bf16.gmra.mxu0 %v349
      %v422 = vpop.f32.mrf.mxu0
      %v423 = vadd.f32 0.0, %v422
      %v424 = vpop.f32.mrf.mxu0
      %v425 = vadd.f32 0.0, %v424
      %426 = vmatmul.bf16.gmra.mxu0 %v350
      %v427 = vpop.f32.mrf.mxu0
      %v428 = vadd.f32 0.0, %v427
      %v429 = vpop.f32.mrf.mxu0
      %v430 = vadd.f32 0.0, %v429
      %431 = vdwg.mxu0
      %v440 = vunpack.c.l.b16 %v171
      %v441 = vunpack.c.l.b16 %v173
      %v442 = vunpack.c.l.b16 %v175
      %v443 = vunpack.c.l.b16 %v177
      %v444 = vunpack.c.l.b16 %v179
      %v445 = vunpack.c.l.b16 %v181
      %v446 = vunpack.c.l.b16 %v183
      %v447 = vunpack.c.l.b16 %v185
      %v448 = vpack.c.b16 %v441, %v440
      %v449 = vpack.c.b16 %v443, %v442
      %v450 = vpack.c.b16 %v445, %v444
      %v451 = vpack.c.b16 %v447, %v446
      %v472 = vunpack.c.l.b16 %v191
      %v473 = vunpack.c.l.b16 %v192
      %v474 = vunpack.c.l.b16 %v193
      %v475 = vunpack.c.l.b16 %v194
      %v476 = vunpack.c.l.b16 %v195
      %v477 = vunpack.c.l.b16 %v196
      %v478 = vunpack.c.l.b16 %v197
      %v479 = vunpack.c.l.b16 %v198
      %v480 = vunpack.c.l.b16 %v199
      %v481 = vunpack.c.l.b16 %v200
      %v482 = vunpack.c.l.b16 %v201
      %v483 = vunpack.c.l.b16 %v202
      %v484 = vunpack.c.l.b16 %v203
      %v485 = vunpack.c.l.b16 %v204
      %v486 = vunpack.c.l.b16 %v205
      %v487 = vunpack.c.l.b16 %v206
      %v488 = vpack.c.b16 %v473, %v472
      %v489 = vpack.c.b16 %v475, %v474
      %v490 = vpack.c.b16 %v477, %v476
      %v491 = vpack.c.b16 %v479, %v478
      %v492 = vpack.c.b16 %v481, %v480
      %v493 = vpack.c.b16 %v483, %v482
      %v494 = vpack.c.b16 %v485, %v484
      %v495 = vpack.c.b16 %v487, %v486
      %504 = vmatpush.bf16.msra.mxu0 %v495
      %505 = vmatpush.bf16.msra.mxu0 %v494
      %506 = vmatpush.bf16.msra.mxu0 %v493
      %507 = vmatpush.bf16.msra.mxu0 %v492
      %508 = vmatpush.bf16.msra.mxu0 %v491
      %509 = vmatpush.bf16.msra.mxu0 %v490
      %510 = vmatpush.bf16.msra.mxu0 %v489
      %511 = vmatpush.bf16.msra.mxu0 %v488
      %512 = vmatmul.bf16.gmra.mxu0 %v448
      %v513 = vpop.f32.mrf.mxu0
      %v514 = vadd.f32 %v413, %v513
      %v515 = vpop.f32.mrf.mxu0
      %v516 = vadd.f32 %v415, %v515
      %517 = vmatmul.bf16.gmra.mxu0 %v449
      %v518 = vpop.f32.mrf.mxu0
      %v519 = vadd.f32 %v418, %v518
      %v520 = vpop.f32.mrf.mxu0
      %v521 = vadd.f32 %v420, %v520
      %522 = vmatmul.bf16.gmra.mxu0 %v450
      %v523 = vpop.f32.mrf.mxu0
      %v524 = vadd.f32 %v423, %v523
      %v525 = vpop.f32.mrf.mxu0
      %v526 = vadd.f32 %v425, %v525
      %527 = vmatmul.bf16.gmra.mxu0 %v451
      %v528 = vpop.f32.mrf.mxu0
      %v529 = vadd.f32 %v428, %v528
      %v530 = vpop.f32.mrf.mxu0
      %v531 = vadd.f32 %v430, %v530
      %532 = vdwg.mxu0
      %vm541 = vcmask 1042432
      %vm542 = vcmask 1046532
      %vm543 = vmor %vm541, %vm542
      %v544 = vrot.slane %v171, 5
      %v545 = vrot.slane %v544, 4
      %v546 = vrot.slane %v172, 5
      %v547 = vsel %vm543, %v545, %v546
      %v548 = vrot.slane %v173, 5
      %v549 = vrot.slane %v548, 4
      %v550 = vrot.slane %v174, 5
      %v551 = vsel %vm543, %v549, %v550
      %v552 = vrot.slane %v175, 5
      %v553 = vrot.slane %v552, 4
      %v554 = vrot.slane %v176, 5
      %v555 = vsel %vm543, %v553, %v554
      %v556 = vrot.slane %v177, 5
      %v557 = vrot.slane %v556, 4
      %v558 = vrot.slane %v178, 5
      %v559 = vsel %vm543, %v557, %v558
      %v560 = vrot.slane %v179, 5
      %v561 = vrot.slane %v560, 4
      %v562 = vrot.slane %v180, 5
      %v563 = vsel %vm543, %v561, %v562
      %v564 = vrot.slane %v181, 5
      %v565 = vrot.slane %v564, 4
      %v566 = vrot.slane %v182, 5
      %v567 = vsel %vm543, %v565, %v566
      %v568 = vrot.slane %v183, 5
      %v569 = vrot.slane %v568, 4
      %v570 = vrot.slane %v184, 5
      %v571 = vsel %vm543, %v569, %v570
      %v572 = vrot.slane %v185, 5
      %v573 = vrot.slane %v572, 4
      %v574 = vrot.slane %v186, 5
      %v575 = vsel %vm543, %v573, %v574
      %s576 = scalar_lea.vmem %s1, 128
      %v577 = vld [vmem:[%s576] sm:$0xf]
      %v578 = vld [vmem:[%s576 + $0x4] sm:$0xf]
      %v579 = vld [vmem:[%s576 + $0x8] sm:$0xf]
      %v580 = vld [vmem:[%s576 + $0xc] sm:$0xf]
      %v581 = vld [vmem:[%s576 + $0x10] sm:$0xf]
      %v582 = vld [vmem:[%s576 + $0x14] sm:$0xf]
      %v583 = vld [vmem:[%s576 + $0x18] sm:$0xf]
      %v584 = vld [vmem:[%s576 + $0x1c] sm:$0xf]
      %v585 = vld [vmem:[%s576 + $0x20] sm:$0xf]
      %v586 = vld [vmem:[%s576 + $0x24] sm:$0xf]
      %v587 = vld [vmem:[%s576 + $0x28] sm:$0xf]
      %v588 = vld [vmem:[%s576 + $0x2c] sm:$0xf]
      %v589 = vld [vmem:[%s576 + $0x30] sm:$0xf]
      %v590 = vld [vmem:[%s576 + $0x34] sm:$0xf]
      %v591 = vld [vmem:[%s576 + $0x38] sm:$0xf]
      %v592 = vld [vmem:[%s576 + $0x3c] sm:$0xf]
      %v593 = vunpack.c.l.b16 %v547
      %v594 = vunpack.c.l.b16 %v551
      %v595 = vunpack.c.l.b16 %v555
      %v596 = vunpack.c.l.b16 %v559
      %v597 = vunpack.c.l.b16 %v563
      %v598 = vunpack.c.l.b16 %v567
      %v599 = vunpack.c.l.b16 %v571
      %v600 = vunpack.c.l.b16 %v575
      %v601 = vpack.c.b16 %v594, %v593
      %v602 = vpack.c.b16 %v596, %v595
      %v603 = vpack.c.b16 %v598, %v597
      %v604 = vpack.c.b16 %v600, %v599
      %v625 = vunpack.c.l.b16 %v577
      %v626 = vunpack.c.l.b16 %v578
      %v627 = vunpack.c.l.b16 %v579
      %v628 = vunpack.c.l.b16 %v580
      %v629 = vunpack.c.l.b16 %v581
      %v630 = vunpack.c.l.b16 %v582
      %v631 = vunpack.c.l.b16 %v583
      %v632 = vunpack.c.l.b16 %v584
      %v633 = vunpack.c.l.b16 %v585
      %v634 = vunpack.c.l.b16 %v586
      %v635 = vunpack.c.l.b16 %v587
      %v636 = vunpack.c.l.b16 %v588
      %v637 = vunpack.c.l.b16 %v589
      %v638 = vunpack.c.l.b16 %v590
      %v639 = vunpack.c.l.b16 %v591
      %v640 = vunpack.c.l.b16 %v592
      %v641 = vpack.c.b16 %v626, %v625
      %v642 = vpack.c.b16 %v628, %v627
      %v643 = vpack.c.b16 %v630, %v629
      %v644 = vpack.c.b16 %v632, %v631
      %v645 = vpack.c.b16 %v634, %v633
      %v646 = vpack.c.b16 %v636, %v635
      %v647 = vpack.c.b16 %v638, %v637
      %v648 = vpack.c.b16 %v640, %v639
      %657 = vmatpush.bf16.msra.mxu0 %v648
      %658 = vmatpush.bf16.msra.mxu0 %v647
      %659 = vmatpush.bf16.msra.mxu0 %v646
      %660 = vmatpush.bf16.msra.mxu0 %v645
      %661 = vmatpush.bf16.msra.mxu0 %v644
      %662 = vmatpush.bf16.msra.mxu0 %v643
      %663 = vmatpush.bf16.msra.mxu0 %v642
      %664 = vmatpush.bf16.msra.mxu0 %v641
      %665 = vmatmul.bf16.gmra.mxu0 %v601
      %v666 = vpop.f32.mrf.mxu0
      %v667 = vadd.f32 0.0, %v666
      %v668 = vpop.f32.mrf.mxu0
      %v669 = vadd.f32 0.0, %v668
      %670 = vmatmul.bf16.gmra.mxu0 %v602
      %v671 = vpop.f32.mrf.mxu0
      %v672 = vadd.f32 0.0, %v671
      %v673 = vpop.f32.mrf.mxu0
      %v674 = vadd.f32 0.0, %v673
      %675 = vmatmul.bf16.gmra.mxu0 %v603
      %v676 = vpop.f32.mrf.mxu0
      %v677 = vadd.f32 0.0, %v676
      %v678 = vpop.f32.mrf.mxu0
      %v679 = vadd.f32 0.0, %v678
      %680 = vmatmul.bf16.gmra.mxu0 %v604
      %v681 = vpop.f32.mrf.mxu0
      %v682 = vadd.f32 0.0, %v681
      %v683 = vpop.f32.mrf.mxu0
      %v684 = vadd.f32 0.0, %v683
      %685 = vdwg.mxu0
      %v686 = vadd.f32 %v514, %v667
      %v687 = vadd.f32 %v516, %v669
      %v688 = vadd.f32 %v519, %v672
      %v689 = vadd.f32 %v521, %v674
      %v690 = vadd.f32 %v524, %v677
      %v691 = vadd.f32 %v526, %v679
      %v692 = vadd.f32 %v529, %v682
      %v693 = vadd.f32 %v531, %v684
      %s694 = scalar_lea.vmem %s1, 192
      %v695 = vld [vmem:[%s694] sm:$0xf]
      %v696 = vld [vmem:[%s694 + $0x4] sm:$0xf]
      %v697 = vld [vmem:[%s694 + $0x8] sm:$0xf]
      %v698 = vld [vmem:[%s694 + $0xc] sm:$0xf]
      %v699 = vld [vmem:[%s694 + $0x10] sm:$0xf]
      %v700 = vld [vmem:[%s694 + $0x14] sm:$0xf]
      %v701 = vld [vmem:[%s694 + $0x18] sm:$0xf]
      %v702 = vld [vmem:[%s694 + $0x1c] sm:$0xf]
      %v703 = vld [vmem:[%s694 + $0x20] sm:$0xf]
      %v704 = vld [vmem:[%s694 + $0x24] sm:$0xf]
      %v705 = vld [vmem:[%s694 + $0x28] sm:$0xf]
      %v706 = vld [vmem:[%s694 + $0x2c] sm:$0xf]
      %v707 = vld [vmem:[%s694 + $0x30] sm:$0xf]
      %v708 = vld [vmem:[%s694 + $0x34] sm:$0xf]
      %v709 = vld [vmem:[%s694 + $0x38] sm:$0xf]
      %v710 = vld [vmem:[%s694 + $0x3c] sm:$0xf]
      %v712 = vunpack.c.l.b16 %v187
      %v713 = vpack.c.b16 %v442, %v441
      %v714 = vpack.c.b16 %v444, %v443
      %v715 = vpack.c.b16 %v446, %v445
      %v716 = vpack.c.b16 %v712, %v447
      %v737 = vunpack.c.l.b16 %v695
      %v738 = vunpack.c.l.b16 %v696
      %v739 = vunpack.c.l.b16 %v697
      %v740 = vunpack.c.l.b16 %v698
      %v741 = vunpack.c.l.b16 %v699
      %v742 = vunpack.c.l.b16 %v700
      %v743 = vunpack.c.l.b16 %v701
      %v744 = vunpack.c.l.b16 %v702
      %v745 = vunpack.c.l.b16 %v703
      %v746 = vunpack.c.l.b16 %v704
      %v747 = vunpack.c.l.b16 %v705
      %v748 = vunpack.c.l.b16 %v706
      %v749 = vunpack.c.l.b16 %v707
      %v750 = vunpack.c.l.b16 %v708
      %v751 = vunpack.c.l.b16 %v709
      %v752 = vunpack.c.l.b16 %v710
      %v753 = vpack.c.b16 %v738, %v737
      %v754 = vpack.c.b16 %v740, %v739
      %v755 = vpack.c.b16 %v742, %v741
      %v756 = vpack.c.b16 %v744, %v743
      %v757 = vpack.c.b16 %v746, %v745
      %v758 = vpack.c.b16 %v748, %v747
      %v759 = vpack.c.b16 %v750, %v749
      %v760 = vpack.c.b16 %v752, %v751
      %769 = vmatpush.bf16.msra.mxu0 %v760
      %770 = vmatpush.bf16.msra.mxu0 %v759
      %771 = vmatpush.bf16.msra.mxu0 %v758
      %772 = vmatpush.bf16.msra.mxu0 %v757
      %773 = vmatpush.bf16.msra.mxu0 %v756
      %774 = vmatpush.bf16.msra.mxu0 %v755
      %775 = vmatpush.bf16.msra.mxu0 %v754
      %776 = vmatpush.bf16.msra.mxu0 %v753
      %777 = vmatmul.bf16.gmra.mxu0 %v713
      %v778 = vpop.f32.mrf.mxu0
      %v779 = vadd.f32 0.0, %v778
      %v780 = vpop.f32.mrf.mxu0
      %v781 = vadd.f32 0.0, %v780
      %782 = vmatmul.bf16.gmra.mxu0 %v714
      %v783 = vpop.f32.mrf.mxu0
      %v784 = vadd.f32 0.0, %v783
      %v785 = vpop.f32.mrf.mxu0
      %v786 = vadd.f32 0.0, %v785
      %787 = vmatmul.bf16.gmra.mxu0 %v715
      %v788 = vpop.f32.mrf.mxu0
      %v789 = vadd.f32 0.0, %v788
      %v790 = vpop.f32.mrf.mxu0
      %v791 = vadd.f32 0.0, %v790
      %792 = vmatmul.bf16.gmra.mxu0 %v716
      %v793 = vpop.f32.mrf.mxu0
      %v794 = vadd.f32 0.0, %v793
      %v795 = vpop.f32.mrf.mxu0
      %v796 = vadd.f32 0.0, %v795
      %797 = vdwg.mxu0
      %v798 = vadd.f32 %v686, %v779
      %v799 = vadd.f32 %v687, %v781
      %v800 = vadd.f32 %v688, %v784
      %v801 = vadd.f32 %v689, %v786
      %v802 = vadd.f32 %v690, %v789
      %v803 = vadd.f32 %v691, %v791
      %v804 = vadd.f32 %v692, %v794
      %v805 = vadd.f32 %v693, %v796
      %v807 = vshrl.u32 %v187, 16
      %v809 = vrot.slane %v807, 4
      %v810 = vshll.u32 %v187, 16
      %v812 = vrot.slane %v810, 5
      %v813 = vor.u32 %v809, %v812
      %v814 = vrot.slane %v813, 4
      %v816 = vshll.u32 %v188, 16
      %v818 = vrot.slane %v816, 5
      %v819 = vsel %vm209, %v814, %v818
      %s820 = scalar_lea.vmem %s1, 256
      %v821 = vld [vmem:[%s820] sm:$0xf]
      %v822 = vld [vmem:[%s820 + $0x4] sm:$0xf]
      %v823 = vld [vmem:[%s820 + $0x8] sm:$0xf]
      %v824 = vld [vmem:[%s820 + $0xc] sm:$0xf]
      %v825 = vld [vmem:[%s820 + $0x10] sm:$0xf]
      %v826 = vld [vmem:[%s820 + $0x14] sm:$0xf]
      %v827 = vld [vmem:[%s820 + $0x18] sm:$0xf]
      %v828 = vld [vmem:[%s820 + $0x1c] sm:$0xf]
      %v829 = vld [vmem:[%s820 + $0x20] sm:$0xf]
      %v830 = vld [vmem:[%s820 + $0x24] sm:$0xf]
      %v831 = vld [vmem:[%s820 + $0x28] sm:$0xf]
      %v832 = vld [vmem:[%s820 + $0x2c] sm:$0xf]
      %v833 = vld [vmem:[%s820 + $0x30] sm:$0xf]
      %v834 = vld [vmem:[%s820 + $0x34] sm:$0xf]
      %v835 = vld [vmem:[%s820 + $0x38] sm:$0xf]
      %v836 = vld [vmem:[%s820 + $0x3c] sm:$0xf]
      %v837 = vunpack.c.l.b16 %v819
      %v838 = vpack.c.b16 %v341, %v340
      %v839 = vpack.c.b16 %v343, %v342
      %v840 = vpack.c.b16 %v345, %v344
      %v841 = vpack.c.b16 %v837, %v346
      %v862 = vunpack.c.l.b16 %v821
      %v863 = vunpack.c.l.b16 %v822
      %v864 = vunpack.c.l.b16 %v823
      %v865 = vunpack.c.l.b16 %v824
      %v866 = vunpack.c.l.b16 %v825
      %v867 = vunpack.c.l.b16 %v826
      %v868 = vunpack.c.l.b16 %v827
      %v869 = vunpack.c.l.b16 %v828
      %v870 = vunpack.c.l.b16 %v829
      %v871 = vunpack.c.l.b16 %v830
      %v872 = vunpack.c.l.b16 %v831
      %v873 = vunpack.c.l.b16 %v832
      %v874 = vunpack.c.l.b16 %v833
      %v875 = vunpack.c.l.b16 %v834
      %v876 = vunpack.c.l.b16 %v835
      %v877 = vunpack.c.l.b16 %v836
      %v878 = vpack.c.b16 %v863, %v862
      %v879 = vpack.c.b16 %v865, %v864
      %v880 = vpack.c.b16 %v867, %v866
      %v881 = vpack.c.b16 %v869, %v868
      %v882 = vpack.c.b16 %v871, %v870
      %v883 = vpack.c.b16 %v873, %v872
      %v884 = vpack.c.b16 %v875, %v874
      %v885 = vpack.c.b16 %v877, %v876
      %894 = vmatpush.bf16.msra.mxu0 %v885
      %895 = vmatpush.bf16.msra.mxu0 %v884
      %896 = vmatpush.bf16.msra.mxu0 %v883
      %897 = vmatpush.bf16.msra.mxu0 %v882
      %898 = vmatpush.bf16.msra.mxu0 %v881
      %899 = vmatpush.bf16.msra.mxu0 %v880
      %900 = vmatpush.bf16.msra.mxu0 %v879
      %901 = vmatpush.bf16.msra.mxu0 %v878
      %902 = vmatmul.bf16.gmra.mxu0 %v838
      %v903 = vpop.f32.mrf.mxu0
      %v904 = vadd.f32 0.0, %v903
      %v905 = vpop.f32.mrf.mxu0
      %v906 = vadd.f32 0.0, %v905
      %907 = vmatmul.bf16.gmra.mxu0 %v839
      %v908 = vpop.f32.mrf.mxu0
      %v909 = vadd.f32 0.0, %v908
      %v910 = vpop.f32.mrf.mxu0
      %v911 = vadd.f32 0.0, %v910
      %912 = vmatmul.bf16.gmra.mxu0 %v840
      %v913 = vpop.f32.mrf.mxu0
      %v914 = vadd.f32 0.0, %v913
      %v915 = vpop.f32.mrf.mxu0
      %v916 = vadd.f32 0.0, %v915
      %917 = vmatmul.bf16.gmra.mxu0 %v841
      %v918 = vpop.f32.mrf.mxu0
      %v919 = vadd.f32 0.0, %v918
      %v920 = vpop.f32.mrf.mxu0
      %v921 = vadd.f32 0.0, %v920
      %922 = vdwg.mxu0
      %v923 = vadd.f32 %v798, %v904
      %v924 = vadd.f32 %v799, %v906
      %v925 = vadd.f32 %v800, %v909
      %v926 = vadd.f32 %v801, %v911
      %v927 = vadd.f32 %v802, %v914
      %v928 = vadd.f32 %v803, %v916
      %v929 = vadd.f32 %v804, %v919
      %v930 = vadd.f32 %v805, %v921
      %v932 = vrot.slane %v187, 5
      %v933 = vrot.slane %v932, 4
      %v934 = vrot.slane %v188, 5
      %v935 = vsel %vm543, %v933, %v934
      %s936 = scalar_lea.vmem %s1, 320
      %v937 = vld [vmem:[%s936] sm:$0xf]
      %v938 = vld [vmem:[%s936 + $0x4] sm:$0xf]
      %v939 = vld [vmem:[%s936 + $0x8] sm:$0xf]
      %v940 = vld [vmem:[%s936 + $0xc] sm:$0xf]
      %v941 = vld [vmem:[%s936 + $0x10] sm:$0xf]
      %v942 = vld [vmem:[%s936 + $0x14] sm:$0xf]
      %v943 = vld [vmem:[%s936 + $0x18] sm:$0xf]
      %v944 = vld [vmem:[%s936 + $0x1c] sm:$0xf]
      %v945 = vld [vmem:[%s936 + $0x20] sm:$0xf]
      %v946 = vld [vmem:[%s936 + $0x24] sm:$0xf]
      %v947 = vld [vmem:[%s936 + $0x28] sm:$0xf]
      %v948 = vld [vmem:[%s936 + $0x2c] sm:$0xf]
      %v949 = vld [vmem:[%s936 + $0x30] sm:$0xf]
      %v950 = vld [vmem:[%s936 + $0x34] sm:$0xf]
      %v951 = vld [vmem:[%s936 + $0x38] sm:$0xf]
      %v952 = vld [vmem:[%s936 + $0x3c] sm:$0xf]
      %v953 = vunpack.c.l.b16 %v935
      %v954 = vpack.c.b16 %v595, %v594
      %v955 = vpack.c.b16 %v597, %v596
      %v956 = vpack.c.b16 %v599, %v598
      %v957 = vpack.c.b16 %v953, %v600
      %v978 = vunpack.c.l.b16 %v937
      %v979 = vunpack.c.l.b16 %v938
      %v980 = vunpack.c.l.b16 %v939
      %v981 = vunpack.c.l.b16 %v940
      %v982 = vunpack.c.l.b16 %v941
      %v983 = vunpack.c.l.b16 %v942
      %v984 = vunpack.c.l.b16 %v943
      %v985 = vunpack.c.l.b16 %v944
      %v986 = vunpack.c.l.b16 %v945
      %v987 = vunpack.c.l.b16 %v946
      %v988 = vunpack.c.l.b16 %v947
      %v989 = vunpack.c.l.b16 %v948
      %v990 = vunpack.c.l.b16 %v949
      %v991 = vunpack.c.l.b16 %v950
      %v992 = vunpack.c.l.b16 %v951
      %v993 = vunpack.c.l.b16 %v952
      %v994 = vpack.c.b16 %v979, %v978
      %v995 = vpack.c.b16 %v981, %v980
      %v996 = vpack.c.b16 %v983, %v982
      %v997 = vpack.c.b16 %v985, %v984
      %v998 = vpack.c.b16 %v987, %v986
      %v999 = vpack.c.b16 %v989, %v988
      %v1000 = vpack.c.b16 %v991, %v990
      %v1001 = vpack.c.b16 %v993, %v992
      %1010 = vmatpush.bf16.msra.mxu0 %v1001
      %1011 = vmatpush.bf16.msra.mxu0 %v1000
      %1012 = vmatpush.bf16.msra.mxu0 %v999
      %1013 = vmatpush.bf16.msra.mxu0 %v998
      %1014 = vmatpush.bf16.msra.mxu0 %v997
      %1015 = vmatpush.bf16.msra.mxu0 %v996
      %1016 = vmatpush.bf16.msra.mxu0 %v995
      %1017 = vmatpush.bf16.msra.mxu0 %v994
      %1018 = vmatmul.bf16.gmra.mxu0 %v954
      %v1019 = vpop.f32.mrf.mxu0
      %v1020 = vadd.f32 0.0, %v1019
      %v1021 = vpop.f32.mrf.mxu0
      %v1022 = vadd.f32 0.0, %v1021
      %1023 = vmatmul.bf16.gmra.mxu0 %v955
      %v1024 = vpop.f32.mrf.mxu0
      %v1025 = vadd.f32 0.0, %v1024
      %v1026 = vpop.f32.mrf.mxu0
      %v1027 = vadd.f32 0.0, %v1026
      %1028 = vmatmul.bf16.gmra.mxu0 %v956
      %v1029 = vpop.f32.mrf.mxu0
      %v1030 = vadd.f32 0.0, %v1029
      %v1031 = vpop.f32.mrf.mxu0
      %v1032 = vadd.f32 0.0, %v1031
      %1033 = vmatmul.bf16.gmra.mxu0 %v957
      %v1034 = vpop.f32.mrf.mxu0
      %v1035 = vadd.f32 0.0, %v1034
      %v1036 = vpop.f32.mrf.mxu0
      %v1037 = vadd.f32 0.0, %v1036
      %1038 = vdwg.mxu0
      %v1039 = vadd.f32 %v923, %v1020
      %v1040 = vadd.f32 %v924, %v1022
      %v1041 = vadd.f32 %v925, %v1025
      %v1042 = vadd.f32 %v926, %v1027
      %v1043 = vadd.f32 %v927, %v1030
      %v1044 = vadd.f32 %v928, %v1032
      %v1045 = vadd.f32 %v929, %v1035
      %v1046 = vadd.f32 %v930, %v1037
      %s1047 = scalar_lea.vmem %s1, 384
      %v1048 = vld [vmem:[%s1047] sm:$0xf]
      %v1049 = vld [vmem:[%s1047 + $0x4] sm:$0xf]
      %v1050 = vld [vmem:[%s1047 + $0x8] sm:$0xf]
      %v1051 = vld [vmem:[%s1047 + $0xc] sm:$0xf]
      %v1052 = vld [vmem:[%s1047 + $0x10] sm:$0xf]
      %v1053 = vld [vmem:[%s1047 + $0x14] sm:$0xf]
      %v1054 = vld [vmem:[%s1047 + $0x18] sm:$0xf]
      %v1055 = vld [vmem:[%s1047 + $0x1c] sm:$0xf]
      %v1056 = vld [vmem:[%s1047 + $0x20] sm:$0xf]
      %v1057 = vld [vmem:[%s1047 + $0x24] sm:$0xf]
      %v1058 = vld [vmem:[%s1047 + $0x28] sm:$0xf]
      %v1059 = vld [vmem:[%s1047 + $0x2c] sm:$0xf]
      %v1060 = vld [vmem:[%s1047 + $0x30] sm:$0xf]
      %v1061 = vld [vmem:[%s1047 + $0x34] sm:$0xf]
      %v1062 = vld [vmem:[%s1047 + $0x38] sm:$0xf]
      %v1063 = vld [vmem:[%s1047 + $0x3c] sm:$0xf]
      %v1065 = vunpack.c.l.b16 %v189
      %v1066 = vpack.c.b16 %v1065, %v712
      %v1084 = vunpack.c.l.b16 %v1048
      %v1085 = vunpack.c.l.b16 %v1049
      %v1086 = vunpack.c.l.b16 %v1050
      %v1087 = vunpack.c.l.b16 %v1051
      %v1088 = vunpack.c.l.b16 %v1052
      %v1089 = vunpack.c.l.b16 %v1053
      %v1090 = vunpack.c.l.b16 %v1054
      %v1091 = vunpack.c.l.b16 %v1055
      %v1092 = vunpack.c.l.b16 %v1056
      %v1093 = vunpack.c.l.b16 %v1057
      %v1094 = vunpack.c.l.b16 %v1058
      %v1095 = vunpack.c.l.b16 %v1059
      %v1096 = vunpack.c.l.b16 %v1060
      %v1097 = vunpack.c.l.b16 %v1061
      %v1098 = vunpack.c.l.b16 %v1062
      %v1099 = vunpack.c.l.b16 %v1063
      %v1100 = vpack.c.b16 %v1085, %v1084
      %v1101 = vpack.c.b16 %v1087, %v1086
      %v1102 = vpack.c.b16 %v1089, %v1088
      %v1103 = vpack.c.b16 %v1091, %v1090
      %v1104 = vpack.c.b16 %v1093, %v1092
      %v1105 = vpack.c.b16 %v1095, %v1094
      %v1106 = vpack.c.b16 %v1097, %v1096
      %v1107 = vpack.c.b16 %v1099, %v1098
      %1116 = vmatpush.bf16.msra.mxu0 %v1107
      %1117 = vmatpush.bf16.msra.mxu0 %v1106
      %1118 = vmatpush.bf16.msra.mxu0 %v1105
      %1119 = vmatpush.bf16.msra.mxu0 %v1104
      %1120 = vmatpush.bf16.msra.mxu0 %v1103
      %1121 = vmatpush.bf16.msra.mxu0 %v1102
      %1122 = vmatpush.bf16.msra.mxu0 %v1101
      %1123 = vmatpush.bf16.msra.mxu0 %v1100
      %1124 = vmatmul.bf16.gmra.mxu0 %v449
      %v1125 = vpop.f32.mrf.mxu0
      %v1126 = vadd.f32 0.0, %v1125
      %v1127 = vpop.f32.mrf.mxu0
      %v1128 = vadd.f32 0.0, %v1127
      %1129 = vmatmul.bf16.gmra.mxu0 %v450
      %v1130 = vpop.f32.mrf.mxu0
      %v1131 = vadd.f32 0.0, %v1130
      %v1132 = vpop.f32.mrf.mxu0
      %v1133 = vadd.f32 0.0, %v1132
      %1134 = vmatmul.bf16.gmra.mxu0 %v451
      %v1135 = vpop.f32.mrf.mxu0
      %v1136 = vadd.f32 0.0, %v1135
      %v1137 = vpop.f32.mrf.mxu0
      %v1138 = vadd.f32 0.0, %v1137
      %1139 = vmatmul.bf16.gmra.mxu0 %v1066
      %v1140 = vpop.f32.mrf.mxu0
      %v1141 = vadd.f32 0.0, %v1140
      %v1142 = vpop.f32.mrf.mxu0
      %v1143 = vadd.f32 0.0, %v1142
      %1144 = vdwg.mxu0
      %v1145 = vadd.f32 %v1039, %v1126
      %v1146 = vadd.f32 %v1040, %v1128
      %v1147 = vadd.f32 %v1041, %v1131
      %v1148 = vadd.f32 %v1042, %v1133
      %v1149 = vadd.f32 %v1043, %v1136
      %v1150 = vadd.f32 %v1044, %v1138
      %v1151 = vadd.f32 %v1045, %v1141
      %v1152 = vadd.f32 %v1046, %v1143
      %v1154 = vshrl.u32 %v189, 16
      %v1156 = vrot.slane %v1154, 4
      %v1157 = vshll.u32 %v189, 16
      %v1159 = vrot.slane %v1157, 5
      %v1160 = vor.u32 %v1156, %v1159
      %v1161 = vrot.slane %v1160, 4
      %v1163 = vshll.u32 %v190, 16
      %v1165 = vrot.slane %v1163, 5
      %v1166 = vsel %vm209, %v1161, %v1165
      %s1167 = scalar_lea.vmem %s1, 448
      %v1168 = vld [vmem:[%s1167] sm:$0xf]
      %v1169 = vld [vmem:[%s1167 + $0x4] sm:$0xf]
      %v1170 = vld [vmem:[%s1167 + $0x8] sm:$0xf]
      %v1171 = vld [vmem:[%s1167 + $0xc] sm:$0xf]
      %v1172 = vld [vmem:[%s1167 + $0x10] sm:$0xf]
      %v1173 = vld [vmem:[%s1167 + $0x14] sm:$0xf]
      %v1174 = vld [vmem:[%s1167 + $0x18] sm:$0xf]
      %v1175 = vld [vmem:[%s1167 + $0x1c] sm:$0xf]
      %v1176 = vld [vmem:[%s1167 + $0x20] sm:$0xf]
      %v1177 = vld [vmem:[%s1167 + $0x24] sm:$0xf]
      %v1178 = vld [vmem:[%s1167 + $0x28] sm:$0xf]
      %v1179 = vld [vmem:[%s1167 + $0x2c] sm:$0xf]
      %v1180 = vld [vmem:[%s1167 + $0x30] sm:$0xf]
      %v1181 = vld [vmem:[%s1167 + $0x34] sm:$0xf]
      %v1182 = vld [vmem:[%s1167 + $0x38] sm:$0xf]
      %v1183 = vld [vmem:[%s1167 + $0x3c] sm:$0xf]
      %v1184 = vunpack.c.l.b16 %v1166
      %v1185 = vpack.c.b16 %v1184, %v837
      %v1203 = vunpack.c.l.b16 %v1168
      %v1204 = vunpack.c.l.b16 %v1169
      %v1205 = vunpack.c.l.b16 %v1170
      %v1206 = vunpack.c.l.b16 %v1171
      %v1207 = vunpack.c.l.b16 %v1172
      %v1208 = vunpack.c.l.b16 %v1173
      %v1209 = vunpack.c.l.b16 %v1174
      %v1210 = vunpack.c.l.b16 %v1175
      %v1211 = vunpack.c.l.b16 %v1176
      %v1212 = vunpack.c.l.b16 %v1177
      %v1213 = vunpack.c.l.b16 %v1178
      %v1214 = vunpack.c.l.b16 %v1179
      %v1215 = vunpack.c.l.b16 %v1180
      %v1216 = vunpack.c.l.b16 %v1181
      %v1217 = vunpack.c.l.b16 %v1182
      %v1218 = vunpack.c.l.b16 %v1183
      %v1219 = vpack.c.b16 %v1204, %v1203
      %v1220 = vpack.c.b16 %v1206, %v1205
      %v1221 = vpack.c.b16 %v1208, %v1207
      %v1222 = vpack.c.b16 %v1210, %v1209
      %v1223 = vpack.c.b16 %v1212, %v1211
      %v1224 = vpack.c.b16 %v1214, %v1213
      %v1225 = vpack.c.b16 %v1216, %v1215
      %v1226 = vpack.c.b16 %v1218, %v1217
      %1235 = vmatpush.bf16.msra.mxu0 %v1226
      %1236 = vmatpush.bf16.msra.mxu0 %v1225
      %1237 = vmatpush.bf16.msra.mxu0 %v1224
      %1238 = vmatpush.bf16.msra.mxu0 %v1223
      %1239 = vmatpush.bf16.msra.mxu0 %v1222
      %1240 = vmatpush.bf16.msra.mxu0 %v1221
      %1241 = vmatpush.bf16.msra.mxu0 %v1220
      %1242 = vmatpush.bf16.msra.mxu0 %v1219
      %1243 = vmatmul.bf16.gmra.mxu0 %v348
      %v1244 = vpop.f32.mrf.mxu0
      %v1245 = vadd.f32 0.0, %v1244
      %v1246 = vpop.f32.mrf.mxu0
      %v1247 = vadd.f32 0.0, %v1246
      %1248 = vmatmul.bf16.gmra.mxu0 %v349
      %v1249 = vpop.f32.mrf.mxu0
      %v1250 = vadd.f32 0.0, %v1249
      %v1251 = vpop.f32.mrf.mxu0
      %v1252 = vadd.f32 0.0, %v1251
      %1253 = vmatmul.bf16.gmra.mxu0 %v350
      %v1254 = vpop.f32.mrf.mxu0
      %v1255 = vadd.f32 0.0, %v1254
      %v1256 = vpop.f32.mrf.mxu0
      %v1257 = vadd.f32 0.0, %v1256
      %1258 = vmatmul.bf16.gmra.mxu0 %v1185
      %v1259 = vpop.f32.mrf.mxu0
      %v1260 = vadd.f32 0.0, %v1259
      %v1261 = vpop.f32.mrf.mxu0
      %v1262 = vadd.f32 0.0, %v1261
      %1263 = vdwg.mxu0
      %v1264 = vadd.f32 %v1145, %v1245
      %v1265 = vadd.f32 %v1146, %v1247
      %v1266 = vadd.f32 %v1147, %v1250
      %v1267 = vadd.f32 %v1148, %v1252
      %v1268 = vadd.f32 %v1149, %v1255
      %v1269 = vadd.f32 %v1150, %v1257
      %v1270 = vadd.f32 %v1151, %v1260
      %v1271 = vadd.f32 %v1152, %v1262
      %v1273 = vrot.slane %v189, 5
      %v1274 = vrot.slane %v1273, 4
      %v1275 = vrot.slane %v190, 5
      %v1276 = vsel %vm543, %v1274, %v1275
      %s1277 = scalar_lea.vmem %s1, 512
      %v1278 = vld [vmem:[%s1277] sm:$0xf]
      %v1279 = vld [vmem:[%s1277 + $0x4] sm:$0xf]
      %v1280 = vld [vmem:[%s1277 + $0x8] sm:$0xf]
      %v1281 = vld [vmem:[%s1277 + $0xc] sm:$0xf]
      %v1282 = vld [vmem:[%s1277 + $0x10] sm:$0xf]
      %v1283 = vld [vmem:[%s1277 + $0x14] sm:$0xf]
      %v1284 = vld [vmem:[%s1277 + $0x18] sm:$0xf]
      %v1285 = vld [vmem:[%s1277 + $0x1c] sm:$0xf]
      %v1286 = vld [vmem:[%s1277 + $0x20] sm:$0xf]
      %v1287 = vld [vmem:[%s1277 + $0x24] sm:$0xf]
      %v1288 = vld [vmem:[%s1277 + $0x28] sm:$0xf]
      %v1289 = vld [vmem:[%s1277 + $0x2c] sm:$0xf]
      %v1290 = vld [vmem:[%s1277 + $0x30] sm:$0xf]
      %v1291 = vld [vmem:[%s1277 + $0x34] sm:$0xf]
      %v1292 = vld [vmem:[%s1277 + $0x38] sm:$0xf]
      %v1293 = vld [vmem:[%s1277 + $0x3c] sm:$0xf]
      %v1294 = vunpack.c.l.b16 %v1276
      %v1295 = vpack.c.b16 %v1294, %v953
      %v1313 = vunpack.c.l.b16 %v1278
      %v1314 = vunpack.c.l.b16 %v1279
      %v1315 = vunpack.c.l.b16 %v1280
      %v1316 = vunpack.c.l.b16 %v1281
      %v1317 = vunpack.c.l.b16 %v1282
      %v1318 = vunpack.c.l.b16 %v1283
      %v1319 = vunpack.c.l.b16 %v1284
      %v1320 = vunpack.c.l.b16 %v1285
      %v1321 = vunpack.c.l.b16 %v1286
      %v1322 = vunpack.c.l.b16 %v1287
      %v1323 = vunpack.c.l.b16 %v1288
      %v1324 = vunpack.c.l.b16 %v1289
      %v1325 = vunpack.c.l.b16 %v1290
      %v1326 = vunpack.c.l.b16 %v1291
      %v1327 = vunpack.c.l.b16 %v1292
      %v1328 = vunpack.c.l.b16 %v1293
      %v1329 = vpack.c.b16 %v1314, %v1313
      %v1330 = vpack.c.b16 %v1316, %v1315
      %v1331 = vpack.c.b16 %v1318, %v1317
      %v1332 = vpack.c.b16 %v1320, %v1319
      %v1333 = vpack.c.b16 %v1322, %v1321
      %v1334 = vpack.c.b16 %v1324, %v1323
      %v1335 = vpack.c.b16 %v1326, %v1325
      %v1336 = vpack.c.b16 %v1328, %v1327
      %1345 = vmatpush.bf16.msra.mxu0 %v1336
      %1346 = vmatpush.bf16.msra.mxu0 %v1335
      %1347 = vmatpush.bf16.msra.mxu0 %v1334
      %1348 = vmatpush.bf16.msra.mxu0 %v1333
      %1349 = vmatpush.bf16.msra.mxu0 %v1332
      %1350 = vmatpush.bf16.msra.mxu0 %v1331
      %1351 = vmatpush.bf16.msra.mxu0 %v1330
      %1352 = vmatpush.bf16.msra.mxu0 %v1329
      %1353 = vmatmul.bf16.gmra.mxu0 %v602
      %v1354 = vpop.f32.mrf.mxu0
      %v1355 = vadd.f32 0.0, %v1354
      %v1356 = vpop.f32.mrf.mxu0
      %v1357 = vadd.f32 0.0, %v1356
      %1358 = vmatmul.bf16.gmra.mxu0 %v603
      %v1359 = vpop.f32.mrf.mxu0
      %v1360 = vadd.f32 0.0, %v1359
      %v1361 = vpop.f32.mrf.mxu0
      %v1362 = vadd.f32 0.0, %v1361
      %1363 = vmatmul.bf16.gmra.mxu0 %v604
      %v1364 = vpop.f32.mrf.mxu0
      %v1365 = vadd.f32 0.0, %v1364
      %v1366 = vpop.f32.mrf.mxu0
      %v1367 = vadd.f32 0.0, %v1366
      %1368 = vmatmul.bf16.gmra.mxu0 %v1295
      %v1369 = vpop.f32.mrf.mxu0
      %v1370 = vadd.f32 0.0, %v1369
      %v1371 = vpop.f32.mrf.mxu0
      %v1372 = vadd.f32 0.0, %v1371
      %1373 = vdwg.mxu0
      %v1374 = vadd.f32 %v1264, %v1355
      %v1375 = vadd.f32 %v1265, %v1357
      %v1376 = vadd.f32 %v1266, %v1360
      %v1377 = vadd.f32 %v1267, %v1362
      %v1378 = vadd.f32 %v1268, %v1365
      %v1379 = vadd.f32 %v1269, %v1367
      %v1380 = vadd.f32 %v1270, %v1370
      %v1381 = vadd.f32 %v1271, %v1372
      %v1382 = vld [vmem:[%s2] sm:$0x1]
      %v1384 = vperm.slane %v1382, 0
      %v1386 = vadd.f32 %v1374, %v1384
      %v1387 = vadd.f32 %v1375, %v1384
      %v1388 = vadd.f32 %v1376, %v1384
      %v1389 = vadd.f32 %v1377, %v1384
      %v1390 = vadd.f32 %v1378, %v1384
      %v1391 = vadd.f32 %v1379, %v1384
      %v1392 = vadd.f32 %v1380, %v1384
      %v1393 = vadd.f32 %v1381, %v1384
      %v1394 = vmax.f32 %v1386, 0.0
      %v1395 = vmax.f32 %v1387, 0.0
      %v1396 = vmax.f32 %v1388, 0.0
      %v1397 = vmax.f32 %v1389, 0.0
      %v1398 = vmax.f32 %v1390, 0.0
      %v1399 = vmax.f32 %v1391, 0.0
      %v1400 = vmax.f32 %v1392, 0.0
      %v1401 = vmax.f32 %v1393, 0.0
      %v1402 = vpack.c.bf16 %v1394, %v1394
      %v1403 = vpack.c.bf16 %v1395, %v1395
      %v1404 = vpack.c.bf16 %v1396, %v1396
      %v1405 = vpack.c.bf16 %v1397, %v1397
      %v1406 = vpack.c.bf16 %v1398, %v1398
      %v1407 = vpack.c.bf16 %v1399, %v1399
      %v1408 = vpack.c.bf16 %v1400, %v1400
      %v1409 = vpack.c.bf16 %v1401, %v1401
      %1410 = vst [vmem:[%s170] sm:$0xf] %v1402
      %1411 = vst [vmem:[%s170 + $0x4] sm:$0xf] %v1403
      %1412 = vst [vmem:[%s170 + $0x8] sm:$0xf] %v1404
      %1413 = vst [vmem:[%s170 + $0xc] sm:$0xf] %v1405
      %1414 = vst [vmem:[%s170 + $0x10] sm:$0xf] %v1406
      %1415 = vst [vmem:[%s170 + $0x14] sm:$0xf] %v1407
      %1416 = vst [vmem:[%s170 + $0x18] sm:$0xf] %v1408
      %1417 = vst [vmem:[%s170 + $0x1c] sm:$0xf] %v1409
      %p1418 = scmp.lt.s32.totalorder %s14, 1
      %s1419 = scalar_select %p1418, %s14, 1
      %s1420 = smul.addr %s1419, 8
      %s1421 = smul.addr %s1420, 4
      %s1422 = scalar_lea.vmem %s3, %s1421
      // Predicated region
      $region33: #{fwd.7} parent=31 // pred_check
        %p1423 = pneg %p100
      $region34: #{fwd.7} parent=31 // pred_check_branch
        %1425 = sbr.rel (%p1423) target = $region36
      $region35: #{fwd.7} parent=31 // pred_region
        _
      $region36: #{fwd.7} parent=31 // pred_fallthru
        _
    $region32: #{fwd.7} parent=5 // pred_fallthru
      _
    %p1426 = scmp.le.s32.totalorder 2, %s9
    // Predicated region
    $region37: #{fwd.7} parent=5 // pred_check
      %p1427 = pneg %p1426
    $region38: #{fwd.7} parent=5 // pred_check_branch
      %1429 = sbr.rel (%p1427) target = $region40
    $region39: #{fwd.7} parent=5 // pred_region
      %s1430 = ssub.s32 %s9, 2
      // Predicated region
      $region41: #{fwd.7} parent=39 // pred_check
        %p1431 = pneg %p106
      $region42: #{fwd.7} parent=39 // pred_check_branch
        %1433 = sbr.rel (%p1431) target = $region44
      $region43: #{fwd.7} parent=39 // pred_region
        %p1434 = scmp.lt.s32.totalorder %s15, 1
        %s1435 = scalar_select %p1434, %s15, 1
        %s1436 = smul.addr %s1435, 8
        %s1437 = smul.addr %s1436, 4
        %s1438 = scalar_lea.vmem %s3, %s1437
      $region44: #{fwd.7} parent=39 // pred_fallthru
        _
    $region40: #{fwd.7} parent=5 // pred_fallthru
      _
  $region6: #{fwd.7} parent=0 // loop_footer
    %s13 = sadd.s32 1, %s9
  $region7: #{fwd.7} parent=0 // loop_footer_branch
    %8 = sbr.rel target = $region3
  $region8: #{fwd.7} parent=0 // loop_exit
    _

// kernel: fwd.11
$region0: #{fwd.11}
  #allocation0 [shape = 'u32[]', space=smem, size = 0x4, offset = 0x4, fixed_abs, tag = 'smem constant byte address 0x4 - core index']
  #allocation1 [shape = 'u32[72,128]{1,0:T(1,128)}', space=vmem, size = 0x9000, scoped, tag = 'internal scratch']
  %s0 = inlined_call_operand.vmem [shape: bf16[128,128], index: 0, kind: input, shape index: {}]
  %s1 = inlined_call_operand.vmem [shape: bf16[128,256], index: 1, kind: input, shape index: {}]
  %s2 = inlined_call_operand.vmem [shape: f32[1,256], index: 2, kind: input, shape index: {}]
  %s3 = inlined_call_operand.vmem [shape: f32[128,256], index: 3, kind: input, shape index: {}]
  %s4 = inlined_call_operand.hbm [shape: f32[128,256], index: 4, kind: output, shape index: {}]
  %s5 = sld [smem:[#allocation0]]
  $region49: #{fwd.11} parent=0
    _
  %s7 = ssub.s32 1, %s5
  %s8 = scalar_select 0, %s7, %s5
  $region1: #{fwd.11} parent=0
    #allocation2 [shape = 'u8[131072]{0}', space=vmem, size = 0x20000, scoped, tag = 'output window, operand 0']
    #allocation3 [shape = 's32[2]{0}', space=sflag, size = 0x8, scoped, tag = 'scoped memory for fwd.11']
    %9 = vsyncpa [#allocation3], 0
    %s10 = scalar_lea.sflag [#allocation3], 1
    %11 = vsyncpa %s10, 0
    loop: start=0, step=1, limit=4
    $region2: #{fwd.11} parent=1 // loop_pre_header
      _
    $region3: #{fwd.11} parent=1 // loop_header
      %s13 = sphi 0, %s17
      %p14 = scmp.ge.s32.totalorder %s13, 4
      %s23 = sphi 0, %s25
      %s26 = sphi 0, %s23
      %s27 = sphi 0, %s26
      %s43 = sphi 0, %s27
      %s47 = sphi 0, %s47
      %s49 = sphi 0, %s47
      %s50 = sphi 0, %s49
      %s64 = sphi 0, %s50
      %s68 = sphi 0, %s68
      %s70 = sphi 0, %s68
      %s71 = sphi 0, %s70
      %s85 = sphi 0, %s71
      %s91 = sphi 0, %s93
      %s94 = sphi 0, %s91
      %s95 = sphi 0, %s94
      %s111 = sphi 0, %s95
      %s117 = sphi 0, %s119
      %s120 = sphi 0, %s117
      %s121 = sphi 0, %s120
      %s137 = sphi 0, %s121
    $region4: #{fwd.11} parent=1 // loop_header_branch
      %16 = sbr.rel (%p14) target = $region8
    $region5: #{fwd.11} parent=1 // loop_body
      %s18 = ssub.s32 %s13, 1
      %s19 = ssub.s32 %s13, 2
      %s20 = sadd.s32 %s13, 1
      %s21 = ssub.s32 %s13, %s20
      %p22 = scmp.eq.s32.totalorder %s21, 0
      %s24 = sadd.s32 %s23, 1
      %s25 = scalar_select %p22, %s23, %s24
      %p28 = pneg %p22
      %p29 = scmp.eq.s32.totalorder %s13, 1
      %p30 = por %p28, %p29
      %p31 = scmp.ne.s32.totalorder %s23, %s26
      %p32 = scmp.eq.s32.totalorder %s13, 0
      %p33 = por %p31, %p32
      %p34 = scmp.ne.s32.totalorder %s23, %s26
      %p35 = scmp.eq.s32.totalorder %s18, 1
      %p36 = por %p34, %p35
      %p37 = scmp.ne.s32.totalorder %s26, %s27
      %p38 = scmp.eq.s32.totalorder %s18, 0
      %p39 = por %p37, %p38
      %p40 = scmp.ne.s32.totalorder %s26, %s27
      %p41 = scmp.eq.s32.totalorder %s19, 1
      %p42 = por %p40, %p41
      %p44 = scmp.ne.s32.totalorder %s27, %s43
      %p45 = scmp.eq.s32.totalorder %s19, 0
      %p46 = por %p44, %p45
      %s48 = sadd.s32 %s47, 1
      %p51 = scmp.eq.s32.totalorder %s13, 1
      %p52 = scmp.ne.s32.totalorder %s47, %s49
      %p53 = scmp.eq.s32.totalorder %s13, 0
      %p54 = por %p52, %p53
      %p55 = scmp.ne.s32.totalorder %s47, %s49
      %p56 = scmp.eq.s32.totalorder %s18, 1
      %p57 = por %p55, %p56
      %p58 = scmp.ne.s32.totalorder %s49, %s50
      %p59 = scmp.eq.s32.totalorder %s18, 0
      %p60 = por %p58, %p59
      %p61 = scmp.ne.s32.totalorder %s49, %s50
      %p62 = scmp.eq.s32.totalorder %s19, 1
      %p63 = por %p61, %p62
      %p65 = scmp.ne.s32.totalorder %s50, %s64
      %p66 = scmp.eq.s32.totalorder %s19, 0
      %p67 = por %p65, %p66
      %s69 = sadd.s32 %s68, 1
      %p72 = scmp.eq.s32.totalorder %s13, 1
      %p73 = scmp.ne.s32.totalorder %s68, %s70
      %p74 = scmp.eq.s32.totalorder %s13, 0
      %p75 = por %p73, %p74
      %p76 = scmp.ne.s32.totalorder %s68, %s70
      %p77 = scmp.eq.s32.totalorder %s18, 1
      %p78 = por %p76, %p77
      %p79 = scmp.ne.s32.totalorder %s70, %s71
      %p80 = scmp.eq.s32.totalorder %s18, 0
      %p81 = por %p79, %p80
      %p82 = scmp.ne.s32.totalorder %s70, %s71
      %p83 = scmp.eq.s32.totalorder %s19, 1
      %p84 = por %p82, %p83
      %p86 = scmp.ne.s32.totalorder %s71, %s85
      %p87 = scmp.eq.s32.totalorder %s19, 0
      %p88 = por %p86, %p87
      %s89 = ssub.s32 %s13, %s20
      %p90 = scmp.eq.s32.totalorder %s89, 0
      %s92 = sadd.s32 %s91, 1
      %s93 = scalar_select %p90, %s91, %s92
      %p96 = pneg %p90
      %p97 = scmp.eq.s32.totalorder %s13, 1
      %p98 = por %p96, %p97
      %p99 = scmp.ne.s32.totalorder %s91, %s94
      %p100 = scmp.eq.s32.totalorder %s13, 0
      %p101 = por %p99, %p100
      %p102 = scmp.ne.s32.totalorder %s91, %s94
      %p103 = scmp.eq.s32.totalorder %s18, 1
      %p104 = por %p102, %p103
      %p105 = scmp.ne.s32.totalorder %s94, %s95
      %p106 = scmp.eq.s32.totalorder %s18, 0
      %p107 = por %p105, %p106
      %p108 = scmp.ne.s32.totalorder %s94, %s95
      %p109 = scmp.eq.s32.totalorder %s19, 1
      %p110 = por %p108, %p109
      %p112 = scmp.ne.s32.totalorder %s95, %s111
      %p113 = scmp.eq.s32.totalorder %s19, 0
      %p114 = por %p112, %p113
      %s115 = ssub.s32 %s13, %s20
      %p116 = scmp.eq.s32.totalorder %s115, 0
      %s118 = sadd.s32 %s117, 1
      %s119 = scalar_select %p116, %s117, %s118
      %p122 = pneg %p116
      %p123 = scmp.eq.s32.totalorder %s13, 1
      %p124 = por %p122, %p123
      %p125 = scmp.ne.s32.totalorder %s117, %s120
      %p126 = scmp.eq.s32.totalorder %s13, 0
      %p127 = por %p125, %p126
      %p128 = scmp.ne.s32.totalorder %s117, %s120
      %p129 = scmp.eq.s32.totalorder %s18, 1
      %p130 = por %p128, %p129
      %p131 = scmp.ne.s32.totalorder %s120, %s121
      %p132 = scmp.eq.s32.totalorder %s18, 0
      %p133 = por %p131, %p132
      %p134 = scmp.ne.s32.totalorder %s120, %s121
      %p135 = scmp.eq.s32.totalorder %s19, 1
      %p136 = por %p134, %p135
      %p138 = scmp.ne.s32.totalorder %s121, %s137
      %p139 = scmp.eq.s32.totalorder %s19, 0
      %p140 = por %p138, %p139
      %p141 = scmp.le.s32.totalorder 1, %s13
      %p142 = scmp.lt.s32.totalorder %s13, 3
      %p143 = pnand %p141, %p142
      %p144 = pneg %p143
      // Predicated region
      $region9: #{fwd.11} parent=5 // pred_check
        _
      $region10: #{fwd.11} parent=5 // pred_check_branch
        %146 = sbr.rel (%p143) target = $region12
      $region11: #{fwd.11} parent=5 // pred_region
        %s147 = ssub.s32 %s13, 1
        // Predicated region
        $region13: #{fwd.11} parent=11 // pred_check
          %p148 = pneg %p60
        $region14: #{fwd.11} parent=11 // pred_check_branch
          %150 = sbr.rel (%p148) target = $region16
        $region15: #{fwd.11} parent=11 // pred_region
          _
        $region16: #{fwd.11} parent=11 // pred_fallthru
          _
        // Predicated region
        $region17: #{fwd.11} parent=11 // pred_check
          %p151 = pneg %p81
        $region18: #{fwd.11} parent=11 // pred_check_branch
          %153 = sbr.rel (%p151) target = $region20
        $region19: #{fwd.11} parent=11 // pred_region
          _
        $region20: #{fwd.11} parent=11 // pred_fallthru
          _
      $region12: #{fwd.11} parent=5 // pred_fallthru
        _
      %p154 = scmp.lt.s32.totalorder %s13, 2
      // Predicated region
      $region21: #{fwd.11} parent=5 // pred_check
        %p155 = pneg %p154
      $region22: #{fwd.11} parent=5 // pred_check_branch
        %157 = sbr.rel (%p155) target = $region24
      $region23: #{fwd.11} parent=5 // pred_region
        // Predicated region
        $region25: #{fwd.11} parent=23 // pred_check
          %p158 = pneg %p33
        $region26: #{fwd.11} parent=23 // pred_check_branch
          %160 = sbr.rel (%p158) target = $region28
        $region27: #{fwd.11} parent=23 // pred_region
          %s161 = smul.u32 8, %s13
          %p162 = scmp.lt.s32.totalorder %s161, 15
          %s163 = scalar_select %p162, %s161, 15
          %s164 = smul.addr %s163, 4
          %s165 = scalar_lea.vmem %s0, %s164
          %s166 = smul.u32 8, %s13
        $region28: #{fwd.11} parent=23 // pred_fallthru
          _
        // Predicated region
        $region29: #{fwd.11} parent=23 // pred_check
          %p167 = pneg %p101
        $region30: #{fwd.11} parent=23 // pred_check_branch
          %169 = sbr.rel (%p167) target = $region32
        $region31: #{fwd.11} parent=23 // pred_region
          %s170 = smul.u32 8, %s13
          %p171 = scmp.lt.s32.totalorder %s170, 15
          %s172 = scalar_select %p171, %s170, 15
          %s173 = smul.addr %s172, 2
          %s174 = smul.addr %s173, 8
          %s175 = scalar_lea.vmem %s3, %s174
          %s176 = smul.u32 8, %s13
        $region32: #{fwd.11} parent=23 // pred_fallthru
          _
      $region24: #{fwd.11} parent=5 // pred_fallthru
        _
      %p177 = scmp.le.s32.totalorder 1, %s13
      %p178 = scmp.lt.s32.totalorder %s13, 3
      %p179 = pnand %p177, %p178
      %p180 = pneg %p179
      // Predicated region
      $region33: #{fwd.11} parent=5 // pred_check
        _
      $region34: #{fwd.11} parent=5 // pred_check_branch
        %182 = sbr.rel (%p179) target = $region36
      $region35: #{fwd.11} parent=5 // pred_region
        %s183 = ssub.s32 %s13, 1
        %s184 = smul.u32 8, %s18
        %p185 = scmp.lt.s32.totalorder %s184, 15
        %s186 = scalar_select %p185, %s184, 15
        %s187 = smul.addr %s186, 4
        %s188 = scalar_lea.vmem %s0, %s187
        %p189 = pneg %p39
        %p190 = pneg %p36
        %p191 = pneg %p60
        %p192 = pneg %p57
        %p193 = pneg %p81
        %p194 = pneg %p78
        %s195 = smul.u32 8, %s18
        %p196 = scmp.lt.s32.totalorder %s195, 15
        %s197 = scalar_select %p196, %s195, 15
        %s198 = smul.addr %s197, 2
        %s199 = smul.addr %s198, 8
        %s200 = scalar_lea.vmem %s3, %s199
        %p201 = pneg %p107
        %p202 = pneg %p104
        %p203 = pneg %p133
        %p204 = pneg %p130
        %s205 = sand.u32 %s120, 1
        %s206 = scalar_lea.sflag [#allocation3], %s205
        %s207 = sand.u32 %s120, 1
        %s208 = smul.addr %s207, 128
        %s209 = scalar_lea.vmem [#allocation2], %s208
        %s210 = smul.u32 8, %s18
        %p211 = scmp.lt.s32.totalorder %s210, 15
        %s212 = scalar_select %p211, %s210, 15
        %s213 = smul.addr %s212, 4
        %s214 = scalar_lea.vmem %s0, %s213
        %s215 = smul.u32 8, %s18
        %s216 = smul.u32 8, %s18
        %p217 = scmp.lt.s32.totalorder %s216, 15
        %s218 = scalar_select %p217, %s216, 15
        %s219 = smul.addr %s218, 2
        %s220 = smul.addr %s219, 8
        %s221 = scalar_lea.vmem %s3, %s220
        %s222 = smul.u32 8, %s18
        %s223 = smul.u32 8, %s18
        %v224 = vld [vmem:[%s214] sm:$0xf]
        %v225 = vld [vmem:[%s214 + $0x4] sm:$0xf]
        %v226 = vld [vmem:[%s214 + $0x8] sm:$0xf]
        %v227 = vld [vmem:[%s214 + $0xc] sm:$0xf]
        %v228 = vld [vmem:[%s214 + $0x10] sm:$0xf]
        %v229 = vld [vmem:[%s214 + $0x14] sm:$0xf]
        %v230 = vld [vmem:[%s214 + $0x18] sm:$0xf]
        %v231 = vld [vmem:[%s214 + $0x1c] sm:$0xf]
        %v232 = vld [vmem:[%s1] sm:$0xff]
        %v233 = vld [vmem:[%s1 + $0x8] sm:$0xff]
        %v234 = vld [vmem:[%s1 + $0x10] sm:$0xff]
        %v235 = vld [vmem:[%s1 + $0x18] sm:$0xff]
        %v236 = vld [vmem:[%s1 + $0x20] sm:$0xff]
        %v237 = vld [vmem:[%s1 + $0x28] sm:$0xff]
        %v238 = vld [vmem:[%s1 + $0x30] sm:$0xff]
        %v239 = vld [vmem:[%s1 + $0x38] sm:$0xff]
        %v240 = vld [vmem:[%s1 + $0x40] sm:$0xff]
        %v241 = vld [vmem:[%s1 + $0x48] sm:$0xff]
        %v242 = vld [vmem:[%s1 + $0x50] sm:$0xff]
        %v243 = vld [vmem:[%s1 + $0x58] sm:$0xff]
        %v244 = vld [vmem:[%s1 + $0x60] sm:$0xff]
        %v245 = vld [vmem:[%s1 + $0x68] sm:$0xff]
        %v246 = vld [vmem:[%s1 + $0x70] sm:$0xff]
        %v247 = vld [vmem:[%s1 + $0x78] sm:$0xff]
        %v248 = vld [vmem:[%s2] sm:$0x3]
        %v250 = vperm.slane %v248, 0
        %v251 = vperm.slane %v248, 1
        %v262 = vunpack.c.l.b16 %v224
        %v263 = vunpack.c.l.b16 %v225
        %v264 = vunpack.c.l.b16 %v226
        %v265 = vunpack.c.l.b16 %v227
        %v266 = vunpack.c.l.b16 %v228
        %v267 = vunpack.c.l.b16 %v229
        %v268 = vunpack.c.l.b16 %v230
        %v269 = vunpack.c.l.b16 %v231
        %v270 = vpack.c.b16 %v263, %v262
        %v271 = vpack.c.b16 %v265, %v264
        %v272 = vpack.c.b16 %v267, %v266
        %v273 = vpack.c.b16 %v269, %v268
        %v294 = vunpack.c.l.b16 %v232
        %v295 = vunpack.c.h.b16 %v232
        %v296 = vunpack.c.l.b16 %v233
        %v297 = vunpack.c.h.b16 %v233
        %v298 = vunpack.c.l.b16 %v234
        %v299 = vunpack.c.h.b16 %v234
        %v300 = vunpack.c.l.b16 %v235
        %v301 = vunpack.c.h.b16 %v235
        %v302 = vunpack.c.l.b16 %v236
        %v303 = vunpack.c.h.b16 %v236
        %v304 = vunpack.c.l.b16 %v237
        %v305 = vunpack.c.h.b16 %v237
        %v306 = vunpack.c.l.b16 %v238
        %v307 = vunpack.c.h.b16 %v238
        %v308 = vunpack.c.l.b16 %v239
        %v309 = vunpack.c.h.b16 %v239
        %v310 = vunpack.c.l.b16 %v240
        %v311 = vunpack.c.h.b16 %v240
        %v312 = vunpack.c.l.b16 %v241
        %v313 = vunpack.c.h.b16 %v241
        %v314 = vunpack.c.l.b16 %v242
        %v315 = vunpack.c.h.b16 %v242
        %v316 = vunpack.c.l.b16 %v243
        %v317 = vunpack.c.h.b16 %v243
        %v318 = vunpack.c.l.b16 %v244
        %v319 = vunpack.c.h.b16 %v244
        %v320 = vunpack.c.l.b16 %v245
        %v321 = vunpack.c.h.b16 %v245
        %v322 = vunpack.c.l.b16 %v246
        %v323 = vunpack.c.h.b16 %v246
        %v324 = vunpack.c.l.b16 %v247
        %v325 = vunpack.c.h.b16 %v247
        %v326 = vpack.c.b16 %v296, %v294
        %v327 = vpack.c.b16 %v297, %v295
        %v328 = vpack.c.b16 %v300, %v298
        %v329 = vpack.c.b16 %v301, %v299
        %v330 = vpack.c.b16 %v304, %v302
        %v331 = vpack.c.b16 %v305, %v303
        %v332 = vpack.c.b16 %v308, %v306
        %v333 = vpack.c.b16 %v309, %v307
        %v334 = vpack.c.b16 %v312, %v310
        %v335 = vpack.c.b16 %v313, %v311
        %v336 = vpack.c.b16 %v316, %v314
        %v337 = vpack.c.b16 %v317, %v315
        %v338 = vpack.c.b16 %v320, %v318
        %v339 = vpack.c.b16 %v321, %v319
        %v340 = vpack.c.b16 %v324, %v322
        %v341 = vpack.c.b16 %v325, %v323
        %358 = vmatpush.bf16.msra.mxu0 %v340
        %359 = vmatpush.bf16.msra.mxu0 %v338
        %360 = vmatpush.bf16.msra.mxu0 %v336
        %361 = vmatpush.bf16.msra.mxu0 %v334
        %362 = vmatpush.bf16.msra.mxu0 %v332
        %363 = vmatpush.bf16.msra.mxu0 %v330
        %364 = vmatpush.bf16.msra.mxu0 %v328
        %365 = vmatpush.bf16.msra.mxu0 %v326
        %366 = vmatmul.bf16.gmra.mxu0 %v270
        %v367 = vpop.f32.mrf.mxu0
        %v368 = vadd.f32 %v250, %v367
        %v369 = vpop.f32.mrf.mxu0
        %v370 = vadd.f32 %v250, %v369
        %371 = vmatmul.bf16.gmra.mxu0 %v271
        %v372 = vpop.f32.mrf.mxu0
        %v373 = vadd.f32 %v250, %v372
        %v374 = vpop.f32.mrf.mxu0
        %v375 = vadd.f32 %v250, %v374
        %376 = vmatmul.bf16.gmra.mxu0 %v272
        %v377 = vpop.f32.mrf.mxu0
        %v378 = vadd.f32 %v250, %v377
        %v379 = vpop.f32.mrf.mxu0
        %v380 = vadd.f32 %v250, %v379
        %381 = vmatmul.bf16.gmra.mxu0 %v273
        %v382 = vpop.f32.mrf.mxu0
        %v383 = vadd.f32 %v250, %v382
        %v384 = vpop.f32.mrf.mxu0
        %v385 = vadd.f32 %v250, %v384
        %386 = vdwg.mxu0
        %387 = vmatpush.bf16.msra.mxu0 %v341
        %388 = vmatpush.bf16.msra.mxu0 %v339
        %389 = vmatpush.bf16.msra.mxu0 %v337
        %390 = vmatpush.bf16.msra.mxu0 %v335
        %391 = vmatpush.bf16.msra.mxu0 %v333
        %392 = vmatpush.bf16.msra.mxu0 %v331
        %393 = vmatpush.bf16.msra.mxu0 %v329
        %394 = vmatpush.bf16.msra.mxu0 %v327
        %395 = vmatmul.bf16.gmra.mxu0 %v270
        %v396 = vpop.f32.mrf.mxu0
        %v397 = vadd.f32 %v251, %v396
        %v398 = vpop.f32.mrf.mxu0
        %v399 = vadd.f32 %v251, %v398
        %400 = vmatmul.bf16.gmra.mxu0 %v271
        %v401 = vpop.f32.mrf.mxu0
        %v402 = vadd.f32 %v251, %v401
        %v403 = vpop.f32.mrf.mxu0
        %v404 = vadd.f32 %v251, %v403
        %405 = vmatmul.bf16.gmra.mxu0 %v272
        %v406 = vpop.f32.mrf.mxu0
        %v407 = vadd.f32 %v251, %v406
        %v408 = vpop.f32.mrf.mxu0
        %v409 = vadd.f32 %v251, %v408
        %410 = vmatmul.bf16.gmra.mxu0 %v273
        %v411 = vpop.f32.mrf.mxu0
        %v412 = vadd.f32 %v251, %v411
        %v413 = vpop.f32.mrf.mxu0
        %v414 = vadd.f32 %v251, %v413
        %415 = vdwg.mxu0
        %v416 = vld [vmem:[%s221] sm:$0xff]
        %v417 = vld [vmem:[%s221 + $0x8] sm:$0xff]
        %v418 = vld [vmem:[%s221 + $0x10] sm:$0xff]
        %v419 = vld [vmem:[%s221 + $0x18] sm:$0xff]
        %v420 = vld [vmem:[%s221 + $0x20] sm:$0xff]
        %v421 = vld [vmem:[%s221 + $0x28] sm:$0xff]
        %v422 = vld [vmem:[%s221 + $0x30] sm:$0xff]
        %v423 = vld [vmem:[%s221 + $0x38] sm:$0xff]
        %v424 = vld [vmem:[%s221 + $0x40] sm:$0xff]
        %v425 = vld [vmem:[%s221 + $0x48] sm:$0xff]
        %v426 = vld [vmem:[%s221 + $0x50] sm:$0xff]
        %v427 = vld [vmem:[%s221 + $0x58] sm:$0xff]
        %v428 = vld [vmem:[%s221 + $0x60] sm:$0xff]
        %v429 = vld [vmem:[%s221 + $0x68] sm:$0xff]
        %v430 = vld [vmem:[%s221 + $0x70] sm:$0xff]
        %v431 = vld [vmem:[%s221 + $0x78] sm:$0xff]
        %v432 = vadd.f32 %v368, %v416
        %v433 = vadd.f32 %v397, %v417
        %v434 = vadd.f32 %v370, %v418
        %v435 = vadd.f32 %v399, %v419
        %v436 = vadd.f32 %v373, %v420
        %v437 = vadd.f32 %v402, %v421
        %v438 = vadd.f32 %v375, %v422
        %v439 = vadd.f32 %v404, %v423
        %v440 = vadd.f32 %v378, %v424
        %v441 = vadd.f32 %v407, %v425
        %v442 = vadd.f32 %v380, %v426
        %v443 = vadd.f32 %v409, %v427
        %v444 = vadd.f32 %v383, %v428
        %v445 = vadd.f32 %v412, %v429
        %v446 = vadd.f32 %v385, %v430
        %v447 = vadd.f32 %v414, %v431
        %v448 = vmax.f32 %v432, 0.0
        %v449 = vmax.f32 %v433, 0.0
        %v450 = vmax.f32 %v434, 0.0
        %v451 = vmax.f32 %v435, 0.0
        %v452 = vmax.f32 %v436, 0.0
        %v453 = vmax.f32 %v437, 0.0
        %v454 = vmax.f32 %v438, 0.0
        %v455 = vmax.f32 %v439, 0.0
        %v456 = vmax.f32 %v440, 0.0
        %v457 = vmax.f32 %v441, 0.0
        %v458 = vmax.f32 %v442, 0.0
        %v459 = vmax.f32 %v443, 0.0
        %v460 = vmax.f32 %v444, 0.0
        %v461 = vmax.f32 %v445, 0.0
        %v462 = vmax.f32 %v446, 0.0
        %v463 = vmax.f32 %v447, 0.0
        %464 = vst [vmem:[%s209] sm:$0xff] %v448
        %465 = vst [vmem:[%s209 + $0x8] sm:$0xff] %v449
        %466 = vst [vmem:[%s209 + $0x10] sm:$0xff] %v450
        %467 = vst [vmem:[%s209 + $0x18] sm:$0xff] %v451
        %468 = vst [vmem:[%s209 + $0x20] sm:$0xff] %v452
        %469 = vst [vmem:[%s209 + $0x28] sm:$0xff] %v453
        %470 = vst [vmem:[%s209 + $0x30] sm:$0xff] %v454
        %471 = vst [vmem:[%s209 + $0x38] sm:$0xff] %v455
        %472 = vst [vmem:[%s209 + $0x40] sm:$0xff] %v456
        %473 = vst [vmem:[%s209 + $0x48] sm:$0xff] %v457
        %474 = vst [vmem:[%s209 + $0x50] sm:$0xff] %v458
        %475 = vst [vmem:[%s209 + $0x58] sm:$0xff] %v459
        %476 = vst [vmem:[%s209 + $0x60] sm:$0xff] %v460
        %477 = vst [vmem:[%s209 + $0x68] sm:$0xff] %v461
        %478 = vst [vmem:[%s209 + $0x70] sm:$0xff] %v462
        %479 = vst [vmem:[%s209 + $0x78] sm:$0xff] %v463
        %s480 = sand.u32 %s120, 1
        %s481 = scalar_lea.sflag [#allocation3], %s480
        %s482 = sand.u32 %s120, 1
        %s483 = smul.addr %s482, 128
        %s484 = scalar_lea.vmem [#allocation2], %s483
        // Predicated region
        $region37: #{fwd.11} parent=35 // pred_check
          %p485 = pneg %p130
        $region38: #{fwd.11} parent=35 // pred_check_branch
          %487 = sbr.rel (%p485) target = $region40
        $region39: #{fwd.11} parent=35 // pred_region
          %s488 = smul.u32 8, %s18
          %490 = vsyncadd %s481, 0
          %s491 = smul.addr %s488, 2
          %s492 = smul.addr %s491, 8
          %s493 = scalar_lea.hbm %s4, %s492
          %s494 = sshll.u32 %s484, 4
          %s495 = int_to_ptr.vmem [resolvable:$true] %s494
          %s496 = sshll.u32 %s493, 4
          %s497 = int_to_ptr.hbm [resolvable:$true] %s496
          %502 = dma.vmem_to_hbm [thread:$0]  %s495, 2048, %s497, %s481, 256, 256, 16
        $region40: #{fwd.11} parent=35 // pred_fallthru
          _
      $region36: #{fwd.11} parent=5 // pred_fallthru
        _
      %p503 = scmp.le.s32.totalorder 2, %s13
      // Predicated region
      $region41: #{fwd.11} parent=5 // pred_check
        %p504 = pneg %p503
      $region42: #{fwd.11} parent=5 // pred_check_branch
        %506 = sbr.rel (%p504) target = $region44
      $region43: #{fwd.11} parent=5 // pred_region
        %s507 = ssub.s32 %s13, 2
        // Predicated region
        $region45: #{fwd.11} parent=43 // pred_check
          %p508 = pneg %p136
        $region46: #{fwd.11} parent=43 // pred_check_branch
          %510 = sbr.rel (%p508) target = $region48
        $region47: #{fwd.11} parent=43 // pred_region
          %s511 = sand.u32 %s121, 1
          %s512 = scalar_lea.sflag [#allocation3], %s511
          %s513 = sand.u32 %s121, 1
          %s514 = smul.addr %s513, 128
          %s515 = scalar_lea.vmem [#allocation2], %s514
          %517 = dma.done %s512, 2048
        $region48: #{fwd.11} parent=43 // pred_fallthru
          _
      $region44: #{fwd.11} parent=5 // pred_fallthru
        _
    $region6: #{fwd.11} parent=1 // loop_footer
      %s17 = sadd.s32 1, %s13
    $region7: #{fwd.11} parent=1 // loop_footer_branch
      %12 = sbr.rel target = $region3
    $region8: #{fwd.11} parent=1 // loop_exit
      _
    %518 = vsyncpa [#allocation3], 1
    %s519 = scalar_lea.sflag [#allocation3], 1
    %520 = vsyncpa %s519, 1

</llo_original>
